<compile_context>
chip_gen: v7x
topology: tpu7x:2x2x1
jax: 0.10.0
libtpu: 0.0.40
codegen_flags: <defaults>
</compile_context>

<pallas_src>
import functools

import jax
import jax.numpy as jnp
from jax.experimental import pallas as pl
from jax.experimental.pallas import tpu as pltpu

_LANE = 128
_SUBLANE = 8


def _round_up(x, m):
    return ((x + m - 1) // m) * m


def _default_vmem_limit():
    # Per-generation VMEM budget with ~20% headroom (v5e/v6e: 128 MiB physical,
    # v7x: 64 MiB physical).  Fallback is safe on every generation.
    try:
        cap = int(pltpu.get_tpu_info().vmem_capacity_bytes)
        return max(32 * 1024 * 1024, (cap * 4) // 5)
    except Exception:
        return 48 * 1024 * 1024


VMEM_LIMIT_BYTES = _default_vmem_limit()


# ----------------------- row/col-tiled matmul + bias ----------------------
def _matmul_bias_kernel(x_ref, w_ref, b_ref, o_ref):
    o_ref[...] = (jnp.dot(x_ref[...], w_ref[...],
                          preferred_element_type=jnp.float32)
                  + b_ref[...]).astype(o_ref.dtype)


def matmul_bias(x2d, w_t, b_row, *, tile_m=512, tile_c=1024, out_dtype=jnp.float32):
    """x2d: (N, K), w_t: (K, Cout), b_row: (1, Cout) -> (N, Cout).

    Cout must be a multiple of 128 (callers pad the class dim) so every output
    store is lane-dense; the grid tiles rows AND the class dim so neither the
    full weight nor a full-width output tile has to stay resident.
    """
    N, K = x2d.shape
    Cout = w_t.shape[1]
    assert Cout % _LANE == 0
    # dtype-aware row floor: bf16 native sublane tile is 16 rows, f32 is 8.
    row_floor = 16 if x2d.dtype.itemsize < 4 else _SUBLANE
    tm = tile_m if N >= tile_m else _round_up(max(N, row_floor), row_floor)
    Npad = _round_up(N, tm)
    if Npad != N:
        x2d = jnp.pad(x2d, ((0, Npad - N), (0, 0)))

    tc = min(tile_c, Cout)
    while Cout % tc:
        tc -= _LANE

    flops = 2 * Npad * K * Cout
    bytes_accessed = int(Npad * K * x2d.dtype.itemsize
                         + K * Cout * w_t.dtype.itemsize
                         + Cout * 4
                         + Npad * Cout * jnp.dtype(out_dtype).itemsize)

    # TODO(synk): add a K grid axis (f32 VMEM accumulator) for very large K so the
    #             weight column panel does not have to stay resident.
    out = pl.pallas_call(
        _matmul_bias_kernel,
        out_shape=jax.ShapeDtypeStruct((Npad, Cout), out_dtype),
        grid_spec=pltpu.PrefetchScalarGridSpec(
            num_scalar_prefetch=0,
            grid=(Npad // tm, Cout // tc),
            in_specs=[
                pl.BlockSpec((tm, K), lambda i, j: (i, 0)),
                pl.BlockSpec((K, tc), lambda i, j: (0, j)),
                pl.BlockSpec((1, tc), lambda i, j: (0, j)),
            ],
            out_specs=pl.BlockSpec((tm, tc), lambda i, j: (i, j)),
        ),
        compiler_params=pltpu.CompilerParams(
            dimension_semantics=("parallel", "parallel"),
            vmem_limit_bytes=VMEM_LIMIT_BYTES),
        cost_estimate=pl.CostEstimate(flops=flops, transcendentals=0,
                                      bytes_accessed=bytes_accessed),
    )(x2d, w_t, b_row)
    return out[:N]


# --------------------------- fused multi-layer GRU ----------------------------
def _fused_gru_kernel(x_ref, wih0_ref, bih0_ref, wih_r_ref, bih_r_ref,
                      whh_ref, bhh_ref, out_ref, hn_ref,
                      h_scr, gi_scr, act_scr,
                      *, batch_pad, time_steps, seq_len, mask_tail):
    """One grid step = one block of `time_steps` timesteps, all layers chained.

    x_ref    : (T*Bp, E)              bf16  embedded inputs (s-major, b-minor rows)
    wih0_ref : (E, 3*Hp)              bf16  layer-0 input weights (gate-padded)
    bih0_ref : (1, 3*Hp)              f32
    wih_r_ref: (max(L-1,1), Hp, 3*Hp) bf16  input weights, layers 1..L-1
    bih_r_ref: (max(L-1,1), 1, 3*Hp)  f32
    whh_ref  : (L, Hp, 3*Hp)          bf16  recurrent weights (gate-padded)
    bhh_ref  : (L, 1, 3*Hp)           f32
    out_ref  : (T*Bp, Hp)             bf16  final-layer hidden states
    hn_ref   : (L, Bp, Hp)            f32   resident; rewritten every block
    h_scr    : (L, Bp, Hp)            f32   hidden-state carry across time blocks
    gi_scr   : (T*Bp, 3*Hp)           f32   current layer's batched input gates
    act_scr  : (T*Bp, Hp)             f32   current (non-final) layer's outputs
    """
    Bp = batch_pad
    T = time_steps
    L, Hp, _ = whh_ref.shape
    cdt = whh_ref.dtype
    blk = pl.program_id(0)

    @pl.when(blk == 0)
    def _init():
        h_scr[...] = jnp.zeros_like(h_scr)

    def run_block(n_steps):
        for l in range(L):
            # Batched input-gate matmul for the whole block (off the serial chain).
            if l == 0:
                gi_scr[...] = (jnp.dot(x_ref[...], wih0_ref[...],
                                       preferred_element_type=jnp.float32)
                               + bih0_ref[...])
            else:
                gi_scr[...] = (jnp.dot(act_scr[...].astype(cdt), wih_r_ref[l - 1],
                                       preferred_element_type=jnp.float32)
                               + bih_r_ref[l - 1])
            last_layer = l == L - 1

            def step(t, h, l=l, last_layer=last_layer):
                row = pl.multiple_of(t * Bp, Bp)
                gi_t = gi_scr[pl.ds(row, Bp), :]                     # (Bp, 3Hp) f32
                gh = jnp.dot(h.astype(cdt), whh_ref[l],
                             preferred_element_type=jnp.float32) + bhh_ref[l]
                # gate slices are lane-aligned (Hp is a multiple of 128)
                r = jax.nn.sigmoid(gi_t[:, :Hp] + gh[:, :Hp])
                z = jax.nn.sigmoid(gi_t[:, Hp:2 * Hp] + gh[:, Hp:2 * Hp])
                n = jnp.tanh(gi_t[:, 2 * Hp:] + r * gh[:, 2 * Hp:])
                h_new = n + z * (h - n)                              # 3-op blend
                if last_layer:
                    out_ref[pl.ds(row, Bp), :] = h_new.astype(out_ref.dtype)
                else:
                    act_scr[pl.ds(row, Bp), :] = h_new
                return h_new

            h_scr[l] = jax.lax.fori_loop(0, n_steps, step, h_scr[l], unroll=True)

        hn_ref[...] = h_scr[...]          # last write (last block) is the real hn

    if not mask_tail:
        run_block(T)
    else:
        # Tail handling is confined to the last block: run only the valid steps
        # there; full blocks carry no per-step select on the critical path.
        nblk = (seq_len + T - 1) // T
        tail = seq_len - (nblk - 1) * T

        @pl.when(blk < nblk - 1)
        def _full():
            run_block(T)

        @pl.when(blk == nblk - 1)
        def _tail():
            run_block(tail)


def fused_gru(x_rows, wih0_t, bih0, wih_rest, bih_rest, whh_all, bhh_all,
              *, batch_pad, seq_len, time_block=16):
    """x_rows: (S*Bp, E) bf16 time-major rows.
    Returns (out (S*Bp, Hp) bf16, hn (L, Bp, Hp) f32)."""
    Bp = batch_pad
    S = seq_len
    E = x_rows.shape[1]
    L, Hp, H3p = whh_all.shape
    Lr = wih_rest.shape[0]

    T = min(time_block, S)
    Spad = _round_up(S, T)
    if Spad != S:
        x_rows = jnp.pad(x_rows, ((0, (Spad - S) * Bp), (0, 0)))
    mask_tail = Spad != S
    nblk = Spad // T

    witem = whh_all.dtype.itemsize
    flops = int(2 * Spad * Bp * 3 * Hp * (E + Hp * (L - 1) + Hp * L)
                + 10 * Spad * Bp * Hp * L)
    transcendentals = int(3 * Spad * Bp * Hp * L)
    bytes_accessed = int(Spad * Bp * E * x_rows.dtype.itemsize
                         + Spad * Bp * Hp * 2
                         + L * Bp * Hp * 4
                         + (E + (Lr + L) * Hp) * H3p * witem
                         + (1 + Lr + L) * H3p * 4)

    kernel = functools.partial(_fused_gru_kernel, batch_pad=Bp, time_steps=T,
                               seq_len=S, mask_tail=mask_tail)

    # TODO(synk): v7x — leading "parallel" batch-tile grid axis (2 TensorCores) once
    #             Bp >= 16 per core; stream per-layer weights when they near 64 MiB.
    out, hn = pl.pallas_call(
        kernel,
        out_shape=(jax.ShapeDtypeStruct((Spad * Bp, Hp), jnp.bfloat16),
                   jax.ShapeDtypeStruct((L, Bp, Hp), jnp.float32)),
        grid_spec=pltpu.PrefetchScalarGridSpec(
            num_scalar_prefetch=0,
            grid=(nblk,),
            in_specs=[
                pl.BlockSpec((T * Bp, E), lambda i: (i, 0)),        # embed block
                pl.BlockSpec((E, H3p), lambda i: (0, 0)),           # Wih layer 0
                pl.BlockSpec((1, H3p), lambda i: (0, 0)),
                pl.BlockSpec((Lr, Hp, H3p), lambda i: (0, 0, 0)),   # Wih 1..L-1
                pl.BlockSpec((Lr, 1, H3p), lambda i: (0, 0, 0)),
                pl.BlockSpec((L, Hp, H3p), lambda i: (0, 0, 0)),    # Whh all layers
                pl.BlockSpec((L, 1, H3p), lambda i: (0, 0, 0)),
            ],
            out_specs=[
                pl.BlockSpec((T * Bp, Hp), lambda i: (i, 0)),       # out block (bf16)
                pl.BlockSpec((L, Bp, Hp), lambda i: (0, 0, 0)),     # resident hn
            ],
            scratch_shapes=[
                pltpu.VMEM((L, Bp, Hp), jnp.float32),               # h carry
                pltpu.VMEM((T * Bp, H3p), jnp.float32),             # gi block
                pltpu.VMEM((T * Bp, Hp), jnp.float32),              # layer acts
            ],
        ),
        compiler_params=pltpu.CompilerParams(
            dimension_semantics=("arbitrary",),                     # sequential in time
            vmem_limit_bytes=VMEM_LIMIT_BYTES),
        cost_estimate=pl.CostEstimate(flops=flops,
                                      transcendentals=transcendentals,
                                      bytes_accessed=bytes_accessed),
    )(x_rows, wih0_t, bih0, wih_rest, bih_rest, whh_all, bhh_all)
    return out[:S * Bp], hn


# --------------------------------- parameters ---------------------------------
def init_params(key, num_classes, embed_dim, hidden_size, num_layers):
    """Raw PyTorch-layout parameters (weight_ih: (3H, in), weight_hh: (3H, H))."""
    ks = jax.random.split(key, 3 + 4 * num_layers)
    scale = 0.1
    params = {
        "embed": scale * jax.random.normal(ks[0], (num_classes, embed_dim), jnp.float32),
        "layers": [],
        "proj_w": scale * jax.random.normal(ks[1], (num_classes, hidden_size), jnp.float32),
        "proj_b": scale * jax.random.normal(ks[2], (num_classes,), jnp.float32),
    }
    for l in range(num_layers):
        in_dim = embed_dim if l == 0 else hidden_size
        kw = ks[3 + 4 * l: 3 + 4 * (l + 1)]
        params["layers"].append({
            "wih": scale * jax.random.normal(kw[0], (3 * hidden_size, in_dim), jnp.float32),
            "whh": scale * jax.random.normal(kw[1], (3 * hidden_size, hidden_size), jnp.float32),
            "bih": scale * jax.random.normal(kw[2], (3 * hidden_size,), jnp.float32),
            "bhh": scale * jax.random.normal(kw[3], (3 * hidden_size,), jnp.float32),
        })
    return params


def _pad_gate_cols(w_t, H, Hp):
    """(in_dim, 3H) -> (in_dim, 3*Hp): each gate block zero-padded to Hp lanes."""
    in_dim = w_t.shape[0]
    w3 = jnp.pad(w_t.reshape(in_dim, 3, H), ((0, 0), (0, 0), (0, Hp - H)))
    return w3.reshape(in_dim, 3 * Hp)


def _pad_gate_bias(b, H, Hp):
    return jnp.pad(b.reshape(3, H), ((0, 0), (0, Hp - H))).reshape(1, 3 * Hp)


def _pad_rows(w, Hp):
    return jnp.pad(w, ((0, Hp - w.shape[0]), (0, 0)))


def prepare_params(raw, compute_dtype=jnp.bfloat16):
    """One-time: transpose to (in, 3H), pad each gate (and the hidden / class dims)
    to 128-lane multiples so all in-kernel slices are lane-aligned, stack layers,
    and cast MXU operands to bf16.  Zero padding keeps padded hidden columns at
    exactly zero through the recurrence, so results are unchanged after slicing."""
    layers = raw["layers"]
    L = len(layers)
    H = layers[0]["whh"].shape[1]
    Hp = _round_up(H, _LANE)
    C = raw["proj_w"].shape[0]
    Cp = _round_up(C, _LANE)

    wih0_t = _pad_gate_cols(layers[0]["wih"].T, H, Hp).astype(compute_dtype)   # (E, 3Hp)
    bih0 = _pad_gate_bias(layers[0]["bih"], H, Hp).astype(jnp.float32)

    whh_all = jnp.stack([_pad_rows(_pad_gate_cols(lp["whh"].T, H, Hp), Hp)
                         for lp in layers]).astype(compute_dtype)               # (L, Hp, 3Hp)
    bhh_all = jnp.stack([_pad_gate_bias(lp["bhh"], H, Hp)
                         for lp in layers]).astype(jnp.float32)                 # (L, 1, 3Hp)

    if L > 1:
        wih_rest = jnp.stack([_pad_rows(_pad_gate_cols(lp["wih"].T, H, Hp), Hp)
                              for lp in layers[1:]]).astype(compute_dtype)      # (L-1, Hp, 3Hp)
        bih_rest = jnp.stack([_pad_gate_bias(lp["bih"], H, Hp)
                              for lp in layers[1:]]).astype(jnp.float32)
    else:
        # TODO(synk): drop the dummy operand entirely when num_layers == 1 to avoid
        #             one tiny redundant DMA / VMEM residency.
        wih_rest = jnp.zeros((1, Hp, 3 * Hp), compute_dtype)
        bih_rest = jnp.zeros((1, 1, 3 * Hp), jnp.float32)

    proj_w_t = jnp.pad(raw["proj_w"].T, ((0, Hp - H), (0, Cp - C))).astype(compute_dtype)
    proj_b = jnp.pad(raw["proj_b"], (0, Cp - C)).reshape(1, Cp).astype(jnp.float32)

    return {
        "embed": raw["embed"].astype(compute_dtype),
        "wih0_t": wih0_t, "bih0": bih0,
        "wih_rest": wih_rest, "bih_rest": bih_rest,
        "whh_all": whh_all, "bhh_all": bhh_all,
        "proj_w_t": proj_w_t, "proj_b": proj_b,
    }


# ---------------------------------- forward -----------------------------------
@functools.partial(jax.jit, static_argnames=("hidden_size",))
def char_rnn_forward(params, x, *, hidden_size):
    """x: (batch, seq) int32 token ids.
    Returns (logits (batch*seq, num_classes) f32, h0 (L, batch, hidden) f32),
    matching CharRNN.forward with hs=None."""
    B, S = x.shape
    C = params["embed"].shape[0]
    L, Hp, _ = params["whh_all"].shape
    H = hidden_size
    Bp = _round_up(B, _SUBLANE)        # 8-row granule so per-step slices are aligned

    # Embedding gather directly in time-major order (avoids a (B,S,E) transpose).
    emb_tm = jnp.take(params["embed"], jnp.transpose(x), axis=0)     # (S, B, E) bf16
    if Bp != B:
        emb_tm = jnp.pad(emb_tm, ((0, 0), (0, Bp - B), (0, 0)))
    x_rows = emb_tm.reshape(S * Bp, -1)

    # Fused layer-0 GI matmul + all GRU layers, T timesteps per grid step.
    out, hn = fused_gru(x_rows, params["wih0_t"], params["bih0"],
                        params["wih_rest"], params["bih_rest"],
                        params["whh_all"], params["bhh_all"],
                        batch_pad=Bp, seq_len=S)

    # Reorder the (cheap, Hp-wide) activations to batch-major BEFORE the projection
    # so no (S,B,C)->(B,S,C) transpose is needed on the C-wide logits.
    out3 = out.reshape(S, Bp, Hp)[:, :B, :]
    flat = jnp.transpose(out3, (1, 0, 2)).reshape(B * S, Hp)         # bf16

    logits = matmul_bias(flat, params["proj_w_t"], params["proj_b"])[:, :C]
    h0 = hn[:, :B, :H]
    return logits, h0


# ------------------------------ pure-JAX reference -----------------------------
def _ref_forward(params, x, *, hidden_size):
    B, S = x.shape
    C = params["embed"].shape[0]
    L, Hp, _ = params["whh_all"].shape
    cdt = params["whh_all"].dtype

    layer_in = jnp.take(params["embed"], jnp.transpose(x), axis=0)    # (S, B, E)
    hns = []
    for l in range(L):
        wih_t = params["wih0_t"] if l == 0 else params["wih_rest"][l - 1]
        bih = params["bih0"] if l == 0 else params["bih_rest"][l - 1]
        whh_t = params["whh_all"][l]
        bhh = params["bhh_all"][l]
        h = jnp.zeros((B, Hp), jnp.float32)

        def step(h, x_t, wih_t=wih_t, bih=bih, whh_t=whh_t, bhh=bhh):
            gi = jnp.dot(x_t.astype(cdt), wih_t, preferred_element_type=jnp.float32) + bih
            gh = jnp.dot(h.astype(cdt), whh_t, preferred_element_type=jnp.float32) + bhh
            r = jax.nn.sigmoid(gi[:, :Hp] + gh[:, :Hp])
            z = jax.nn.sigmoid(gi[:, Hp:2 * Hp] + gh[:, Hp:2 * Hp])
            n = jnp.tanh(gi[:, 2 * Hp:] + r * gh[:, 2 * Hp:])
            h_new = n + z * (h - n)
            return h_new, h_new

        h_last, outs = jax.lax.scan(step, h, layer_in)
        hns.append(h_last)
        layer_in = outs.astype(cdt)
    h0 = jnp.stack(hns, axis=0)[:, :, :hidden_size]

    flat = jnp.transpose(layer_in, (1, 0, 2)).reshape(B * S, Hp)
    logits = (jnp.dot(flat.astype(cdt), params["proj_w_t"],
                      preferred_element_type=jnp.float32) + params["proj_b"])[:, :C]
    return logits, h0


if __name__ == "__main__":
    num_classes, embed_dim, hidden_size, num_layers = 64, 16, 32, 2
    batch, seq_len = 2, 8

    key = jax.random.PRNGKey(0)
    pkey, xkey = jax.random.split(key)
    raw = init_params(pkey, num_classes, embed_dim, hidden_size, num_layers)
    params = prepare_params(raw)               # gate-padded, pre-transposed bf16 weights
    x = jax.random.randint(xkey, (batch, seq_len), 0, num_classes, dtype=jnp.int32)

    logits, h0 = char_rnn_forward(params, x, hidden_size=hidden_size)
    jax.block_until_ready((logits, h0))

    ref_logits, ref_h0 = _ref_forward(params, x, hidden_size=hidden_size)
    assert logits.shape == (batch * seq_len, num_classes), logits.shape
    assert h0.shape == (num_layers, batch, hidden_size), h0.shape
    assert jnp.allclose(logits, ref_logits, atol=3e-3, rtol=3e-3), (
        float(jnp.max(jnp.abs(logits - ref_logits))))
    assert jnp.allclose(h0, ref_h0, atol=3e-3, rtol=3e-3), (
        float(jnp.max(jnp.abs(h0 - ref_h0))))

    print("KERNEL_OK")
</pallas_src>

<mosaic_0001>
module attributes {stable_mosaic.version = 11 : i64} {
  func.func @_matmul_bias_kernel(%arg0: i32, %arg1: i32, %arg2: memref<16x128xbf16, #tpu.memory_space<vmem>>, %arg3: memref<128x128xbf16, #tpu.memory_space<vmem>>, %arg4: memref<1x128xf32, #tpu.memory_space<vmem>>, %arg5: memref<16x128xf32, #tpu.memory_space<vmem>>) attributes {dimension_semantics = [#tpu.dimension_semantics<parallel>, #tpu.dimension_semantics<parallel>], iteration_bounds = array<i64: 1, 1>, scalar_prefetch = 0 : i64, scratch_operands = 0 : i64, tpu.core_type = #tpu.core_type<tc>, window_params = [{transform_indices = @transform_0, window_bounds = array<i64: 16, 128>}, {transform_indices = @transform_1, window_bounds = array<i64: 128, 128>}, {transform_indices = @transform_2, window_bounds = array<i64: 1, 128>}, {transform_indices = @transform_3, window_bounds = array<i64: 16, 128>}]} {
    %c0 = arith.constant 0 : index
    %c0_0 = arith.constant 0 : index
    %0 = vector.load %arg2[%c0, %c0_0] : memref<16x128xbf16, #tpu.memory_space<vmem>>, vector<16x128xbf16>
    %c0_1 = arith.constant 0 : index
    %c0_2 = arith.constant 0 : index
    %1 = vector.load %arg3[%c0_1, %c0_2] : memref<128x128xbf16, #tpu.memory_space<vmem>>, vector<128x128xbf16>
    %cst = arith.constant dense<0.000000e+00> : vector<16x128xf32>
    %2 = tpu.matmul %0, %1, %cst {dimension_numbers = #tpu.dot_dimension_numbers<[1], [0], [0], [1], [0, 0, 1, 1], [], []>} : vector<16x128xbf16>, vector<128x128xbf16>, vector<16x128xf32> -> vector<16x128xf32>
    %c0_3 = arith.constant 0 : index
    %c0_4 = arith.constant 0 : index
    %3 = vector.load %arg4[%c0_3, %c0_4] : memref<1x128xf32, #tpu.memory_space<vmem>>, vector<1x128xf32>
    %4 = vector.broadcast %3 : vector<1x128xf32> to vector<16x128xf32>
    %5 = arith.addf %2, %4 : vector<16x128xf32>
    %c0_5 = arith.constant 0 : index
    %c0_6 = arith.constant 0 : index
    %6 = vector.load %arg5[%c0_5, %c0_6] : memref<16x128xf32, #tpu.memory_space<vmem>>, vector<16x128xf32>
    tpu.vector_store %arg5[%c0_5, %c0_6], %5 {strides = array<i32>} : memref<16x128xf32, #tpu.memory_space<vmem>>, vector<16x128xf32>,
    return
  }
  func.func @transform_0(%arg0: i32, %arg1: i32) -> (i32, i32) {
    %c0_i32 = arith.constant 0 : i32
    %c0_i32_0 = arith.constant 0 : i32
    return %arg0, %c0_i32 : i32, i32
  }
  func.func @transform_1(%arg0: i32, %arg1: i32) -> (i32, i32) {
    %c0_i32 = arith.constant 0 : i32
    %c0_i32_0 = arith.constant 0 : i32
    return %c0_i32, %arg1 : i32, i32
  }
  func.func @transform_2(%arg0: i32, %arg1: i32) -> (i32, i32) {
    %c0_i32 = arith.constant 0 : i32
    %c0_i32_0 = arith.constant 0 : i32
    return %c0_i32, %arg1 : i32, i32
  }
  func.func @transform_3(%arg0: i32, %arg1: i32) -> (i32, i32) {
    %c0_i32 = arith.constant 0 : i32
    return %arg0, %arg1 : i32, i32
  }
}

module attributes {stable_mosaic.version = 11 : i64} {
  func.func @_fused_gru_kernel(%arg0: i32, %arg1: memref<64x16xbf16, #tpu.memory_space<vmem>>, %arg2: memref<16x384xbf16, #tpu.memory_space<vmem>>, %arg3: memref<1x384xf32, #tpu.memory_space<vmem>>, %arg4: memref<1x128x384xbf16, #tpu.memory_space<vmem>>, %arg5: memref<1x1x384xf32, #tpu.memory_space<vmem>>, %arg6: memref<2x128x384xbf16, #tpu.memory_space<vmem>>, %arg7: memref<2x1x384xf32, #tpu.memory_space<vmem>>, %arg8: memref<64x128xbf16, #tpu.memory_space<vmem>>, %arg9: memref<2x8x128xf32, #tpu.memory_space<vmem>>, %arg10: memref<2x8x128xf32, #tpu.memory_space<vmem>>, %arg11: memref<64x384xf32, #tpu.memory_space<vmem>>, %arg12: memref<64x128xf32, #tpu.memory_space<vmem>>) attributes {dimension_semantics = [#tpu.dimension_semantics<arbitrary>], iteration_bounds = array<i64: 1>, scalar_prefetch = 0 : i64, scratch_operands = 3 : i64, tpu.core_type = #tpu.core_type<tc>, window_params = [{transform_indices = @transform_0, window_bounds = array<i64: 64, 16>}, {pipeline_mode = #tpu.pipeline_mode<synchronous>, transform_indices = @transform_1, window_bounds = array<i64: 16, 384>}, {pipeline_mode = #tpu.pipeline_mode<synchronous>, transform_indices = @transform_2, window_bounds = array<i64: 1, 384>}, {pipeline_mode = #tpu.pipeline_mode<synchronous>, transform_indices = @transform_3, window_bounds = array<i64: 1, 128, 384>}, {pipeline_mode = #tpu.pipeline_mode<synchronous>, transform_indices = @transform_4, window_bounds = array<i64: 1, 1, 384>}, {pipeline_mode = #tpu.pipeline_mode<synchronous>, transform_indices = @transform_5, window_bounds = array<i64: 2, 128, 384>}, {pipeline_mode = #tpu.pipeline_mode<synchronous>, transform_indices = @transform_6, window_bounds = array<i64: 2, 1, 384>}, {transform_indices = @transform_7, window_bounds = array<i64: 64, 128>}, {pipeline_mode = #tpu.pipeline_mode<synchronous>, transform_indices = @transform_8, window_bounds = array<i64: 2, 8, 128>}]} {
    %c0_i32 = arith.constant 0 : i32
    %0 = arith.cmpi eq, %arg0, %c0_i32 : i32
    %1 = arith.extui %0 : i1 to i32
    %c0_i32_0 = arith.constant 0 : i32
    %2 = arith.cmpi ne, %1, %c0_i32_0 : i32
    scf.if %2 {
      %cst_238 = arith.constant 0.000000e+00 : f32
      %648 = vector.broadcast %cst_238 : f32 to vector<2x8x128xf32>
      %c0_239 = arith.constant 0 : index
      %c0_240 = arith.constant 0 : index
      %c0_241 = arith.constant 0 : index
      %649 = vector.load %arg10[%c0_239, %c0_240, %c0_241] : memref<2x8x128xf32, #tpu.memory_space<vmem>>, vector<2x8x128xf32>
      tpu.vector_store %arg10[%c0_239, %c0_240, %c0_241], %648 {strides = array<i32>} : memref<2x8x128xf32, #tpu.memory_space<vmem>>, vector<2x8x128xf32>,
    } else {
    }
    %c0 = arith.constant 0 : index
    %c0_1 = arith.constant 0 : index
    %3 = vector.load %arg1[%c0, %c0_1] : memref<64x16xbf16, #tpu.memory_space<vmem>>, vector<64x16xbf16>
    %c0_2 = arith.constant 0 : index
    %c0_3 = arith.constant 0 : index
    %4 = vector.load %arg2[%c0_2, %c0_3] : memref<16x384xbf16, #tpu.memory_space<vmem>>, vector<16x384xbf16>
    %cst = arith.constant dense<0.000000e+00> : vector<64x384xf32>
    %5 = tpu.matmul %3, %4, %cst {dimension_numbers = #tpu.dot_dimension_numbers<[1], [0], [0], [1], [0, 0, 1, 1], [], []>} : vector<64x16xbf16>, vector<16x384xbf16>, vector<64x384xf32> -> vector<64x384xf32>
    %c0_4 = arith.constant 0 : index
    %c0_5 = arith.constant 0 : index
    %6 = vector.load %arg3[%c0_4, %c0_5] : memref<1x384xf32, #tpu.memory_space<vmem>>, vector<1x384xf32>
    %7 = vector.broadcast %6 : vector<1x384xf32> to vector<64x384xf32>
    %8 = arith.addf %5, %7 : vector<64x384xf32>
    %c0_6 = arith.constant 0 : index
    %c0_7 = arith.constant 0 : index
    %9 = vector.load %arg11[%c0_6, %c0_7] : memref<64x384xf32, #tpu.memory_space<vmem>>, vector<64x384xf32>
    tpu.vector_store %arg11[%c0_6, %c0_7], %8 {strides = array<i32>} : memref<64x384xf32, #tpu.memory_space<vmem>>, vector<64x384xf32>,
    %c0_8 = arith.constant 0 : index
    %c0_9 = arith.constant 0 : index
    %c0_10 = arith.constant 0 : index
    %10 = vector.load %arg10[%c0_8, %c0_9, %c0_10] : memref<2x8x128xf32, #tpu.memory_space<vmem>>, vector<1x8x128xf32>
    %11 = vector.shape_cast %10 : vector<1x8x128xf32> to vector<8x128xf32>
    %c0_i32_11 = arith.constant 0 : i32
    %c8_i32 = arith.constant 8 : i32
    %12 = arith.muli %c0_i32_11, %c8_i32 : i32
    %13 = tpu.assume_multiple %12, 8 : i32
    %14 = arith.index_cast %13 : i32 to index
    %c0_12 = arith.constant 0 : index
    %15 = vector.load %arg11[%14, %c0_12] : memref<64x384xf32, #tpu.memory_space<vmem>>, vector<8x384xf32>
    %16 = arith.truncf %11 : vector<8x128xf32> to vector<8x128xbf16>
    %c0_13 = arith.constant 0 : index
    %c0_14 = arith.constant 0 : index
    %c0_15 = arith.constant 0 : index
    %17 = vector.load %arg6[%c0_13, %c0_14, %c0_15] : memref<2x128x384xbf16, #tpu.memory_space<vmem>>, vector<1x128x384xbf16>
    %18 = vector.shape_cast %17 : vector<1x128x384xbf16> to vector<128x384xbf16>
    %cst_16 = arith.constant dense<0.000000e+00> : vector<8x384xf32>
    %19 = tpu.matmul %16, %18, %cst_16 {dimension_numbers = #tpu.dot_dimension_numbers<[1], [0], [0], [1], [0, 0, 1, 1], [], []>} : vector<8x128xbf16>, vector<128x384xbf16>, vector<8x384xf32> -> vector<8x384xf32>
    %c0_17 = arith.constant 0 : index
    %c0_18 = arith.constant 0 : index
    %c0_19 = arith.constant 0 : index
    %20 = vector.load %arg7[%c0_17, %c0_18, %c0_19] : memref<2x1x384xf32, #tpu.memory_space<vmem>>, vector<1x1x384xf32>
    %21 = vector.shape_cast %20 : vector<1x1x384xf32> to vector<1x384xf32>
    %22 = vector.broadcast %21 : vector<1x384xf32> to vector<8x384xf32>
    %23 = arith.addf %19, %22 : vector<8x384xf32>
    %24 = vector.extract_strided_slice %15 {offsets = [0, 0], sizes = [8, 128], strides = [1, 1]} : vector<8x384xf32> to vector<8x128xf32>
    %25 = vector.extract_strided_slice %23 {offsets = [0, 0], sizes = [8, 128], strides = [1, 1]} : vector<8x384xf32> to vector<8x128xf32>
    %26 = arith.addf %24, %25 : vector<8x128xf32>
    %27 = arith.negf %26 : vector<8x128xf32>
    %28 = math.exp %27 : vector<8x128xf32>
    %cst_20 = arith.constant 1.000000e+00 : f32
    %29 = vector.broadcast %cst_20 : f32 to vector<8x128xf32>
    %30 = arith.addf %29, %28 : vector<8x128xf32>
    %31 = arith.divf %29, %30 : vector<8x128xf32>
    %32 = vector.extract_strided_slice %15 {offsets = [0, 128], sizes = [8, 128], strides = [1, 1]} : vector<8x384xf32> to vector<8x128xf32>
    %33 = vector.extract_strided_slice %23 {offsets = [0, 128], sizes = [8, 128], strides = [1, 1]} : vector<8x384xf32> to vector<8x128xf32>
    %34 = arith.addf %32, %33 : vector<8x128xf32>
    %35 = arith.negf %34 : vector<8x128xf32>
    %36 = math.exp %35 : vector<8x128xf32>
    %cst_21 = arith.constant 1.000000e+00 : f32
    %37 = vector.broadcast %cst_21 : f32 to vector<8x128xf32>
    %38 = arith.addf %37, %36 : vector<8x128xf32>
    %39 = arith.divf %37, %38 : vector<8x128xf32>
    %40 = vector.extract_strided_slice %15 {offsets = [0, 256], sizes = [8, 128], strides = [1, 1]} : vector<8x384xf32> to vector<8x128xf32>
    %41 = vector.extract_strided_slice %23 {offsets = [0, 256], sizes = [8, 128], strides = [1, 1]} : vector<8x384xf32> to vector<8x128xf32>
    %42 = arith.mulf %31, %41 : vector<8x128xf32>
    %43 = arith.addf %40, %42 : vector<8x128xf32>
    %44 = math.tanh %43 : vector<8x128xf32>
    %45 = arith.subf %11, %44 : vector<8x128xf32>
    %46 = arith.mulf %39, %45 : vector<8x128xf32>
    %47 = arith.addf %44, %46 : vector<8x128xf32>
    %48 = arith.index_cast %13 : i32 to index
    %c0_22 = arith.constant 0 : index
    %49 = vector.load %arg12[%48, %c0_22] : memref<64x128xf32, #tpu.memory_space<vmem>>, vector<8x128xf32>
    tpu.vector_store %arg12[%48, %c0_22], %47 {strides = array<i32>} : memref<64x128xf32, #tpu.memory_space<vmem>>, vector<8x128xf32>,
    %c1_i32 = arith.constant 1 : i32
    %c8_i32_23 = arith.constant 8 : i32
    %50 = arith.muli %c1_i32, %c8_i32_23 : i32
    %51 = tpu.assume_multiple %50, 8 : i32
    %52 = arith.index_cast %51 : i32 to index
    %c0_24 = arith.constant 0 : index
    %53 = vector.load %arg11[%52, %c0_24] : memref<64x384xf32, #tpu.memory_space<vmem>>, vector<8x384xf32>
    %54 = arith.truncf %47 : vector<8x128xf32> to vector<8x128xbf16>
    %c0_25 = arith.constant 0 : index
    %c0_26 = arith.constant 0 : index
    %c0_27 = arith.constant 0 : index
    %55 = vector.load %arg6[%c0_25, %c0_26, %c0_27] : memref<2x128x384xbf16, #tpu.memory_space<vmem>>, vector<1x128x384xbf16>
    %56 = vector.shape_cast %55 : vector<1x128x384xbf16> to vector<128x384xbf16>
    %cst_28 = arith.constant dense<0.000000e+00> : vector<8x384xf32>
    %57 = tpu.matmul %54, %56, %cst_28 {dimension_numbers = #tpu.dot_dimension_numbers<[1], [0], [0], [1], [0, 0, 1, 1], [], []>} : vector<8x128xbf16>, vector<128x384xbf16>, vector<8x384xf32> -> vector<8x384xf32>
    %c0_29 = arith.constant 0 : index
    %c0_30 = arith.constant 0 : index
    %c0_31 = arith.constant 0 : index
    %58 = vector.load %arg7[%c0_29, %c0_30, %c0_31] : memref<2x1x384xf32, #tpu.memory_space<vmem>>, vector<1x1x384xf32>
    %59 = vector.shape_cast %58 : vector<1x1x384xf32> to vector<1x384xf32>
    %60 = vector.broadcast %59 : vector<1x384xf32> to vector<8x384xf32>
    %61 = arith.addf %57, %60 : vector<8x384xf32>
    %62 = vector.extract_strided_slice %53 {offsets = [0, 0], sizes = [8, 128], strides = [1, 1]} : vector<8x384xf32> to vector<8x128xf32>
    %63 = vector.extract_strided_slice %61 {offsets = [0, 0], sizes = [8, 128], strides = [1, 1]} : vector<8x384xf32> to vector<8x128xf32>
    %64 = arith.addf %62, %63 : vector<8x128xf32>
    %65 = arith.negf %64 : vector<8x128xf32>
    %66 = math.exp %65 : vector<8x128xf32>
    %cst_32 = arith.constant 1.000000e+00 : f32
    %67 = vector.broadcast %cst_32 : f32 to vector<8x128xf32>
    %68 = arith.addf %67, %66 : vector<8x128xf32>
    %69 = arith.divf %67, %68 : vector<8x128xf32>
    %70 = vector.extract_strided_slice %53 {offsets = [0, 128], sizes = [8, 128], strides = [1, 1]} : vector<8x384xf32> to vector<8x128xf32>
    %71 = vector.extract_strided_slice %61 {offsets = [0, 128], sizes = [8, 128], strides = [1, 1]} : vector<8x384xf32> to vector<8x128xf32>
    %72 = arith.addf %70, %71 : vector<8x128xf32>
    %73 = arith.negf %72 : vector<8x128xf32>
    %74 = math.exp %73 : vector<8x128xf32>
    %cst_33 = arith.constant 1.000000e+00 : f32
    %75 = vector.broadcast %cst_33 : f32 to vector<8x128xf32>
    %76 = arith.addf %75, %74 : vector<8x128xf32>
    %77 = arith.divf %75, %76 : vector<8x128xf32>
    %78 = vector.extract_strided_slice %53 {offsets = [0, 256], sizes = [8, 128], strides = [1, 1]} : vector<8x384xf32> to vector<8x128xf32>
    %79 = vector.extract_strided_slice %61 {offsets = [0, 256], sizes = [8, 128], strides = [1, 1]} : vector<8x384xf32> to vector<8x128xf32>
    %80 = arith.mulf %69, %79 : vector<8x128xf32>
    %81 = arith.addf %78, %80 : vector<8x128xf32>
    %82 = math.tanh %81 : vector<8x128xf32>
    %83 = arith.subf %47, %82 : vector<8x128xf32>
    %84 = arith.mulf %77, %83 : vector<8x128xf32>
    %85 = arith.addf %82, %84 : vector<8x128xf32>
    %86 = arith.index_cast %51 : i32 to index
    %c0_34 = arith.constant 0 : index
    %87 = vector.load %arg12[%86, %c0_34] : memref<64x128xf32, #tpu.memory_space<vmem>>, vector<8x128xf32>
    tpu.vector_store %arg12[%86, %c0_34], %85 {strides = array<i32>} : memref<64x128xf32, #tpu.memory_space<vmem>>, vector<8x128xf32>,
    %c2_i32 = arith.constant 2 : i32
    %c8_i32_35 = arith.constant 8 : i32
    %88 = arith.muli %c2_i32, %c8_i32_35 : i32
    %89 = tpu.assume_multiple %88, 8 : i32
    %90 = arith.index_cast %89 : i32 to index
    %c0_36 = arith.constant 0 : index
    %91 = vector.load %arg11[%90, %c0_36] : memref<64x384xf32, #tpu.memory_space<vmem>>, vector<8x384xf32>
    %92 = arith.truncf %85 : vector<8x128xf32> to vector<8x128xbf16>
    %c0_37 = arith.constant 0 : index
    %c0_38 = arith.constant 0 : index
    %c0_39 = arith.constant 0 : index
    %93 = vector.load %arg6[%c0_37, %c0_38, %c0_39] : memref<2x128x384xbf16, #tpu.memory_space<vmem>>, vector<1x128x384xbf16>
    %94 = vector.shape_cast %93 : vector<1x128x384xbf16> to vector<128x384xbf16>
    %cst_40 = arith.constant dense<0.000000e+00> : vector<8x384xf32>
    %95 = tpu.matmul %92, %94, %cst_40 {dimension_numbers = #tpu.dot_dimension_numbers<[1], [0], [0], [1], [0, 0, 1, 1], [], []>} : vector<8x128xbf16>, vector<128x384xbf16>, vector<8x384xf32> -> vector<8x384xf32>
    %c0_41 = arith.constant 0 : index
    %c0_42 = arith.constant 0 : index
    %c0_43 = arith.constant 0 : index
    %96 = vector.load %arg7[%c0_41, %c0_42, %c0_43] : memref<2x1x384xf32, #tpu.memory_space<vmem>>, vector<1x1x384xf32>
    %97 = vector.shape_cast %96 : vector<1x1x384xf32> to vector<1x384xf32>
    %98 = vector.broadcast %97 : vector<1x384xf32> to vector<8x384xf32>
    %99 = arith.addf %95, %98 : vector<8x384xf32>
    %100 = vector.extract_strided_slice %91 {offsets = [0, 0], sizes = [8, 128], strides = [1, 1]} : vector<8x384xf32> to vector<8x128xf32>
    %101 = vector.extract_strided_slice %99 {offsets = [0, 0], sizes = [8, 128], strides = [1, 1]} : vector<8x384xf32> to vector<8x128xf32>
    %102 = arith.addf %100, %101 : vector<8x128xf32>
    %103 = arith.negf %102 : vector<8x128xf32>
    %104 = math.exp %103 : vector<8x128xf32>
    %cst_44 = arith.constant 1.000000e+00 : f32
    %105 = vector.broadcast %cst_44 : f32 to vector<8x128xf32>
    %106 = arith.addf %105, %104 : vector<8x128xf32>
    %107 = arith.divf %105, %106 : vector<8x128xf32>
    %108 = vector.extract_strided_slice %91 {offsets = [0, 128], sizes = [8, 128], strides = [1, 1]} : vector<8x384xf32> to vector<8x128xf32>
    %109 = vector.extract_strided_slice %99 {offsets = [0, 128], sizes = [8, 128], strides = [1, 1]} : vector<8x384xf32> to vector<8x128xf32>
    %110 = arith.addf %108, %109 : vector<8x128xf32>
    %111 = arith.negf %110 : vector<8x128xf32>
    %112 = math.exp %111 : vector<8x128xf32>
    %cst_45 = arith.constant 1.000000e+00 : f32
    %113 = vector.broadcast %cst_45 : f32 to vector<8x128xf32>
    %114 = arith.addf %113, %112 : vector<8x128xf32>
    %115 = arith.divf %113, %114 : vector<8x128xf32>
    %116 = vector.extract_strided_slice %91 {offsets = [0, 256], sizes = [8, 128], strides = [1, 1]} : vector<8x384xf32> to vector<8x128xf32>
    %117 = vector.extract_strided_slice %99 {offsets = [0, 256], sizes = [8, 128], strides = [1, 1]} : vector<8x384xf32> to vector<8x128xf32>
    %118 = arith.mulf %107, %117 : vector<8x128xf32>
    %119 = arith.addf %116, %118 : vector<8x128xf32>
    %120 = math.tanh %119 : vector<8x128xf32>
    %121 = arith.subf %85, %120 : vector<8x128xf32>
    %122 = arith.mulf %115, %121 : vector<8x128xf32>
    %123 = arith.addf %120, %122 : vector<8x128xf32>
    %124 = arith.index_cast %89 : i32 to index
    %c0_46 = arith.constant 0 : index
    %125 = vector.load %arg12[%124, %c0_46] : memref<64x128xf32, #tpu.memory_space<vmem>>, vector<8x128xf32>
    tpu.vector_store %arg12[%124, %c0_46], %123 {strides = array<i32>} : memref<64x128xf32, #tpu.memory_space<vmem>>, vector<8x128xf32>,
    %c3_i32 = arith.constant 3 : i32
    %c8_i32_47 = arith.constant 8 : i32
    %126 = arith.muli %c3_i32, %c8_i32_47 : i32
    %127 = tpu.assume_multiple %126, 8 : i32
    %128 = arith.index_cast %127 : i32 to index
    %c0_48 = arith.constant 0 : index
    %129 = vector.load %arg11[%128, %c0_48] : memref<64x384xf32, #tpu.memory_space<vmem>>, vector<8x384xf32>
    %130 = arith.truncf %123 : vector<8x128xf32> to vector<8x128xbf16>
    %c0_49 = arith.constant 0 : index
    %c0_50 = arith.constant 0 : index
    %c0_51 = arith.constant 0 : index
    %131 = vector.load %arg6[%c0_49, %c0_50, %c0_51] : memref<2x128x384xbf16, #tpu.memory_space<vmem>>, vector<1x128x384xbf16>
    %132 = vector.shape_cast %131 : vector<1x128x384xbf16> to vector<128x384xbf16>
    %cst_52 = arith.constant dense<0.000000e+00> : vector<8x384xf32>
    %133 = tpu.matmul %130, %132, %cst_52 {dimension_numbers = #tpu.dot_dimension_numbers<[1], [0], [0], [1], [0, 0, 1, 1], [], []>} : vector<8x128xbf16>, vector<128x384xbf16>, vector<8x384xf32> -> vector<8x384xf32>
    %c0_53 = arith.constant 0 : index
    %c0_54 = arith.constant 0 : index
    %c0_55 = arith.constant 0 : index
    %134 = vector.load %arg7[%c0_53, %c0_54, %c0_55] : memref<2x1x384xf32, #tpu.memory_space<vmem>>, vector<1x1x384xf32>
    %135 = vector.shape_cast %134 : vector<1x1x384xf32> to vector<1x384xf32>
    %136 = vector.broadcast %135 : vector<1x384xf32> to vector<8x384xf32>
    %137 = arith.addf %133, %136 : vector<8x384xf32>
    %138 = vector.extract_strided_slice %129 {offsets = [0, 0], sizes = [8, 128], strides = [1, 1]} : vector<8x384xf32> to vector<8x128xf32>
    %139 = vector.extract_strided_slice %137 {offsets = [0, 0], sizes = [8, 128], strides = [1, 1]} : vector<8x384xf32> to vector<8x128xf32>
    %140 = arith.addf %138, %139 : vector<8x128xf32>
    %141 = arith.negf %140 : vector<8x128xf32>
    %142 = math.exp %141 : vector<8x128xf32>
    %cst_56 = arith.constant 1.000000e+00 : f32
    %143 = vector.broadcast %cst_56 : f32 to vector<8x128xf32>
    %144 = arith.addf %143, %142 : vector<8x128xf32>
    %145 = arith.divf %143, %144 : vector<8x128xf32>
    %146 = vector.extract_strided_slice %129 {offsets = [0, 128], sizes = [8, 128], strides = [1, 1]} : vector<8x384xf32> to vector<8x128xf32>
    %147 = vector.extract_strided_slice %137 {offsets = [0, 128], sizes = [8, 128], strides = [1, 1]} : vector<8x384xf32> to vector<8x128xf32>
    %148 = arith.addf %146, %147 : vector<8x128xf32>
    %149 = arith.negf %148 : vector<8x128xf32>
    %150 = math.exp %149 : vector<8x128xf32>
    %cst_57 = arith.constant 1.000000e+00 : f32
    %151 = vector.broadcast %cst_57 : f32 to vector<8x128xf32>
    %152 = arith.addf %151, %150 : vector<8x128xf32>
    %153 = arith.divf %151, %152 : vector<8x128xf32>
    %154 = vector.extract_strided_slice %129 {offsets = [0, 256], sizes = [8, 128], strides = [1, 1]} : vector<8x384xf32> to vector<8x128xf32>
    %155 = vector.extract_strided_slice %137 {offsets = [0, 256], sizes = [8, 128], strides = [1, 1]} : vector<8x384xf32> to vector<8x128xf32>
    %156 = arith.mulf %145, %155 : vector<8x128xf32>
    %157 = arith.addf %154, %156 : vector<8x128xf32>
    %158 = math.tanh %157 : vector<8x128xf32>
    %159 = arith.subf %123, %158 : vector<8x128xf32>
    %160 = arith.mulf %153, %159 : vector<8x128xf32>
    %161 = arith.addf %158, %160 : vector<8x128xf32>
    %162 = arith.index_cast %127 : i32 to index
    %c0_58 = arith.constant 0 : index
    %163 = vector.load %arg12[%162, %c0_58] : memref<64x128xf32, #tpu.memory_space<vmem>>, vector<8x128xf32>
    tpu.vector_store %arg12[%162, %c0_58], %161 {strides = array<i32>} : memref<64x128xf32, #tpu.memory_space<vmem>>, vector<8x128xf32>,
    %c4_i32 = arith.constant 4 : i32
    %c8_i32_59 = arith.constant 8 : i32
    %164 = arith.muli %c4_i32, %c8_i32_59 : i32
    %165 = tpu.assume_multiple %164, 8 : i32
    %166 = arith.index_cast %165 : i32 to index
    %c0_60 = arith.constant 0 : index
    %167 = vector.load %arg11[%166, %c0_60] : memref<64x384xf32, #tpu.memory_space<vmem>>, vector<8x384xf32>
    %168 = arith.truncf %161 : vector<8x128xf32> to vector<8x128xbf16>
    %c0_61 = arith.constant 0 : index
    %c0_62 = arith.constant 0 : index
    %c0_63 = arith.constant 0 : index
    %169 = vector.load %arg6[%c0_61, %c0_62, %c0_63] : memref<2x128x384xbf16, #tpu.memory_space<vmem>>, vector<1x128x384xbf16>
    %170 = vector.shape_cast %169 : vector<1x128x384xbf16> to vector<128x384xbf16>
    %cst_64 = arith.constant dense<0.000000e+00> : vector<8x384xf32>
    %171 = tpu.matmul %168, %170, %cst_64 {dimension_numbers = #tpu.dot_dimension_numbers<[1], [0], [0], [1], [0, 0, 1, 1], [], []>} : vector<8x128xbf16>, vector<128x384xbf16>, vector<8x384xf32> -> vector<8x384xf32>
    %c0_65 = arith.constant 0 : index
    %c0_66 = arith.constant 0 : index
    %c0_67 = arith.constant 0 : index
    %172 = vector.load %arg7[%c0_65, %c0_66, %c0_67] : memref<2x1x384xf32, #tpu.memory_space<vmem>>, vector<1x1x384xf32>
    %173 = vector.shape_cast %172 : vector<1x1x384xf32> to vector<1x384xf32>
    %174 = vector.broadcast %173 : vector<1x384xf32> to vector<8x384xf32>
    %175 = arith.addf %171, %174 : vector<8x384xf32>
    %176 = vector.extract_strided_slice %167 {offsets = [0, 0], sizes = [8, 128], strides = [1, 1]} : vector<8x384xf32> to vector<8x128xf32>
    %177 = vector.extract_strided_slice %175 {offsets = [0, 0], sizes = [8, 128], strides = [1, 1]} : vector<8x384xf32> to vector<8x128xf32>
    %178 = arith.addf %176, %177 : vector<8x128xf32>
    %179 = arith.negf %178 : vector<8x128xf32>
    %180 = math.exp %179 : vector<8x128xf32>
    %cst_68 = arith.constant 1.000000e+00 : f32
    %181 = vector.broadcast %cst_68 : f32 to vector<8x128xf32>
    %182 = arith.addf %181, %180 : vector<8x128xf32>
    %183 = arith.divf %181, %182 : vector<8x128xf32>
    %184 = vector.extract_strided_slice %167 {offsets = [0, 128], sizes = [8, 128], strides = [1, 1]} : vector<8x384xf32> to vector<8x128xf32>
    %185 = vector.extract_strided_slice %175 {offsets = [0, 128], sizes = [8, 128], strides = [1, 1]} : vector<8x384xf32> to vector<8x128xf32>
    %186 = arith.addf %184, %185 : vector<8x128xf32>
    %187 = arith.negf %186 : vector<8x128xf32>
    %188 = math.exp %187 : vector<8x128xf32>
    %cst_69 = arith.constant 1.000000e+00 : f32
    %189 = vector.broadcast %cst_69 : f32 to vector<8x128xf32>
    %190 = arith.addf %189, %188 : vector<8x128xf32>
    %191 = arith.divf %189, %190 : vector<8x128xf32>
    %192 = vector.extract_strided_slice %167 {offsets = [0, 256], sizes = [8, 128], strides = [1, 1]} : vector<8x384xf32> to vector<8x128xf32>
    %193 = vector.extract_strided_slice %175 {offsets = [0, 256], sizes = [8, 128], strides = [1, 1]} : vector<8x384xf32> to vector<8x128xf32>
    %194 = arith.mulf %183, %193 : vector<8x128xf32>
    %195 = arith.addf %192, %194 : vector<8x128xf32>
    %196 = math.tanh %195 : vector<8x128xf32>
    %197 = arith.subf %161, %196 : vector<8x128xf32>
    %198 = arith.mulf %191, %197 : vector<8x128xf32>
    %199 = arith.addf %196, %198 : vector<8x128xf32>
    %200 = arith.index_cast %165 : i32 to index
    %c0_70 = arith.constant 0 : index
    %201 = vector.load %arg12[%200, %c0_70] : memref<64x128xf32, #tpu.memory_space<vmem>>, vector<8x128xf32>
    tpu.vector_store %arg12[%200, %c0_70], %199 {strides = array<i32>} : memref<64x128xf32, #tpu.memory_space<vmem>>, vector<8x128xf32>,
    %c5_i32 = arith.constant 5 : i32
    %c8_i32_71 = arith.constant 8 : i32
    %202 = arith.muli %c5_i32, %c8_i32_71 : i32
    %203 = tpu.assume_multiple %202, 8 : i32
    %204 = arith.index_cast %203 : i32 to index
    %c0_72 = arith.constant 0 : index
    %205 = vector.load %arg11[%204, %c0_72] : memref<64x384xf32, #tpu.memory_space<vmem>>, vector<8x384xf32>
    %206 = arith.truncf %199 : vector<8x128xf32> to vector<8x128xbf16>
    %c0_73 = arith.constant 0 : index
    %c0_74 = arith.constant 0 : index
    %c0_75 = arith.constant 0 : index
    %207 = vector.load %arg6[%c0_73, %c0_74, %c0_75] : memref<2x128x384xbf16, #tpu.memory_space<vmem>>, vector<1x128x384xbf16>
    %208 = vector.shape_cast %207 : vector<1x128x384xbf16> to vector<128x384xbf16>
    %cst_76 = arith.constant dense<0.000000e+00> : vector<8x384xf32>
    %209 = tpu.matmul %206, %208, %cst_76 {dimension_numbers = #tpu.dot_dimension_numbers<[1], [0], [0], [1], [0, 0, 1, 1], [], []>} : vector<8x128xbf16>, vector<128x384xbf16>, vector<8x384xf32> -> vector<8x384xf32>
    %c0_77 = arith.constant 0 : index
    %c0_78 = arith.constant 0 : index
    %c0_79 = arith.constant 0 : index
    %210 = vector.load %arg7[%c0_77, %c0_78, %c0_79] : memref<2x1x384xf32, #tpu.memory_space<vmem>>, vector<1x1x384xf32>
    %211 = vector.shape_cast %210 : vector<1x1x384xf32> to vector<1x384xf32>
    %212 = vector.broadcast %211 : vector<1x384xf32> to vector<8x384xf32>
    %213 = arith.addf %209, %212 : vector<8x384xf32>
    %214 = vector.extract_strided_slice %205 {offsets = [0, 0], sizes = [8, 128], strides = [1, 1]} : vector<8x384xf32> to vector<8x128xf32>
    %215 = vector.extract_strided_slice %213 {offsets = [0, 0], sizes = [8, 128], strides = [1, 1]} : vector<8x384xf32> to vector<8x128xf32>
    %216 = arith.addf %214, %215 : vector<8x128xf32>
    %217 = arith.negf %216 : vector<8x128xf32>
    %218 = math.exp %217 : vector<8x128xf32>
    %cst_80 = arith.constant 1.000000e+00 : f32
    %219 = vector.broadcast %cst_80 : f32 to vector<8x128xf32>
    %220 = arith.addf %219, %218 : vector<8x128xf32>
    %221 = arith.divf %219, %220 : vector<8x128xf32>
    %222 = vector.extract_strided_slice %205 {offsets = [0, 128], sizes = [8, 128], strides = [1, 1]} : vector<8x384xf32> to vector<8x128xf32>
    %223 = vector.extract_strided_slice %213 {offsets = [0, 128], sizes = [8, 128], strides = [1, 1]} : vector<8x384xf32> to vector<8x128xf32>
    %224 = arith.addf %222, %223 : vector<8x128xf32>
    %225 = arith.negf %224 : vector<8x128xf32>
    %226 = math.exp %225 : vector<8x128xf32>
    %cst_81 = arith.constant 1.000000e+00 : f32
    %227 = vector.broadcast %cst_81 : f32 to vector<8x128xf32>
    %228 = arith.addf %227, %226 : vector<8x128xf32>
    %229 = arith.divf %227, %228 : vector<8x128xf32>
    %230 = vector.extract_strided_slice %205 {offsets = [0, 256], sizes = [8, 128], strides = [1, 1]} : vector<8x384xf32> to vector<8x128xf32>
    %231 = vector.extract_strided_slice %213 {offsets = [0, 256], sizes = [8, 128], strides = [1, 1]} : vector<8x384xf32> to vector<8x128xf32>
    %232 = arith.mulf %221, %231 : vector<8x128xf32>
    %233 = arith.addf %230, %232 : vector<8x128xf32>
    %234 = math.tanh %233 : vector<8x128xf32>
    %235 = arith.subf %199, %234 : vector<8x128xf32>
    %236 = arith.mulf %229, %235 : vector<8x128xf32>
    %237 = arith.addf %234, %236 : vector<8x128xf32>
    %238 = arith.index_cast %203 : i32 to index
    %c0_82 = arith.constant 0 : index
    %239 = vector.load %arg12[%238, %c0_82] : memref<64x128xf32, #tpu.memory_space<vmem>>, vector<8x128xf32>
    tpu.vector_store %arg12[%238, %c0_82], %237 {strides = array<i32>} : memref<64x128xf32, #tpu.memory_space<vmem>>, vector<8x128xf32>,
    %c6_i32 = arith.constant 6 : i32
    %c8_i32_83 = arith.constant 8 : i32
    %240 = arith.muli %c6_i32, %c8_i32_83 : i32
    %241 = tpu.assume_multiple %240, 8 : i32
    %242 = arith.index_cast %241 : i32 to index
    %c0_84 = arith.constant 0 : index
    %243 = vector.load %arg11[%242, %c0_84] : memref<64x384xf32, #tpu.memory_space<vmem>>, vector<8x384xf32>
    %244 = arith.truncf %237 : vector<8x128xf32> to vector<8x128xbf16>
    %c0_85 = arith.constant 0 : index
    %c0_86 = arith.constant 0 : index
    %c0_87 = arith.constant 0 : index
    %245 = vector.load %arg6[%c0_85, %c0_86, %c0_87] : memref<2x128x384xbf16, #tpu.memory_space<vmem>>, vector<1x128x384xbf16>
    %246 = vector.shape_cast %245 : vector<1x128x384xbf16> to vector<128x384xbf16>
    %cst_88 = arith.constant dense<0.000000e+00> : vector<8x384xf32>
    %247 = tpu.matmul %244, %246, %cst_88 {dimension_numbers = #tpu.dot_dimension_numbers<[1], [0], [0], [1], [0, 0, 1, 1], [], []>} : vector<8x128xbf16>, vector<128x384xbf16>, vector<8x384xf32> -> vector<8x384xf32>
    %c0_89 = arith.constant 0 : index
    %c0_90 = arith.constant 0 : index
    %c0_91 = arith.constant 0 : index
    %248 = vector.load %arg7[%c0_89, %c0_90, %c0_91] : memref<2x1x384xf32, #tpu.memory_space<vmem>>, vector<1x1x384xf32>
    %249 = vector.shape_cast %248 : vector<1x1x384xf32> to vector<1x384xf32>
    %250 = vector.broadcast %249 : vector<1x384xf32> to vector<8x384xf32>
    %251 = arith.addf %247, %250 : vector<8x384xf32>
    %252 = vector.extract_strided_slice %243 {offsets = [0, 0], sizes = [8, 128], strides = [1, 1]} : vector<8x384xf32> to vector<8x128xf32>
    %253 = vector.extract_strided_slice %251 {offsets = [0, 0], sizes = [8, 128], strides = [1, 1]} : vector<8x384xf32> to vector<8x128xf32>
    %254 = arith.addf %252, %253 : vector<8x128xf32>
    %255 = arith.negf %254 : vector<8x128xf32>
    %256 = math.exp %255 : vector<8x128xf32>
    %cst_92 = arith.constant 1.000000e+00 : f32
    %257 = vector.broadcast %cst_92 : f32 to vector<8x128xf32>
    %258 = arith.addf %257, %256 : vector<8x128xf32>
    %259 = arith.divf %257, %258 : vector<8x128xf32>
    %260 = vector.extract_strided_slice %243 {offsets = [0, 128], sizes = [8, 128], strides = [1, 1]} : vector<8x384xf32> to vector<8x128xf32>
    %261 = vector.extract_strided_slice %251 {offsets = [0, 128], sizes = [8, 128], strides = [1, 1]} : vector<8x384xf32> to vector<8x128xf32>
    %262 = arith.addf %260, %261 : vector<8x128xf32>
    %263 = arith.negf %262 : vector<8x128xf32>
    %264 = math.exp %263 : vector<8x128xf32>
    %cst_93 = arith.constant 1.000000e+00 : f32
    %265 = vector.broadcast %cst_93 : f32 to vector<8x128xf32>
    %266 = arith.addf %265, %264 : vector<8x128xf32>
    %267 = arith.divf %265, %266 : vector<8x128xf32>
    %268 = vector.extract_strided_slice %243 {offsets = [0, 256], sizes = [8, 128], strides = [1, 1]} : vector<8x384xf32> to vector<8x128xf32>
    %269 = vector.extract_strided_slice %251 {offsets = [0, 256], sizes = [8, 128], strides = [1, 1]} : vector<8x384xf32> to vector<8x128xf32>
    %270 = arith.mulf %259, %269 : vector<8x128xf32>
    %271 = arith.addf %268, %270 : vector<8x128xf32>
    %272 = math.tanh %271 : vector<8x128xf32>
    %273 = arith.subf %237, %272 : vector<8x128xf32>
    %274 = arith.mulf %267, %273 : vector<8x128xf32>
    %275 = arith.addf %272, %274 : vector<8x128xf32>
    %276 = arith.index_cast %241 : i32 to index
    %c0_94 = arith.constant 0 : index
    %277 = vector.load %arg12[%276, %c0_94] : memref<64x128xf32, #tpu.memory_space<vmem>>, vector<8x128xf32>
    tpu.vector_store %arg12[%276, %c0_94], %275 {strides = array<i32>} : memref<64x128xf32, #tpu.memory_space<vmem>>, vector<8x128xf32>,
    %c7_i32 = arith.constant 7 : i32
    %c8_i32_95 = arith.constant 8 : i32
    %278 = arith.muli %c7_i32, %c8_i32_95 : i32
    %279 = tpu.assume_multiple %278, 8 : i32
    %280 = arith.index_cast %279 : i32 to index
    %c0_96 = arith.constant 0 : index
    %281 = vector.load %arg11[%280, %c0_96] : memref<64x384xf32, #tpu.memory_space<vmem>>, vector<8x384xf32>
    %282 = arith.truncf %275 : vector<8x128xf32> to vector<8x128xbf16>
    %c0_97 = arith.constant 0 : index
    %c0_98 = arith.constant 0 : index
    %c0_99 = arith.constant 0 : index
    %283 = vector.load %arg6[%c0_97, %c0_98, %c0_99] : memref<2x128x384xbf16, #tpu.memory_space<vmem>>, vector<1x128x384xbf16>
    %284 = vector.shape_cast %283 : vector<1x128x384xbf16> to vector<128x384xbf16>
    %cst_100 = arith.constant dense<0.000000e+00> : vector<8x384xf32>
    %285 = tpu.matmul %282, %284, %cst_100 {dimension_numbers = #tpu.dot_dimension_numbers<[1], [0], [0], [1], [0, 0, 1, 1], [], []>} : vector<8x128xbf16>, vector<128x384xbf16>, vector<8x384xf32> -> vector<8x384xf32>
    %c0_101 = arith.constant 0 : index
    %c0_102 = arith.constant 0 : index
    %c0_103 = arith.constant 0 : index
    %286 = vector.load %arg7[%c0_101, %c0_102, %c0_103] : memref<2x1x384xf32, #tpu.memory_space<vmem>>, vector<1x1x384xf32>
    %287 = vector.shape_cast %286 : vector<1x1x384xf32> to vector<1x384xf32>
    %288 = vector.broadcast %287 : vector<1x384xf32> to vector<8x384xf32>
    %289 = arith.addf %285, %288 : vector<8x384xf32>
    %290 = vector.extract_strided_slice %281 {offsets = [0, 0], sizes = [8, 128], strides = [1, 1]} : vector<8x384xf32> to vector<8x128xf32>
    %291 = vector.extract_strided_slice %289 {offsets = [0, 0], sizes = [8, 128], strides = [1, 1]} : vector<8x384xf32> to vector<8x128xf32>
    %292 = arith.addf %290, %291 : vector<8x128xf32>
    %293 = arith.negf %292 : vector<8x128xf32>
    %294 = math.exp %293 : vector<8x128xf32>
    %cst_104 = arith.constant 1.000000e+00 : f32
    %295 = vector.broadcast %cst_104 : f32 to vector<8x128xf32>
    %296 = arith.addf %295, %294 : vector<8x128xf32>
    %297 = arith.divf %295, %296 : vector<8x128xf32>
    %298 = vector.extract_strided_slice %281 {offsets = [0, 128], sizes = [8, 128], strides = [1, 1]} : vector<8x384xf32> to vector<8x128xf32>
    %299 = vector.extract_strided_slice %289 {offsets = [0, 128], sizes = [8, 128], strides = [1, 1]} : vector<8x384xf32> to vector<8x128xf32>
    %300 = arith.addf %298, %299 : vector<8x128xf32>
    %301 = arith.negf %300 : vector<8x128xf32>
    %302 = math.exp %301 : vector<8x128xf32>
    %cst_105 = arith.constant 1.000000e+00 : f32
    %303 = vector.broadcast %cst_105 : f32 to vector<8x128xf32>
    %304 = arith.addf %303, %302 : vector<8x128xf32>
    %305 = arith.divf %303, %304 : vector<8x128xf32>
    %306 = vector.extract_strided_slice %281 {offsets = [0, 256], sizes = [8, 128], strides = [1, 1]} : vector<8x384xf32> to vector<8x128xf32>
    %307 = vector.extract_strided_slice %289 {offsets = [0, 256], sizes = [8, 128], strides = [1, 1]} : vector<8x384xf32> to vector<8x128xf32>
    %308 = arith.mulf %297, %307 : vector<8x128xf32>
    %309 = arith.addf %306, %308 : vector<8x128xf32>
    %310 = math.tanh %309 : vector<8x128xf32>
    %311 = arith.subf %275, %310 : vector<8x128xf32>
    %312 = arith.mulf %305, %311 : vector<8x128xf32>
    %313 = arith.addf %310, %312 : vector<8x128xf32>
    %314 = arith.index_cast %279 : i32 to index
    %c0_106 = arith.constant 0 : index
    %315 = vector.load %arg12[%314, %c0_106] : memref<64x128xf32, #tpu.memory_space<vmem>>, vector<8x128xf32>
    tpu.vector_store %arg12[%314, %c0_106], %313 {strides = array<i32>} : memref<64x128xf32, #tpu.memory_space<vmem>>, vector<8x128xf32>,
    %c8_i32_107 = arith.constant 8 : i32
    %c0_108 = arith.constant 0 : index
    %c0_109 = arith.constant 0 : index
    %c0_110 = arith.constant 0 : index
    %316 = vector.load %arg10[%c0_108, %c0_109, %c0_110] : memref<2x8x128xf32, #tpu.memory_space<vmem>>, vector<1x8x128xf32>
    %317 = vector.shape_cast %316 : vector<1x8x128xf32> to vector<8x128xf32>
    %318 = vector.shape_cast %313 : vector<8x128xf32> to vector<1x8x128xf32>
    tpu.vector_store %arg10[%c0_108, %c0_109, %c0_110], %318 {strides = array<i32>} : memref<2x8x128xf32, #tpu.memory_space<vmem>>, vector<1x8x128xf32>,
    %c0_111 = arith.constant 0 : index
    %c0_112 = arith.constant 0 : index
    %319 = vector.load %arg12[%c0_111, %c0_112] : memref<64x128xf32, #tpu.memory_space<vmem>>, vector<64x128xf32>
    %320 = arith.truncf %319 : vector<64x128xf32> to vector<64x128xbf16>
    %c0_113 = arith.constant 0 : index
    %c0_114 = arith.constant 0 : index
    %c0_115 = arith.constant 0 : index
    %321 = vector.load %arg4[%c0_113, %c0_114, %c0_115] : memref<1x128x384xbf16, #tpu.memory_space<vmem>>, vector<1x128x384xbf16>
    %322 = vector.shape_cast %321 : vector<1x128x384xbf16> to vector<128x384xbf16>
    %cst_116 = arith.constant dense<0.000000e+00> : vector<64x384xf32>
    %323 = tpu.matmul %320, %322, %cst_116 {dimension_numbers = #tpu.dot_dimension_numbers<[1], [0], [0], [1], [0, 0, 1, 1], [], []>} : vector<64x128xbf16>, vector<128x384xbf16>, vector<64x384xf32> -> vector<64x384xf32>
    %c0_117 = arith.constant 0 : index
    %c0_118 = arith.constant 0 : index
    %c0_119 = arith.constant 0 : index
    %324 = vector.load %arg5[%c0_117, %c0_118, %c0_119] : memref<1x1x384xf32, #tpu.memory_space<vmem>>, vector<1x1x384xf32>
    %325 = vector.shape_cast %324 : vector<1x1x384xf32> to vector<1x384xf32>
    %326 = vector.broadcast %325 : vector<1x384xf32> to vector<64x384xf32>
    %327 = arith.addf %323, %326 : vector<64x384xf32>
    %c0_120 = arith.constant 0 : index
    %c0_121 = arith.constant 0 : index
    %328 = vector.load %arg11[%c0_120, %c0_121] : memref<64x384xf32, #tpu.memory_space<vmem>>, vector<64x384xf32>
    tpu.vector_store %arg11[%c0_120, %c0_121], %327 {strides = array<i32>} : memref<64x384xf32, #tpu.memory_space<vmem>>, vector<64x384xf32>,
    %c1 = arith.constant 1 : index
    %c0_122 = arith.constant 0 : index
    %c0_123 = arith.constant 0 : index
    %329 = vector.load %arg10[%c1, %c0_122, %c0_123] : memref<2x8x128xf32, #tpu.memory_space<vmem>>, vector<1x8x128xf32>
    %330 = vector.shape_cast %329 : vector<1x8x128xf32> to vector<8x128xf32>
    %c0_i32_124 = arith.constant 0 : i32
    %c8_i32_125 = arith.constant 8 : i32
    %331 = arith.muli %c0_i32_124, %c8_i32_125 : i32
    %332 = tpu.assume_multiple %331, 8 : i32
    %333 = arith.index_cast %332 : i32 to index
    %c0_126 = arith.constant 0 : index
    %334 = vector.load %arg11[%333, %c0_126] : memref<64x384xf32, #tpu.memory_space<vmem>>, vector<8x384xf32>
    %335 = arith.truncf %330 : vector<8x128xf32> to vector<8x128xbf16>
    %c1_127 = arith.constant 1 : index
    %c0_128 = arith.constant 0 : index
    %c0_129 = arith.constant 0 : index
    %336 = vector.load %arg6[%c1_127, %c0_128, %c0_129] : memref<2x128x384xbf16, #tpu.memory_space<vmem>>, vector<1x128x384xbf16>
    %337 = vector.shape_cast %336 : vector<1x128x384xbf16> to vector<128x384xbf16>
    %cst_130 = arith.constant dense<0.000000e+00> : vector<8x384xf32>
    %338 = tpu.matmul %335, %337, %cst_130 {dimension_numbers = #tpu.dot_dimension_numbers<[1], [0], [0], [1], [0, 0, 1, 1], [], []>} : vector<8x128xbf16>, vector<128x384xbf16>, vector<8x384xf32> -> vector<8x384xf32>
    %c1_131 = arith.constant 1 : index
    %c0_132 = arith.constant 0 : index
    %c0_133 = arith.constant 0 : index
    %339 = vector.load %arg7[%c1_131, %c0_132, %c0_133] : memref<2x1x384xf32, #tpu.memory_space<vmem>>, vector<1x1x384xf32>
    %340 = vector.shape_cast %339 : vector<1x1x384xf32> to vector<1x384xf32>
    %341 = vector.broadcast %340 : vector<1x384xf32> to vector<8x384xf32>
    %342 = arith.addf %338, %341 : vector<8x384xf32>
    %343 = vector.extract_strided_slice %334 {offsets = [0, 0], sizes = [8, 128], strides = [1, 1]} : vector<8x384xf32> to vector<8x128xf32>
    %344 = vector.extract_strided_slice %342 {offsets = [0, 0], sizes = [8, 128], strides = [1, 1]} : vector<8x384xf32> to vector<8x128xf32>
    %345 = arith.addf %343, %344 : vector<8x128xf32>
    %346 = arith.negf %345 : vector<8x128xf32>
    %347 = math.exp %346 : vector<8x128xf32>
    %cst_134 = arith.constant 1.000000e+00 : f32
    %348 = vector.broadcast %cst_134 : f32 to vector<8x128xf32>
    %349 = arith.addf %348, %347 : vector<8x128xf32>
    %350 = arith.divf %348, %349 : vector<8x128xf32>
    %351 = vector.extract_strided_slice %334 {offsets = [0, 128], sizes = [8, 128], strides = [1, 1]} : vector<8x384xf32> to vector<8x128xf32>
    %352 = vector.extract_strided_slice %342 {offsets = [0, 128], sizes = [8, 128], strides = [1, 1]} : vector<8x384xf32> to vector<8x128xf32>
    %353 = arith.addf %351, %352 : vector<8x128xf32>
    %354 = arith.negf %353 : vector<8x128xf32>
    %355 = math.exp %354 : vector<8x128xf32>
    %cst_135 = arith.constant 1.000000e+00 : f32
    %356 = vector.broadcast %cst_135 : f32 to vector<8x128xf32>
    %357 = arith.addf %356, %355 : vector<8x128xf32>
    %358 = arith.divf %356, %357 : vector<8x128xf32>
    %359 = vector.extract_strided_slice %334 {offsets = [0, 256], sizes = [8, 128], strides = [1, 1]} : vector<8x384xf32> to vector<8x128xf32>
    %360 = vector.extract_strided_slice %342 {offsets = [0, 256], sizes = [8, 128], strides = [1, 1]} : vector<8x384xf32> to vector<8x128xf32>
    %361 = arith.mulf %350, %360 : vector<8x128xf32>
    %362 = arith.addf %359, %361 : vector<8x128xf32>
    %363 = math.tanh %362 : vector<8x128xf32>
    %364 = arith.subf %330, %363 : vector<8x128xf32>
    %365 = arith.mulf %358, %364 : vector<8x128xf32>
    %366 = arith.addf %363, %365 : vector<8x128xf32>
    %367 = arith.truncf %366 : vector<8x128xf32> to vector<8x128xbf16>
    %368 = arith.index_cast %332 : i32 to index
    %c0_136 = arith.constant 0 : index
    %369 = vector.load %arg8[%368, %c0_136] : memref<64x128xbf16, #tpu.memory_space<vmem>>, vector<8x128xbf16>
    tpu.vector_store %arg8[%368, %c0_136], %367 {strides = array<i32>} : memref<64x128xbf16, #tpu.memory_space<vmem>>, vector<8x128xbf16>,
    %c1_i32_137 = arith.constant 1 : i32
    %c8_i32_138 = arith.constant 8 : i32
    %370 = arith.muli %c1_i32_137, %c8_i32_138 : i32
    %371 = tpu.assume_multiple %370, 8 : i32
    %372 = arith.index_cast %371 : i32 to index
    %c0_139 = arith.constant 0 : index
    %373 = vector.load %arg11[%372, %c0_139] : memref<64x384xf32, #tpu.memory_space<vmem>>, vector<8x384xf32>
    %374 = arith.truncf %366 : vector<8x128xf32> to vector<8x128xbf16>
    %c1_140 = arith.constant 1 : index
    %c0_141 = arith.constant 0 : index
    %c0_142 = arith.constant 0 : index
    %375 = vector.load %arg6[%c1_140, %c0_141, %c0_142] : memref<2x128x384xbf16, #tpu.memory_space<vmem>>, vector<1x128x384xbf16>
    %376 = vector.shape_cast %375 : vector<1x128x384xbf16> to vector<128x384xbf16>
    %cst_143 = arith.constant dense<0.000000e+00> : vector<8x384xf32>
    %377 = tpu.matmul %374, %376, %cst_143 {dimension_numbers = #tpu.dot_dimension_numbers<[1], [0], [0], [1], [0, 0, 1, 1], [], []>} : vector<8x128xbf16>, vector<128x384xbf16>, vector<8x384xf32> -> vector<8x384xf32>
    %c1_144 = arith.constant 1 : index
    %c0_145 = arith.constant 0 : index
    %c0_146 = arith.constant 0 : index
    %378 = vector.load %arg7[%c1_144, %c0_145, %c0_146] : memref<2x1x384xf32, #tpu.memory_space<vmem>>, vector<1x1x384xf32>
    %379 = vector.shape_cast %378 : vector<1x1x384xf32> to vector<1x384xf32>
    %380 = vector.broadcast %379 : vector<1x384xf32> to vector<8x384xf32>
    %381 = arith.addf %377, %380 : vector<8x384xf32>
    %382 = vector.extract_strided_slice %373 {offsets = [0, 0], sizes = [8, 128], strides = [1, 1]} : vector<8x384xf32> to vector<8x128xf32>
    %383 = vector.extract_strided_slice %381 {offsets = [0, 0], sizes = [8, 128], strides = [1, 1]} : vector<8x384xf32> to vector<8x128xf32>
    %384 = arith.addf %382, %383 : vector<8x128xf32>
    %385 = arith.negf %384 : vector<8x128xf32>
    %386 = math.exp %385 : vector<8x128xf32>
    %cst_147 = arith.constant 1.000000e+00 : f32
    %387 = vector.broadcast %cst_147 : f32 to vector<8x128xf32>
    %388 = arith.addf %387, %386 : vector<8x128xf32>
    %389 = arith.divf %387, %388 : vector<8x128xf32>
    %390 = vector.extract_strided_slice %373 {offsets = [0, 128], sizes = [8, 128], strides = [1, 1]} : vector<8x384xf32> to vector<8x128xf32>
    %391 = vector.extract_strided_slice %381 {offsets = [0, 128], sizes = [8, 128], strides = [1, 1]} : vector<8x384xf32> to vector<8x128xf32>
    %392 = arith.addf %390, %391 : vector<8x128xf32>
    %393 = arith.negf %392 : vector<8x128xf32>
    %394 = math.exp %393 : vector<8x128xf32>
    %cst_148 = arith.constant 1.000000e+00 : f32
    %395 = vector.broadcast %cst_148 : f32 to vector<8x128xf32>
    %396 = arith.addf %395, %394 : vector<8x128xf32>
    %397 = arith.divf %395, %396 : vector<8x128xf32>
    %398 = vector.extract_strided_slice %373 {offsets = [0, 256], sizes = [8, 128], strides = [1, 1]} : vector<8x384xf32> to vector<8x128xf32>
    %399 = vector.extract_strided_slice %381 {offsets = [0, 256], sizes = [8, 128], strides = [1, 1]} : vector<8x384xf32> to vector<8x128xf32>
    %400 = arith.mulf %389, %399 : vector<8x128xf32>
    %401 = arith.addf %398, %400 : vector<8x128xf32>
    %402 = math.tanh %401 : vector<8x128xf32>
    %403 = arith.subf %366, %402 : vector<8x128xf32>
    %404 = arith.mulf %397, %403 : vector<8x128xf32>
    %405 = arith.addf %402, %404 : vector<8x128xf32>
    %406 = arith.truncf %405 : vector<8x128xf32> to vector<8x128xbf16>
    %407 = arith.index_cast %371 : i32 to index
    %c0_149 = arith.constant 0 : index
    %408 = vector.load %arg8[%407, %c0_149] : memref<64x128xbf16, #tpu.memory_space<vmem>>, vector<8x128xbf16>
    tpu.vector_store %arg8[%407, %c0_149], %406 {strides = array<i32>} : memref<64x128xbf16, #tpu.memory_space<vmem>>, vector<8x128xbf16>,
    %c2_i32_150 = arith.constant 2 : i32
    %c8_i32_151 = arith.constant 8 : i32
    %409 = arith.muli %c2_i32_150, %c8_i32_151 : i32
    %410 = tpu.assume_multiple %409, 8 : i32
    %411 = arith.index_cast %410 : i32 to index
    %c0_152 = arith.constant 0 : index
    %412 = vector.load %arg11[%411, %c0_152] : memref<64x384xf32, #tpu.memory_space<vmem>>, vector<8x384xf32>
    %413 = arith.truncf %405 : vector<8x128xf32> to vector<8x128xbf16>
    %c1_153 = arith.constant 1 : index
    %c0_154 = arith.constant 0 : index
    %c0_155 = arith.constant 0 : index
    %414 = vector.load %arg6[%c1_153, %c0_154, %c0_155] : memref<2x128x384xbf16, #tpu.memory_space<vmem>>, vector<1x128x384xbf16>
    %415 = vector.shape_cast %414 : vector<1x128x384xbf16> to vector<128x384xbf16>
    %cst_156 = arith.constant dense<0.000000e+00> : vector<8x384xf32>
    %416 = tpu.matmul %413, %415, %cst_156 {dimension_numbers = #tpu.dot_dimension_numbers<[1], [0], [0], [1], [0, 0, 1, 1], [], []>} : vector<8x128xbf16>, vector<128x384xbf16>, vector<8x384xf32> -> vector<8x384xf32>
    %c1_157 = arith.constant 1 : index
    %c0_158 = arith.constant 0 : index
    %c0_159 = arith.constant 0 : index
    %417 = vector.load %arg7[%c1_157, %c0_158, %c0_159] : memref<2x1x384xf32, #tpu.memory_space<vmem>>, vector<1x1x384xf32>
    %418 = vector.shape_cast %417 : vector<1x1x384xf32> to vector<1x384xf32>
    %419 = vector.broadcast %418 : vector<1x384xf32> to vector<8x384xf32>
    %420 = arith.addf %416, %419 : vector<8x384xf32>
    %421 = vector.extract_strided_slice %412 {offsets = [0, 0], sizes = [8, 128], strides = [1, 1]} : vector<8x384xf32> to vector<8x128xf32>
    %422 = vector.extract_strided_slice %420 {offsets = [0, 0], sizes = [8, 128], strides = [1, 1]} : vector<8x384xf32> to vector<8x128xf32>
    %423 = arith.addf %421, %422 : vector<8x128xf32>
    %424 = arith.negf %423 : vector<8x128xf32>
    %425 = math.exp %424 : vector<8x128xf32>
    %cst_160 = arith.constant 1.000000e+00 : f32
    %426 = vector.broadcast %cst_160 : f32 to vector<8x128xf32>
    %427 = arith.addf %426, %425 : vector<8x128xf32>
    %428 = arith.divf %426, %427 : vector<8x128xf32>
    %429 = vector.extract_strided_slice %412 {offsets = [0, 128], sizes = [8, 128], strides = [1, 1]} : vector<8x384xf32> to vector<8x128xf32>
    %430 = vector.extract_strided_slice %420 {offsets = [0, 128], sizes = [8, 128], strides = [1, 1]} : vector<8x384xf32> to vector<8x128xf32>
    %431 = arith.addf %429, %430 : vector<8x128xf32>
    %432 = arith.negf %431 : vector<8x128xf32>
    %433 = math.exp %432 : vector<8x128xf32>
    %cst_161 = arith.constant 1.000000e+00 : f32
    %434 = vector.broadcast %cst_161 : f32 to vector<8x128xf32>
    %435 = arith.addf %434, %433 : vector<8x128xf32>
    %436 = arith.divf %434, %435 : vector<8x128xf32>
    %437 = vector.extract_strided_slice %412 {offsets = [0, 256], sizes = [8, 128], strides = [1, 1]} : vector<8x384xf32> to vector<8x128xf32>
    %438 = vector.extract_strided_slice %420 {offsets = [0, 256], sizes = [8, 128], strides = [1, 1]} : vector<8x384xf32> to vector<8x128xf32>
    %439 = arith.mulf %428, %438 : vector<8x128xf32>
    %440 = arith.addf %437, %439 : vector<8x128xf32>
    %441 = math.tanh %440 : vector<8x128xf32>
    %442 = arith.subf %405, %441 : vector<8x128xf32>
    %443 = arith.mulf %436, %442 : vector<8x128xf32>
    %444 = arith.addf %441, %443 : vector<8x128xf32>
    %445 = arith.truncf %444 : vector<8x128xf32> to vector<8x128xbf16>
    %446 = arith.index_cast %410 : i32 to index
    %c0_162 = arith.constant 0 : index
    %447 = vector.load %arg8[%446, %c0_162] : memref<64x128xbf16, #tpu.memory_space<vmem>>, vector<8x128xbf16>
    tpu.vector_store %arg8[%446, %c0_162], %445 {strides = array<i32>} : memref<64x128xbf16, #tpu.memory_space<vmem>>, vector<8x128xbf16>,
    %c3_i32_163 = arith.constant 3 : i32
    %c8_i32_164 = arith.constant 8 : i32
    %448 = arith.muli %c3_i32_163, %c8_i32_164 : i32
    %449 = tpu.assume_multiple %448, 8 : i32
    %450 = arith.index_cast %449 : i32 to index
    %c0_165 = arith.constant 0 : index
    %451 = vector.load %arg11[%450, %c0_165] : memref<64x384xf32, #tpu.memory_space<vmem>>, vector<8x384xf32>
    %452 = arith.truncf %444 : vector<8x128xf32> to vector<8x128xbf16>
    %c1_166 = arith.constant 1 : index
    %c0_167 = arith.constant 0 : index
    %c0_168 = arith.constant 0 : index
    %453 = vector.load %arg6[%c1_166, %c0_167, %c0_168] : memref<2x128x384xbf16, #tpu.memory_space<vmem>>, vector<1x128x384xbf16>
    %454 = vector.shape_cast %453 : vector<1x128x384xbf16> to vector<128x384xbf16>
    %cst_169 = arith.constant dense<0.000000e+00> : vector<8x384xf32>
    %455 = tpu.matmul %452, %454, %cst_169 {dimension_numbers = #tpu.dot_dimension_numbers<[1], [0], [0], [1], [0, 0, 1, 1], [], []>} : vector<8x128xbf16>, vector<128x384xbf16>, vector<8x384xf32> -> vector<8x384xf32>
    %c1_170 = arith.constant 1 : index
    %c0_171 = arith.constant 0 : index
    %c0_172 = arith.constant 0 : index
    %456 = vector.load %arg7[%c1_170, %c0_171, %c0_172] : memref<2x1x384xf32, #tpu.memory_space<vmem>>, vector<1x1x384xf32>
    %457 = vector.shape_cast %456 : vector<1x1x384xf32> to vector<1x384xf32>
    %458 = vector.broadcast %457 : vector<1x384xf32> to vector<8x384xf32>
    %459 = arith.addf %455, %458 : vector<8x384xf32>
    %460 = vector.extract_strided_slice %451 {offsets = [0, 0], sizes = [8, 128], strides = [1, 1]} : vector<8x384xf32> to vector<8x128xf32>
    %461 = vector.extract_strided_slice %459 {offsets = [0, 0], sizes = [8, 128], strides = [1, 1]} : vector<8x384xf32> to vector<8x128xf32>
    %462 = arith.addf %460, %461 : vector<8x128xf32>
    %463 = arith.negf %462 : vector<8x128xf32>
    %464 = math.exp %463 : vector<8x128xf32>
    %cst_173 = arith.constant 1.000000e+00 : f32
    %465 = vector.broadcast %cst_173 : f32 to vector<8x128xf32>
    %466 = arith.addf %465, %464 : vector<8x128xf32>
    %467 = arith.divf %465, %466 : vector<8x128xf32>
    %468 = vector.extract_strided_slice %451 {offsets = [0, 128], sizes = [8, 128], strides = [1, 1]} : vector<8x384xf32> to vector<8x128xf32>
    %469 = vector.extract_strided_slice %459 {offsets = [0, 128], sizes = [8, 128], strides = [1, 1]} : vector<8x384xf32> to vector<8x128xf32>
    %470 = arith.addf %468, %469 : vector<8x128xf32>
    %471 = arith.negf %470 : vector<8x128xf32>
    %472 = math.exp %471 : vector<8x128xf32>
    %cst_174 = arith.constant 1.000000e+00 : f32
    %473 = vector.broadcast %cst_174 : f32 to vector<8x128xf32>
    %474 = arith.addf %473, %472 : vector<8x128xf32>
    %475 = arith.divf %473, %474 : vector<8x128xf32>
    %476 = vector.extract_strided_slice %451 {offsets = [0, 256], sizes = [8, 128], strides = [1, 1]} : vector<8x384xf32> to vector<8x128xf32>
    %477 = vector.extract_strided_slice %459 {offsets = [0, 256], sizes = [8, 128], strides = [1, 1]} : vector<8x384xf32> to vector<8x128xf32>
    %478 = arith.mulf %467, %477 : vector<8x128xf32>
    %479 = arith.addf %476, %478 : vector<8x128xf32>
    %480 = math.tanh %479 : vector<8x128xf32>
    %481 = arith.subf %444, %480 : vector<8x128xf32>
    %482 = arith.mulf %475, %481 : vector<8x128xf32>
    %483 = arith.addf %480, %482 : vector<8x128xf32>
    %484 = arith.truncf %483 : vector<8x128xf32> to vector<8x128xbf16>
    %485 = arith.index_cast %449 : i32 to index
    %c0_175 = arith.constant 0 : index
    %486 = vector.load %arg8[%485, %c0_175] : memref<64x128xbf16, #tpu.memory_space<vmem>>, vector<8x128xbf16>
    tpu.vector_store %arg8[%485, %c0_175], %484 {strides = array<i32>} : memref<64x128xbf16, #tpu.memory_space<vmem>>, vector<8x128xbf16>,
    %c4_i32_176 = arith.constant 4 : i32
    %c8_i32_177 = arith.constant 8 : i32
    %487 = arith.muli %c4_i32_176, %c8_i32_177 : i32
    %488 = tpu.assume_multiple %487, 8 : i32
    %489 = arith.index_cast %488 : i32 to index
    %c0_178 = arith.constant 0 : index
    %490 = vector.load %arg11[%489, %c0_178] : memref<64x384xf32, #tpu.memory_space<vmem>>, vector<8x384xf32>
    %491 = arith.truncf %483 : vector<8x128xf32> to vector<8x128xbf16>
    %c1_179 = arith.constant 1 : index
    %c0_180 = arith.constant 0 : index
    %c0_181 = arith.constant 0 : index
    %492 = vector.load %arg6[%c1_179, %c0_180, %c0_181] : memref<2x128x384xbf16, #tpu.memory_space<vmem>>, vector<1x128x384xbf16>
    %493 = vector.shape_cast %492 : vector<1x128x384xbf16> to vector<128x384xbf16>
    %cst_182 = arith.constant dense<0.000000e+00> : vector<8x384xf32>
    %494 = tpu.matmul %491, %493, %cst_182 {dimension_numbers = #tpu.dot_dimension_numbers<[1], [0], [0], [1], [0, 0, 1, 1], [], []>} : vector<8x128xbf16>, vector<128x384xbf16>, vector<8x384xf32> -> vector<8x384xf32>
    %c1_183 = arith.constant 1 : index
    %c0_184 = arith.constant 0 : index
    %c0_185 = arith.constant 0 : index
    %495 = vector.load %arg7[%c1_183, %c0_184, %c0_185] : memref<2x1x384xf32, #tpu.memory_space<vmem>>, vector<1x1x384xf32>
    %496 = vector.shape_cast %495 : vector<1x1x384xf32> to vector<1x384xf32>
    %497 = vector.broadcast %496 : vector<1x384xf32> to vector<8x384xf32>
    %498 = arith.addf %494, %497 : vector<8x384xf32>
    %499 = vector.extract_strided_slice %490 {offsets = [0, 0], sizes = [8, 128], strides = [1, 1]} : vector<8x384xf32> to vector<8x128xf32>
    %500 = vector.extract_strided_slice %498 {offsets = [0, 0], sizes = [8, 128], strides = [1, 1]} : vector<8x384xf32> to vector<8x128xf32>
    %501 = arith.addf %499, %500 : vector<8x128xf32>
    %502 = arith.negf %501 : vector<8x128xf32>
    %503 = math.exp %502 : vector<8x128xf32>
    %cst_186 = arith.constant 1.000000e+00 : f32
    %504 = vector.broadcast %cst_186 : f32 to vector<8x128xf32>
    %505 = arith.addf %504, %503 : vector<8x128xf32>
    %506 = arith.divf %504, %505 : vector<8x128xf32>
    %507 = vector.extract_strided_slice %490 {offsets = [0, 128], sizes = [8, 128], strides = [1, 1]} : vector<8x384xf32> to vector<8x128xf32>
    %508 = vector.extract_strided_slice %498 {offsets = [0, 128], sizes = [8, 128], strides = [1, 1]} : vector<8x384xf32> to vector<8x128xf32>
    %509 = arith.addf %507, %508 : vector<8x128xf32>
    %510 = arith.negf %509 : vector<8x128xf32>
    %511 = math.exp %510 : vector<8x128xf32>
    %cst_187 = arith.constant 1.000000e+00 : f32
    %512 = vector.broadcast %cst_187 : f32 to vector<8x128xf32>
    %513 = arith.addf %512, %511 : vector<8x128xf32>
    %514 = arith.divf %512, %513 : vector<8x128xf32>
    %515 = vector.extract_strided_slice %490 {offsets = [0, 256], sizes = [8, 128], strides = [1, 1]} : vector<8x384xf32> to vector<8x128xf32>
    %516 = vector.extract_strided_slice %498 {offsets = [0, 256], sizes = [8, 128], strides = [1, 1]} : vector<8x384xf32> to vector<8x128xf32>
    %517 = arith.mulf %506, %516 : vector<8x128xf32>
    %518 = arith.addf %515, %517 : vector<8x128xf32>
    %519 = math.tanh %518 : vector<8x128xf32>
    %520 = arith.subf %483, %519 : vector<8x128xf32>
    %521 = arith.mulf %514, %520 : vector<8x128xf32>
    %522 = arith.addf %519, %521 : vector<8x128xf32>
    %523 = arith.truncf %522 : vector<8x128xf32> to vector<8x128xbf16>
    %524 = arith.index_cast %488 : i32 to index
    %c0_188 = arith.constant 0 : index
    %525 = vector.load %arg8[%524, %c0_188] : memref<64x128xbf16, #tpu.memory_space<vmem>>, vector<8x128xbf16>
    tpu.vector_store %arg8[%524, %c0_188], %523 {strides = array<i32>} : memref<64x128xbf16, #tpu.memory_space<vmem>>, vector<8x128xbf16>,
    %c5_i32_189 = arith.constant 5 : i32
    %c8_i32_190 = arith.constant 8 : i32
    %526 = arith.muli %c5_i32_189, %c8_i32_190 : i32
    %527 = tpu.assume_multiple %526, 8 : i32
    %528 = arith.index_cast %527 : i32 to index
    %c0_191 = arith.constant 0 : index
    %529 = vector.load %arg11[%528, %c0_191] : memref<64x384xf32, #tpu.memory_space<vmem>>, vector<8x384xf32>
    %530 = arith.truncf %522 : vector<8x128xf32> to vector<8x128xbf16>
    %c1_192 = arith.constant 1 : index
    %c0_193 = arith.constant 0 : index
    %c0_194 = arith.constant 0 : index
    %531 = vector.load %arg6[%c1_192, %c0_193, %c0_194] : memref<2x128x384xbf16, #tpu.memory_space<vmem>>, vector<1x128x384xbf16>
    %532 = vector.shape_cast %531 : vector<1x128x384xbf16> to vector<128x384xbf16>
    %cst_195 = arith.constant dense<0.000000e+00> : vector<8x384xf32>
    %533 = tpu.matmul %530, %532, %cst_195 {dimension_numbers = #tpu.dot_dimension_numbers<[1], [0], [0], [1], [0, 0, 1, 1], [], []>} : vector<8x128xbf16>, vector<128x384xbf16>, vector<8x384xf32> -> vector<8x384xf32>
    %c1_196 = arith.constant 1 : index
    %c0_197 = arith.constant 0 : index
    %c0_198 = arith.constant 0 : index
    %534 = vector.load %arg7[%c1_196, %c0_197, %c0_198] : memref<2x1x384xf32, #tpu.memory_space<vmem>>, vector<1x1x384xf32>
    %535 = vector.shape_cast %534 : vector<1x1x384xf32> to vector<1x384xf32>
    %536 = vector.broadcast %535 : vector<1x384xf32> to vector<8x384xf32>
    %537 = arith.addf %533, %536 : vector<8x384xf32>
    %538 = vector.extract_strided_slice %529 {offsets = [0, 0], sizes = [8, 128], strides = [1, 1]} : vector<8x384xf32> to vector<8x128xf32>
    %539 = vector.extract_strided_slice %537 {offsets = [0, 0], sizes = [8, 128], strides = [1, 1]} : vector<8x384xf32> to vector<8x128xf32>
    %540 = arith.addf %538, %539 : vector<8x128xf32>
    %541 = arith.negf %540 : vector<8x128xf32>
    %542 = math.exp %541 : vector<8x128xf32>
    %cst_199 = arith.constant 1.000000e+00 : f32
    %543 = vector.broadcast %cst_199 : f32 to vector<8x128xf32>
    %544 = arith.addf %543, %542 : vector<8x128xf32>
    %545 = arith.divf %543, %544 : vector<8x128xf32>
    %546 = vector.extract_strided_slice %529 {offsets = [0, 128], sizes = [8, 128], strides = [1, 1]} : vector<8x384xf32> to vector<8x128xf32>
    %547 = vector.extract_strided_slice %537 {offsets = [0, 128], sizes = [8, 128], strides = [1, 1]} : vector<8x384xf32> to vector<8x128xf32>
    %548 = arith.addf %546, %547 : vector<8x128xf32>
    %549 = arith.negf %548 : vector<8x128xf32>
    %550 = math.exp %549 : vector<8x128xf32>
    %cst_200 = arith.constant 1.000000e+00 : f32
    %551 = vector.broadcast %cst_200 : f32 to vector<8x128xf32>
    %552 = arith.addf %551, %550 : vector<8x128xf32>
    %553 = arith.divf %551, %552 : vector<8x128xf32>
    %554 = vector.extract_strided_slice %529 {offsets = [0, 256], sizes = [8, 128], strides = [1, 1]} : vector<8x384xf32> to vector<8x128xf32>
    %555 = vector.extract_strided_slice %537 {offsets = [0, 256], sizes = [8, 128], strides = [1, 1]} : vector<8x384xf32> to vector<8x128xf32>
    %556 = arith.mulf %545, %555 : vector<8x128xf32>
    %557 = arith.addf %554, %556 : vector<8x128xf32>
    %558 = math.tanh %557 : vector<8x128xf32>
    %559 = arith.subf %522, %558 : vector<8x128xf32>
    %560 = arith.mulf %553, %559 : vector<8x128xf32>
    %561 = arith.addf %558, %560 : vector<8x128xf32>
    %562 = arith.truncf %561 : vector<8x128xf32> to vector<8x128xbf16>
    %563 = arith.index_cast %527 : i32 to index
    %c0_201 = arith.constant 0 : index
    %564 = vector.load %arg8[%563, %c0_201] : memref<64x128xbf16, #tpu.memory_space<vmem>>, vector<8x128xbf16>
    tpu.vector_store %arg8[%563, %c0_201], %562 {strides = array<i32>} : memref<64x128xbf16, #tpu.memory_space<vmem>>, vector<8x128xbf16>,
    %c6_i32_202 = arith.constant 6 : i32
    %c8_i32_203 = arith.constant 8 : i32
    %565 = arith.muli %c6_i32_202, %c8_i32_203 : i32
    %566 = tpu.assume_multiple %565, 8 : i32
    %567 = arith.index_cast %566 : i32 to index
    %c0_204 = arith.constant 0 : index
    %568 = vector.load %arg11[%567, %c0_204] : memref<64x384xf32, #tpu.memory_space<vmem>>, vector<8x384xf32>
    %569 = arith.truncf %561 : vector<8x128xf32> to vector<8x128xbf16>
    %c1_205 = arith.constant 1 : index
    %c0_206 = arith.constant 0 : index
    %c0_207 = arith.constant 0 : index
    %570 = vector.load %arg6[%c1_205, %c0_206, %c0_207] : memref<2x128x384xbf16, #tpu.memory_space<vmem>>, vector<1x128x384xbf16>
    %571 = vector.shape_cast %570 : vector<1x128x384xbf16> to vector<128x384xbf16>
    %cst_208 = arith.constant dense<0.000000e+00> : vector<8x384xf32>
    %572 = tpu.matmul %569, %571, %cst_208 {dimension_numbers = #tpu.dot_dimension_numbers<[1], [0], [0], [1], [0, 0, 1, 1], [], []>} : vector<8x128xbf16>, vector<128x384xbf16>, vector<8x384xf32> -> vector<8x384xf32>
    %c1_209 = arith.constant 1 : index
    %c0_210 = arith.constant 0 : index
    %c0_211 = arith.constant 0 : index
    %573 = vector.load %arg7[%c1_209, %c0_210, %c0_211] : memref<2x1x384xf32, #tpu.memory_space<vmem>>, vector<1x1x384xf32>
    %574 = vector.shape_cast %573 : vector<1x1x384xf32> to vector<1x384xf32>
    %575 = vector.broadcast %574 : vector<1x384xf32> to vector<8x384xf32>
    %576 = arith.addf %572, %575 : vector<8x384xf32>
    %577 = vector.extract_strided_slice %568 {offsets = [0, 0], sizes = [8, 128], strides = [1, 1]} : vector<8x384xf32> to vector<8x128xf32>
    %578 = vector.extract_strided_slice %576 {offsets = [0, 0], sizes = [8, 128], strides = [1, 1]} : vector<8x384xf32> to vector<8x128xf32>
    %579 = arith.addf %577, %578 : vector<8x128xf32>
    %580 = arith.negf %579 : vector<8x128xf32>
    %581 = math.exp %580 : vector<8x128xf32>
    %cst_212 = arith.constant 1.000000e+00 : f32
    %582 = vector.broadcast %cst_212 : f32 to vector<8x128xf32>
    %583 = arith.addf %582, %581 : vector<8x128xf32>
    %584 = arith.divf %582, %583 : vector<8x128xf32>
    %585 = vector.extract_strided_slice %568 {offsets = [0, 128], sizes = [8, 128], strides = [1, 1]} : vector<8x384xf32> to vector<8x128xf32>
    %586 = vector.extract_strided_slice %576 {offsets = [0, 128], sizes = [8, 128], strides = [1, 1]} : vector<8x384xf32> to vector<8x128xf32>
    %587 = arith.addf %585, %586 : vector<8x128xf32>
    %588 = arith.negf %587 : vector<8x128xf32>
    %589 = math.exp %588 : vector<8x128xf32>
    %cst_213 = arith.constant 1.000000e+00 : f32
    %590 = vector.broadcast %cst_213 : f32 to vector<8x128xf32>
    %591 = arith.addf %590, %589 : vector<8x128xf32>
    %592 = arith.divf %590, %591 : vector<8x128xf32>
    %593 = vector.extract_strided_slice %568 {offsets = [0, 256], sizes = [8, 128], strides = [1, 1]} : vector<8x384xf32> to vector<8x128xf32>
    %594 = vector.extract_strided_slice %576 {offsets = [0, 256], sizes = [8, 128], strides = [1, 1]} : vector<8x384xf32> to vector<8x128xf32>
    %595 = arith.mulf %584, %594 : vector<8x128xf32>
    %596 = arith.addf %593, %595 : vector<8x128xf32>
    %597 = math.tanh %596 : vector<8x128xf32>
    %598 = arith.subf %561, %597 : vector<8x128xf32>
    %599 = arith.mulf %592, %598 : vector<8x128xf32>
    %600 = arith.addf %597, %599 : vector<8x128xf32>
    %601 = arith.truncf %600 : vector<8x128xf32> to vector<8x128xbf16>
    %602 = arith.index_cast %566 : i32 to index
    %c0_214 = arith.constant 0 : index
    %603 = vector.load %arg8[%602, %c0_214] : memref<64x128xbf16, #tpu.memory_space<vmem>>, vector<8x128xbf16>
    tpu.vector_store %arg8[%602, %c0_214], %601 {strides = array<i32>} : memref<64x128xbf16, #tpu.memory_space<vmem>>, vector<8x128xbf16>,
    %c7_i32_215 = arith.constant 7 : i32
    %c8_i32_216 = arith.constant 8 : i32
    %604 = arith.muli %c7_i32_215, %c8_i32_216 : i32
    %605 = tpu.assume_multiple %604, 8 : i32
    %606 = arith.index_cast %605 : i32 to index
    %c0_217 = arith.constant 0 : index
    %607 = vector.load %arg11[%606, %c0_217] : memref<64x384xf32, #tpu.memory_space<vmem>>, vector<8x384xf32>
    %608 = arith.truncf %600 : vector<8x128xf32> to vector<8x128xbf16>
    %c1_218 = arith.constant 1 : index
    %c0_219 = arith.constant 0 : index
    %c0_220 = arith.constant 0 : index
    %609 = vector.load %arg6[%c1_218, %c0_219, %c0_220] : memref<2x128x384xbf16, #tpu.memory_space<vmem>>, vector<1x128x384xbf16>
    %610 = vector.shape_cast %609 : vector<1x128x384xbf16> to vector<128x384xbf16>
    %cst_221 = arith.constant dense<0.000000e+00> : vector<8x384xf32>
    %611 = tpu.matmul %608, %610, %cst_221 {dimension_numbers = #tpu.dot_dimension_numbers<[1], [0], [0], [1], [0, 0, 1, 1], [], []>} : vector<8x128xbf16>, vector<128x384xbf16>, vector<8x384xf32> -> vector<8x384xf32>
    %c1_222 = arith.constant 1 : index
    %c0_223 = arith.constant 0 : index
    %c0_224 = arith.constant 0 : index
    %612 = vector.load %arg7[%c1_222, %c0_223, %c0_224] : memref<2x1x384xf32, #tpu.memory_space<vmem>>, vector<1x1x384xf32>
    %613 = vector.shape_cast %612 : vector<1x1x384xf32> to vector<1x384xf32>
    %614 = vector.broadcast %613 : vector<1x384xf32> to vector<8x384xf32>
    %615 = arith.addf %611, %614 : vector<8x384xf32>
    %616 = vector.extract_strided_slice %607 {offsets = [0, 0], sizes = [8, 128], strides = [1, 1]} : vector<8x384xf32> to vector<8x128xf32>
    %617 = vector.extract_strided_slice %615 {offsets = [0, 0], sizes = [8, 128], strides = [1, 1]} : vector<8x384xf32> to vector<8x128xf32>
    %618 = arith.addf %616, %617 : vector<8x128xf32>
    %619 = arith.negf %618 : vector<8x128xf32>
    %620 = math.exp %619 : vector<8x128xf32>
    %cst_225 = arith.constant 1.000000e+00 : f32
    %621 = vector.broadcast %cst_225 : f32 to vector<8x128xf32>
    %622 = arith.addf %621, %620 : vector<8x128xf32>
    %623 = arith.divf %621, %622 : vector<8x128xf32>
    %624 = vector.extract_strided_slice %607 {offsets = [0, 128], sizes = [8, 128], strides = [1, 1]} : vector<8x384xf32> to vector<8x128xf32>
    %625 = vector.extract_strided_slice %615 {offsets = [0, 128], sizes = [8, 128], strides = [1, 1]} : vector<8x384xf32> to vector<8x128xf32>
    %626 = arith.addf %624, %625 : vector<8x128xf32>
    %627 = arith.negf %626 : vector<8x128xf32>
    %628 = math.exp %627 : vector<8x128xf32>
    %cst_226 = arith.constant 1.000000e+00 : f32
    %629 = vector.broadcast %cst_226 : f32 to vector<8x128xf32>
    %630 = arith.addf %629, %628 : vector<8x128xf32>
    %631 = arith.divf %629, %630 : vector<8x128xf32>
    %632 = vector.extract_strided_slice %607 {offsets = [0, 256], sizes = [8, 128], strides = [1, 1]} : vector<8x384xf32> to vector<8x128xf32>
    %633 = vector.extract_strided_slice %615 {offsets = [0, 256], sizes = [8, 128], strides = [1, 1]} : vector<8x384xf32> to vector<8x128xf32>
    %634 = arith.mulf %623, %633 : vector<8x128xf32>
    %635 = arith.addf %632, %634 : vector<8x128xf32>
    %636 = math.tanh %635 : vector<8x128xf32>
    %637 = arith.subf %600, %636 : vector<8x128xf32>
    %638 = arith.mulf %631, %637 : vector<8x128xf32>
    %639 = arith.addf %636, %638 : vector<8x128xf32>
    %640 = arith.truncf %639 : vector<8x128xf32> to vector<8x128xbf16>
    %641 = arith.index_cast %605 : i32 to index
    %c0_227 = arith.constant 0 : index
    %642 = vector.load %arg8[%641, %c0_227] : memref<64x128xbf16, #tpu.memory_space<vmem>>, vector<8x128xbf16>
    tpu.vector_store %arg8[%641, %c0_227], %640 {strides = array<i32>} : memref<64x128xbf16, #tpu.memory_space<vmem>>, vector<8x128xbf16>,
    %c8_i32_228 = arith.constant 8 : i32
    %c1_229 = arith.constant 1 : index
    %c0_230 = arith.constant 0 : index
    %c0_231 = arith.constant 0 : index
    %643 = vector.load %arg10[%c1_229, %c0_230, %c0_231] : memref<2x8x128xf32, #tpu.memory_space<vmem>>, vector<1x8x128xf32>
    %644 = vector.shape_cast %643 : vector<1x8x128xf32> to vector<8x128xf32>
    %645 = vector.shape_cast %639 : vector<8x128xf32> to vector<1x8x128xf32>
    tpu.vector_store %arg10[%c1_229, %c0_230, %c0_231], %645 {strides = array<i32>} : memref<2x8x128xf32, #tpu.memory_space<vmem>>, vector<1x8x128xf32>,
    %c0_232 = arith.constant 0 : index
    %c0_233 = arith.constant 0 : index
    %c0_234 = arith.constant 0 : index
    %646 = vector.load %arg10[%c0_232, %c0_233, %c0_234] : memref<2x8x128xf32, #tpu.memory_space<vmem>>, vector<2x8x128xf32>
    %c0_235 = arith.constant 0 : index
    %c0_236 = arith.constant 0 : index
    %c0_237 = arith.constant 0 : index
    %647 = vector.load %arg9[%c0_235, %c0_236, %c0_237] : memref<2x8x128xf32, #tpu.memory_space<vmem>>, vector<2x8x128xf32>
    tpu.vector_store %arg9[%c0_235, %c0_236, %c0_237], %646 {strides = array<i32>} : memref<2x8x128xf32, #tpu.memory_space<vmem>>, vector<2x8x128xf32>,
    return
  }
  func.func @transform_0(%arg0: i32) -> (i32, i32) {
    %c0_i32 = arith.constant 0 : i32
    %c0_i32_0 = arith.constant 0 : i32
    return %arg0, %c0_i32 : i32, i32
  }
  func.func @transform_1(%arg0: i32) -> (i32, i32) {
    %c0_i32 = arith.constant 0 : i32
    %c0_i32_0 = arith.constant 0 : i32
    %c0_i32_1 = arith.constant 0 : i32
    return %c0_i32, %c0_i32_0 : i32, i32
  }
  func.func @transform_2(%arg0: i32) -> (i32, i32) {
    %c0_i32 = arith.constant 0 : i32
    %c0_i32_0 = arith.constant 0 : i32
    %c0_i32_1 = arith.constant 0 : i32
    return %c0_i32, %c0_i32_0 : i32, i32
  }
  func.func @transform_3(%arg0: i32) -> (i32, i32, i32) {
    %c0_i32 = arith.constant 0 : i32
    %c0_i32_0 = arith.constant 0 : i32
    %c0_i32_1 = arith.constant 0 : i32
    %c0_i32_2 = arith.constant 0 : i32
    return %c0_i32, %c0_i32_0, %c0_i32_1 : i32, i32, i32
  }
  func.func @transform_4(%arg0: i32) -> (i32, i32, i32) {
    %c0_i32 = arith.constant 0 : i32
    %c0_i32_0 = arith.constant 0 : i32
    %c0_i32_1 = arith.constant 0 : i32
    %c0_i32_2 = arith.constant 0 : i32
    return %c0_i32, %c0_i32_0, %c0_i32_1 : i32, i32, i32
  }
  func.func @transform_5(%arg0: i32) -> (i32, i32, i32) {
    %c0_i32 = arith.constant 0 : i32
    %c0_i32_0 = arith.constant 0 : i32
    %c0_i32_1 = arith.constant 0 : i32
    %c0_i32_2 = arith.constant 0 : i32
    return %c0_i32, %c0_i32_0, %c0_i32_1 : i32, i32, i32
  }
  func.func @transform_6(%arg0: i32) -> (i32, i32, i32) {
    %c0_i32 = arith.constant 0 : i32
    %c0_i32_0 = arith.constant 0 : i32
    %c0_i32_1 = arith.constant 0 : i32
    %c0_i32_2 = arith.constant 0 : i32
    return %c0_i32, %c0_i32_0, %c0_i32_1 : i32, i32, i32
  }
  func.func @transform_7(%arg0: i32) -> (i32, i32) {
    %c0_i32 = arith.constant 0 : i32
    %c0_i32_0 = arith.constant 0 : i32
    return %arg0, %c0_i32 : i32, i32
  }
  func.func @transform_8(%arg0: i32) -> (i32, i32, i32) {
    %c0_i32 = arith.constant 0 : i32
    %c0_i32_0 = arith.constant 0 : i32
    %c0_i32_1 = arith.constant 0 : i32
    %c0_i32_2 = arith.constant 0 : i32
    return %c0_i32, %c0_i32_0, %c0_i32_1 : i32, i32, i32
  }
}

</mosaic_0001>

<llo_original>
// kernel: char_rnn_forward.3
$region0: #{char_rnn_forward.3}
  #allocation0 [shape = 'u32[]', space=smem, size = 0x4, offset = 0x4, fixed_abs, tag = 'smem constant byte address 0x4 - core index']
  #allocation1 [shape = 'u32[144,128]{1,0:T(1,128)}', space=vmem, size = 0x12000, scoped, tag = 'internal scratch']
  %s0 = inlined_call_operand.vmem [shape: bf16[16,128], index: 0, kind: input, shape index: {}]
  %s1 = inlined_call_operand.vmem [shape: bf16[128,128], index: 1, kind: input, shape index: {}]
  %s2 = inlined_call_operand.vmem [shape: f32[1,128], index: 2, kind: input, shape index: {}]
  %s3 = inlined_call_operand.hbm [shape: f32[16,128], index: 3, kind: output, shape index: {}]
  %s4 = sld [smem:[#allocation0]]
  $region22: #{char_rnn_forward.3} parent=0
    _
  %s6 = ssub.s32 1, %s4
  %s7 = scalar_select 0, %s6, %s4
  $region1: #{char_rnn_forward.3} parent=0
    #allocation2 [shape = 'u8[8192]{0}', space=vmem, size = 0x2000, scoped, tag = 'output window, operand 0, single buffered']
    #allocation3 [shape = 's32[1]{0}', space=sflag, size = 0x4, scoped, tag = 'scoped memory for char_rnn_forward.3']
    %8 = vsyncpa [#allocation3], 0
    // Predicated region
    $region2: #{char_rnn_forward.3} parent=1 // pred_check
      _
    $region3: #{char_rnn_forward.3} parent=1 // pred_check_branch
      %10 = sbr.rel (0) target = $region5
    $region4: #{char_rnn_forward.3} parent=1 // pred_region
      _
    $region5: #{char_rnn_forward.3} parent=1 // pred_fallthru
      _
    // Predicated region
    $region6: #{char_rnn_forward.3} parent=1 // pred_check
      _
    $region7: #{char_rnn_forward.3} parent=1 // pred_check_branch
      %12 = sbr.rel (0) target = $region9
    $region8: #{char_rnn_forward.3} parent=1 // pred_region
      _
    $region9: #{char_rnn_forward.3} parent=1 // pred_fallthru
      _
    // Predicated region
    $region10: #{char_rnn_forward.3} parent=1 // pred_check
      _
    $region11: #{char_rnn_forward.3} parent=1 // pred_check_branch
      %14 = sbr.rel (0) target = $region13
    $region12: #{char_rnn_forward.3} parent=1 // pred_region
      _
    $region13: #{char_rnn_forward.3} parent=1 // pred_fallthru
      _
    %v16 = vld [vmem:[%s0] sm:$0xf]
    %v17 = vld [vmem:[%s0 + $0x4] sm:$0xf]
    %v18 = vld [vmem:[%s1] sm:$0xf]
    %v19 = vld [vmem:[%s1 + $0x4] sm:$0xf]
    %v20 = vld [vmem:[%s1 + $0x8] sm:$0xf]
    %v21 = vld [vmem:[%s1 + $0xc] sm:$0xf]
    %v22 = vld [vmem:[%s1 + $0x10] sm:$0xf]
    %v23 = vld [vmem:[%s1 + $0x14] sm:$0xf]
    %v24 = vld [vmem:[%s1 + $0x18] sm:$0xf]
    %v25 = vld [vmem:[%s1 + $0x1c] sm:$0xf]
    %v26 = vld [vmem:[%s1 + $0x20] sm:$0xf]
    %v27 = vld [vmem:[%s1 + $0x24] sm:$0xf]
    %v28 = vld [vmem:[%s1 + $0x28] sm:$0xf]
    %v29 = vld [vmem:[%s1 + $0x2c] sm:$0xf]
    %v30 = vld [vmem:[%s1 + $0x30] sm:$0xf]
    %v31 = vld [vmem:[%s1 + $0x34] sm:$0xf]
    %v32 = vld [vmem:[%s1 + $0x38] sm:$0xf]
    %v33 = vld [vmem:[%s1 + $0x3c] sm:$0xf]
    %v34 = vld [vmem:[%s2] sm:$0x1]
    %v36 = vlaneseq
    %v37 = vshrl.u32 %v36, 7
    %v38 = vsub.s32 0, %v37
    %v39 = vrot.slane %v34, %v38
    %v43 = vunpack.c.l.b16 %v16
    %v44 = vunpack.c.l.b16 %v17
    %v45 = vpack.c.b16 %v44, %v43
    %v63 = vunpack.c.l.b16 %v18
    %v64 = vunpack.c.l.b16 %v19
    %v65 = vunpack.c.l.b16 %v20
    %v66 = vunpack.c.l.b16 %v21
    %v67 = vunpack.c.l.b16 %v22
    %v68 = vunpack.c.l.b16 %v23
    %v69 = vunpack.c.l.b16 %v24
    %v70 = vunpack.c.l.b16 %v25
    %v71 = vunpack.c.l.b16 %v26
    %v72 = vunpack.c.l.b16 %v27
    %v73 = vunpack.c.l.b16 %v28
    %v74 = vunpack.c.l.b16 %v29
    %v75 = vunpack.c.l.b16 %v30
    %v76 = vunpack.c.l.b16 %v31
    %v77 = vunpack.c.l.b16 %v32
    %v78 = vunpack.c.l.b16 %v33
    %v79 = vpack.c.b16 %v64, %v63
    %v80 = vpack.c.b16 %v66, %v65
    %v81 = vpack.c.b16 %v68, %v67
    %v82 = vpack.c.b16 %v70, %v69
    %v83 = vpack.c.b16 %v72, %v71
    %v84 = vpack.c.b16 %v74, %v73
    %v85 = vpack.c.b16 %v76, %v75
    %v86 = vpack.c.b16 %v78, %v77
    %95 = vmatprep.subr.bf16.mxu0 0
    %96 = vmatpush1.bf16.msra.mxu0 %v79
    %97 = vmatprep.subr.bf16.mxu0 0
    %98 = vmatpush1.bf16.msra.mxu0 %v80
    %99 = vmatprep.subr.bf16.mxu0 0
    %100 = vmatpush1.bf16.msra.mxu0 %v81
    %101 = vmatprep.subr.bf16.mxu0 0
    %102 = vmatpush1.bf16.msra.mxu0 %v82
    %103 = vmatprep.subr.bf16.mxu0 0
    %104 = vmatpush1.bf16.msra.mxu0 %v83
    %105 = vmatprep.subr.bf16.mxu0 0
    %106 = vmatpush1.bf16.msra.mxu0 %v84
    %107 = vmatprep.subr.bf16.mxu0 0
    %108 = vmatpush1.bf16.msra.mxu0 %v85
    %109 = vmatprep.subr.bf16.mxu0 0
    %110 = vmatpush1.bf16.msra.mxu0 %v86
    %111 = vmatprep.subr.bf16.mxu0 0
    %112 = vmatpush1.bf16.msra.mxu0 0
    %113 = vmatprep.subr.bf16.mxu0 0
    %114 = vmatpush1.bf16.msra.mxu0 0
    %115 = vmatprep.subr.bf16.mxu0 0
    %116 = vmatpush1.bf16.msra.mxu0 0
    %117 = vmatprep.subr.bf16.mxu0 0
    %118 = vmatpush1.bf16.msra.mxu0 0
    %119 = vmatprep.subr.bf16.mxu0 0
    %120 = vmatpush1.bf16.msra.mxu0 0
    %121 = vmatprep.subr.bf16.mxu0 0
    %122 = vmatpush1.bf16.msra.mxu0 0
    %123 = vmatprep.subr.bf16.mxu0 0
    %124 = vmatpush1.bf16.msra.mxu0 0
    %125 = vmatprep.subr.bf16.mxu0 0
    %126 = vmatpush1.bf16.msra.mxu0 0
    %127 = vmatprep.mubr.bf16.mxu0 0
    %128 = vmatmul.mubr.bf16.gmra.mrb[0].mxu0 %v45
    %v129 = vpop.f32.mrb[0].mxu0
    %v130 = vadd.f32 %v39, %v129
    %v131 = vpop.f32.mrb[0].mxu0
    %v132 = vpop.f32.mrb[0].mxu0
    %v133 = vadd.f32 %v39, %v132
    %v134 = vpop.f32.mrb[0].mxu0
    %135 = vdwg.mxu0
    %136 = vst [vmem:[#allocation2] sm:$0xff] %v130
    %137 = vst [vmem:[#allocation2 + $0x8] sm:$0xff] %v133
    // Predicated region
    $region14: #{char_rnn_forward.3} parent=1 // pred_check
      _
    $region15: #{char_rnn_forward.3} parent=1 // pred_check_branch
      %139 = sbr.rel (0) target = $region17
    $region16: #{char_rnn_forward.3} parent=1 // pred_region
      %s141 = ssub.s32 256, 256
      %142 = vsyncadd [#allocation3], %s141
      %s143 = sshll.u32 [#allocation2], 4
      %s144 = int_to_ptr.vmem [resolvable:$true] %s143
      %149 = dma.vmem_to_hbm [thread:$0]  %s144, 256, %s3, [#allocation3], 128, 128, 8
    $region17: #{char_rnn_forward.3} parent=1 // pred_fallthru
      _
    // Predicated region
    $region18: #{char_rnn_forward.3} parent=1 // pred_check
      _
    $region19: #{char_rnn_forward.3} parent=1 // pred_check_branch
      %151 = sbr.rel (0) target = $region21
    $region20: #{char_rnn_forward.3} parent=1 // pred_region
      %152 = dma.done [#allocation3], 256
    $region21: #{char_rnn_forward.3} parent=1 // pred_fallthru
      _
    %153 = vsyncpa [#allocation3], 1

// kernel: char_rnn_forward.2
$region0: #{char_rnn_forward.2}
  #allocation0 [shape = 'u32[]', space=smem, size = 0x4, offset = 0x4, fixed_abs, tag = 'smem constant byte address 0x4 - core index']
  #allocation1 [shape = 'u32[144,128]{1,0:T(1,128)}', space=vmem, size = 0x12000, scoped, tag = 'internal scratch']
  #allocation2 [shape = 'f32[2,8,128]{2,1,0:T(8,128)}', space=vmem, size = 0x2000, scoped, tag = 'scratch operand']
  #allocation3 [shape = 'f32[64,384]{1,0:T(8,128)}', space=vmem, size = 0x18000, scoped, tag = 'scratch operand']
  #allocation4 [shape = 'f32[64,128]{1,0:T(8,128)}', space=vmem, size = 0x8000, scoped, tag = 'scratch operand']
  %s0 = inlined_call_operand.vmem [shape: bf16[64,16], index: 0, kind: input, shape index: {}]
  %s1 = inlined_call_operand.vmem [shape: bf16[16,384], index: 1, kind: input, shape index: {}]
  %s2 = inlined_call_operand.vmem [shape: f32[1,384], index: 2, kind: input, shape index: {}]
  %s3 = inlined_call_operand.vmem [shape: bf16[1,128,384], index: 3, kind: input, shape index: {}]
  %s4 = inlined_call_operand.vmem [shape: f32[1,1,384], index: 4, kind: input, shape index: {}]
  %s5 = inlined_call_operand.hbm [shape: bf16[2,128,384], index: 5, kind: input, shape index: {}]
  %s6 = inlined_call_operand.vmem [shape: f32[2,1,384], index: 6, kind: input, shape index: {}]
  %s7 = inlined_call_operand.vmem [shape: bf16[64,128], index: 7, kind: output, shape index: {0}]
  %s8 = inlined_call_operand.vmem [shape: f32[2,8,128], index: 8, kind: output, shape index: {1}]
  %9 = xla_tuple %s7, %s8
  %s10 = sld [smem:[#allocation0]]
  $region54: #{char_rnn_forward.2} parent=0
    _
  %s12 = ssub.s32 1, %s10
  %s13 = scalar_select 0, %s12, %s10
  $region1: #{char_rnn_forward.2} parent=0
    #allocation5 [shape = 'u8[196608]{0}', space=vmem, size = 0x30000, scoped, tag = 'input window, operand 5, single buffered']
    #allocation6 [shape = 's32[1]{0}', space=sflag, size = 0x4, scoped, tag = 'scoped memory for char_rnn_forward.2']
    %14 = vsyncpa [#allocation6], 0
    // Predicated region
    $region2: #{char_rnn_forward.2} parent=1 // pred_check
      _
    $region3: #{char_rnn_forward.2} parent=1 // pred_check_branch
      %16 = sbr.rel (0) target = $region5
    $region4: #{char_rnn_forward.2} parent=1 // pred_region
      _
    $region5: #{char_rnn_forward.2} parent=1 // pred_fallthru
      _
    // Predicated region
    $region6: #{char_rnn_forward.2} parent=1 // pred_check
      _
    $region7: #{char_rnn_forward.2} parent=1 // pred_check_branch
      %18 = sbr.rel (0) target = $region9
    $region8: #{char_rnn_forward.2} parent=1 // pred_region
      _
    $region9: #{char_rnn_forward.2} parent=1 // pred_fallthru
      _
    // Predicated region
    $region10: #{char_rnn_forward.2} parent=1 // pred_check
      _
    $region11: #{char_rnn_forward.2} parent=1 // pred_check_branch
      %20 = sbr.rel (0) target = $region13
    $region12: #{char_rnn_forward.2} parent=1 // pred_region
      _
    $region13: #{char_rnn_forward.2} parent=1 // pred_fallthru
      _
    // Predicated region
    $region14: #{char_rnn_forward.2} parent=1 // pred_check
      _
    $region15: #{char_rnn_forward.2} parent=1 // pred_check_branch
      %22 = sbr.rel (0) target = $region17
    $region16: #{char_rnn_forward.2} parent=1 // pred_region
      _
    $region17: #{char_rnn_forward.2} parent=1 // pred_fallthru
      _
    // Predicated region
    $region18: #{char_rnn_forward.2} parent=1 // pred_check
      _
    $region19: #{char_rnn_forward.2} parent=1 // pred_check_branch
      %24 = sbr.rel (0) target = $region21
    $region20: #{char_rnn_forward.2} parent=1 // pred_region
      _
    $region21: #{char_rnn_forward.2} parent=1 // pred_fallthru
      _
    // Predicated region
    $region22: #{char_rnn_forward.2} parent=1 // pred_check
      _
    $region23: #{char_rnn_forward.2} parent=1 // pred_check_branch
      %26 = sbr.rel (0) target = $region25
    $region24: #{char_rnn_forward.2} parent=1 // pred_region
      %s28 = ssub.s32 6144, 6144
      %29 = vsyncadd [#allocation6], %s28
      %s30 = sshll.u32 [#allocation5], 4
      %s31 = int_to_ptr.vmem [resolvable:$true] %s30
      %36 = dma.hbm_to_vmem [thread:$0]  %s5, 6144, %s31, [#allocation6], 192, 192, 12
    $region25: #{char_rnn_forward.2} parent=1 // pred_fallthru
      _
    // Predicated region
    $region26: #{char_rnn_forward.2} parent=1 // pred_check
      _
    $region27: #{char_rnn_forward.2} parent=1 // pred_check_branch
      %38 = sbr.rel (0) target = $region29
    $region28: #{char_rnn_forward.2} parent=1 // pred_region
      _
    $region29: #{char_rnn_forward.2} parent=1 // pred_fallthru
      _
    // Predicated region
    $region30: #{char_rnn_forward.2} parent=1 // pred_check
      _
    $region31: #{char_rnn_forward.2} parent=1 // pred_check_branch
      %40 = sbr.rel (0) target = $region33
    $region32: #{char_rnn_forward.2} parent=1 // pred_region
      %41 = dma.done [#allocation6], 6144
    $region33: #{char_rnn_forward.2} parent=1 // pred_fallthru
      _
    %p43 = scmp.eq.s32.totalorder 0, 0
    // Predicated region
    $region34: #{char_rnn_forward.2} parent=1 // pred_check
      %p44 = pneg %p43
    $region35: #{char_rnn_forward.2} parent=1 // pred_check_branch
      %46 = sbr.rel (%p44) target = $region37
    $region36: #{char_rnn_forward.2} parent=1 // pred_region
      %47 = vst [vmem:[#allocation2] sm:$0xff] 0.0
      %48 = vst [vmem:[#allocation2 + $0x8] sm:$0xff] 0.0
    $region37: #{char_rnn_forward.2} parent=1 // pred_fallthru
      _
    %v49 = vld [vmem:[%s0] sm:$0xf]
    %v50 = vld [vmem:[%s0 + $0x4] sm:$0xf]
    %v51 = vld [vmem:[%s0 + $0x8] sm:$0xf]
    %v52 = vld [vmem:[%s0 + $0xc] sm:$0xf]
    %v53 = vld [vmem:[%s0 + $0x10] sm:$0xf]
    %v54 = vld [vmem:[%s0 + $0x14] sm:$0xf]
    %v55 = vld [vmem:[%s0 + $0x18] sm:$0xf]
    %v56 = vld [vmem:[%s0 + $0x1c] sm:$0xf]
    %v57 = vld [vmem:[%s1] sm:$0xff]
    %v58 = vld [vmem:[%s1 + $0x8] sm:$0xf]
    %v59 = vld [vmem:[%s1 + $0xc] sm:$0xff]
    %v60 = vld [vmem:[%s1 + $0x14] sm:$0xf]
    %v61 = vld [vmem:[%s2] sm:$0x7]
    %v63 = vlaneseq
    %v64 = vshrl.u32 %v63, 7
    %v65 = vsub.s32 0, %v64
    %v66 = vrot.slane %v61, %v65
    %v67 = vlaneseq
    %v68 = vshrl.u32 %v67, 7
    %v69 = vsub.s32 1, %v68
    %v70 = vrot.slane %v61, %v69
    %v71 = vlaneseq
    %v72 = vshrl.u32 %v71, 7
    %v73 = vsub.s32 2, %v72
    %v74 = vrot.slane %v61, %v73
    %v86 = vunpack.c.l.b16 %v49
    %v87 = vunpack.c.l.b16 %v50
    %v88 = vunpack.c.l.b16 %v51
    %v89 = vunpack.c.l.b16 %v52
    %v90 = vunpack.c.l.b16 %v53
    %v91 = vunpack.c.l.b16 %v54
    %v92 = vunpack.c.l.b16 %v55
    %v93 = vunpack.c.l.b16 %v56
    %v94 = vpack.c.b16 %v87, %v86
    %v95 = vpack.c.b16 %v89, %v88
    %v96 = vpack.c.b16 %v91, %v90
    %v97 = vpack.c.b16 %v93, %v92
    %v102 = vunpack.c.l.b16 %v57
    %v103 = vunpack.c.h.b16 %v57
    %v104 = vunpack.c.l.b16 %v58
    %v105 = vunpack.c.l.b16 %v59
    %v106 = vunpack.c.h.b16 %v59
    %v107 = vunpack.c.l.b16 %v60
    %v108 = vpack.c.b16 %v105, %v102
    %v109 = vpack.c.b16 %v106, %v103
    %v110 = vpack.c.b16 %v107, %v104
    %vm114 = vcmask 130048
    %v116 = vsel %vm114, %v94, 0
    %v119 = vsel %vm114, %v95, 0
    %v122 = vsel %vm114, %v96, 0
    %v125 = vsel %vm114, %v97, 0
    %127 = vmatprep.subr.bf16.mxu0 %v109
    %128 = vmatpush1.bf16.msra.mxu0 %v108
    %129 = vmatprep.subr.bf16.mxu0 0
    %130 = vmatpush1.bf16.msra.mxu0 0
    %131 = vmatprep.subr.bf16.mxu0 0
    %132 = vmatpush1.bf16.msra.mxu0 0
    %133 = vmatprep.subr.bf16.mxu0 0
    %134 = vmatpush1.bf16.msra.mxu0 0
    %135 = vmatprep.subr.bf16.mxu0 0
    %136 = vmatpush1.bf16.msra.mxu0 0
    %137 = vmatprep.subr.bf16.mxu0 0
    %138 = vmatpush1.bf16.msra.mxu0 0
    %139 = vmatprep.subr.bf16.mxu0 0
    %140 = vmatpush1.bf16.msra.mxu0 0
    %141 = vmatprep.subr.bf16.mxu0 0
    %142 = vmatpush1.bf16.msra.mxu0 0
    %143 = vmatprep.subr.bf16.mxu0 0
    %144 = vmatpush1.bf16.msra.mxu0 0
    %145 = vmatprep.subr.bf16.mxu0 0
    %146 = vmatpush1.bf16.msra.mxu0 0
    %147 = vmatprep.subr.bf16.mxu0 0
    %148 = vmatpush1.bf16.msra.mxu0 0
    %149 = vmatprep.subr.bf16.mxu0 0
    %150 = vmatpush1.bf16.msra.mxu0 0
    %151 = vmatprep.subr.bf16.mxu0 0
    %152 = vmatpush1.bf16.msra.mxu0 0
    %153 = vmatprep.subr.bf16.mxu0 0
    %154 = vmatpush1.bf16.msra.mxu0 0
    %155 = vmatprep.subr.bf16.mxu0 0
    %156 = vmatpush1.bf16.msra.mxu0 0
    %157 = vmatprep.subr.bf16.mxu0 0
    %158 = vmatpush1.bf16.msra.mxu0 0
    %159 = vmatprep.mubr.bf16.mxu0 0
    %160 = vmatmul.mubr.bf16.gmra.mrb[0].mxu0 %v116
    %v161 = vpop.f32.mrb[0].mxu0
    %v162 = vadd.f32 %v66, %v161
    %v163 = vpop.f32.mrb[0].mxu0
    %v164 = vadd.f32 %v70, %v163
    %v165 = vpop.f32.mrb[0].mxu0
    %v166 = vadd.f32 %v66, %v165
    %v167 = vpop.f32.mrb[0].mxu0
    %v168 = vadd.f32 %v70, %v167
    %169 = vmatprep.mubr.bf16.mxu0 0
    %170 = vmatmul.mubr.bf16.gmra.mrb[0].mxu0 %v119
    %v171 = vpop.f32.mrb[0].mxu0
    %v172 = vadd.f32 %v66, %v171
    %v173 = vpop.f32.mrb[0].mxu0
    %v174 = vadd.f32 %v70, %v173
    %v175 = vpop.f32.mrb[0].mxu0
    %v176 = vadd.f32 %v66, %v175
    %v177 = vpop.f32.mrb[0].mxu0
    %v178 = vadd.f32 %v70, %v177
    %179 = vmatprep.mubr.bf16.mxu0 0
    %180 = vmatmul.mubr.bf16.gmra.mrb[0].mxu0 %v122
    %v181 = vpop.f32.mrb[0].mxu0
    %v182 = vadd.f32 %v66, %v181
    %v183 = vpop.f32.mrb[0].mxu0
    %v184 = vadd.f32 %v70, %v183
    %v185 = vpop.f32.mrb[0].mxu0
    %v186 = vadd.f32 %v66, %v185
    %v187 = vpop.f32.mrb[0].mxu0
    %v188 = vadd.f32 %v70, %v187
    %189 = vmatprep.mubr.bf16.mxu0 0
    %190 = vmatmul.mubr.bf16.gmra.mrb[0].mxu0 %v125
    %v191 = vpop.f32.mrb[0].mxu0
    %v192 = vadd.f32 %v66, %v191
    %v193 = vpop.f32.mrb[0].mxu0
    %v194 = vadd.f32 %v70, %v193
    %v195 = vpop.f32.mrb[0].mxu0
    %v196 = vadd.f32 %v66, %v195
    %v197 = vpop.f32.mrb[0].mxu0
    %v198 = vadd.f32 %v70, %v197
    %199 = vdwg.mxu0
    %200 = vmatprep.subr.bf16.mxu0 0
    %201 = vmatpush1.bf16.msra.mxu0 %v110
    %202 = vmatprep.subr.bf16.mxu0 0
    %203 = vmatpush1.bf16.msra.mxu0 0
    %204 = vmatprep.subr.bf16.mxu0 0
    %205 = vmatpush1.bf16.msra.mxu0 0
    %206 = vmatprep.subr.bf16.mxu0 0
    %207 = vmatpush1.bf16.msra.mxu0 0
    %208 = vmatprep.subr.bf16.mxu0 0
    %209 = vmatpush1.bf16.msra.mxu0 0
    %210 = vmatprep.subr.bf16.mxu0 0
    %211 = vmatpush1.bf16.msra.mxu0 0
    %212 = vmatprep.subr.bf16.mxu0 0
    %213 = vmatpush1.bf16.msra.mxu0 0
    %214 = vmatprep.subr.bf16.mxu0 0
    %215 = vmatpush1.bf16.msra.mxu0 0
    %216 = vmatprep.subr.bf16.mxu0 0
    %217 = vmatpush1.bf16.msra.mxu0 0
    %218 = vmatprep.subr.bf16.mxu0 0
    %219 = vmatpush1.bf16.msra.mxu0 0
    %220 = vmatprep.subr.bf16.mxu0 0
    %221 = vmatpush1.bf16.msra.mxu0 0
    %222 = vmatprep.subr.bf16.mxu0 0
    %223 = vmatpush1.bf16.msra.mxu0 0
    %224 = vmatprep.subr.bf16.mxu0 0
    %225 = vmatpush1.bf16.msra.mxu0 0
    %226 = vmatprep.subr.bf16.mxu0 0
    %227 = vmatpush1.bf16.msra.mxu0 0
    %228 = vmatprep.subr.bf16.mxu0 0
    %229 = vmatpush1.bf16.msra.mxu0 0
    %230 = vmatprep.subr.bf16.mxu0 0
    %231 = vmatpush1.bf16.msra.mxu0 0
    %232 = vmatprep.mubr.bf16.mxu0 0
    %233 = vmatmul.mubr.bf16.gmra.mrb[0].mxu0 %v116
    %v234 = vpop.f32.mrb[0].mxu0
    %v235 = vadd.f32 %v74, %v234
    %v236 = vpop.f32.mrb[0].mxu0
    %v237 = vpop.f32.mrb[0].mxu0
    %v238 = vadd.f32 %v74, %v237
    %v239 = vpop.f32.mrb[0].mxu0
    %240 = vmatprep.mubr.bf16.mxu0 0
    %241 = vmatmul.mubr.bf16.gmra.mrb[0].mxu0 %v119
    %v242 = vpop.f32.mrb[0].mxu0
    %v243 = vadd.f32 %v74, %v242
    %v244 = vpop.f32.mrb[0].mxu0
    %v245 = vpop.f32.mrb[0].mxu0
    %v246 = vadd.f32 %v74, %v245
    %v247 = vpop.f32.mrb[0].mxu0
    %248 = vmatprep.mubr.bf16.mxu0 0
    %249 = vmatmul.mubr.bf16.gmra.mrb[0].mxu0 %v122
    %v250 = vpop.f32.mrb[0].mxu0
    %v251 = vadd.f32 %v74, %v250
    %v252 = vpop.f32.mrb[0].mxu0
    %v253 = vpop.f32.mrb[0].mxu0
    %v254 = vadd.f32 %v74, %v253
    %v255 = vpop.f32.mrb[0].mxu0
    %256 = vmatprep.mubr.bf16.mxu0 0
    %257 = vmatmul.mubr.bf16.gmra.mrb[0].mxu0 %v125
    %v258 = vpop.f32.mrb[0].mxu0
    %v259 = vadd.f32 %v74, %v258
    %v260 = vpop.f32.mrb[0].mxu0
    %v261 = vpop.f32.mrb[0].mxu0
    %v262 = vadd.f32 %v74, %v261
    %v263 = vpop.f32.mrb[0].mxu0
    %264 = vdwg.mxu0
    %265 = vst [vmem:[#allocation3] sm:$0xff] %v162
    %266 = vst [vmem:[#allocation3 + $0x8] sm:$0xff] %v164
    %267 = vst [vmem:[#allocation3 + $0x10] sm:$0xff] %v235
    %268 = vst [vmem:[#allocation3 + $0x18] sm:$0xff] %v166
    %269 = vst [vmem:[#allocation3 + $0x20] sm:$0xff] %v168
    %270 = vst [vmem:[#allocation3 + $0x28] sm:$0xff] %v238
    %271 = vst [vmem:[#allocation3 + $0x30] sm:$0xff] %v172
    %272 = vst [vmem:[#allocation3 + $0x38] sm:$0xff] %v174
    %273 = vst [vmem:[#allocation3 + $0x40] sm:$0xff] %v243
    %274 = vst [vmem:[#allocation3 + $0x48] sm:$0xff] %v176
    %275 = vst [vmem:[#allocation3 + $0x50] sm:$0xff] %v178
    %276 = vst [vmem:[#allocation3 + $0x58] sm:$0xff] %v246
    %277 = vst [vmem:[#allocation3 + $0x60] sm:$0xff] %v182
    %278 = vst [vmem:[#allocation3 + $0x68] sm:$0xff] %v184
    %279 = vst [vmem:[#allocation3 + $0x70] sm:$0xff] %v251
    %280 = vst [vmem:[#allocation3 + $0x78] sm:$0xff] %v186
    %281 = vst [vmem:[#allocation3 + $0x80] sm:$0xff] %v188
    %282 = vst [vmem:[#allocation3 + $0x88] sm:$0xff] %v254
    %283 = vst [vmem:[#allocation3 + $0x90] sm:$0xff] %v192
    %284 = vst [vmem:[#allocation3 + $0x98] sm:$0xff] %v194
    %285 = vst [vmem:[#allocation3 + $0xa0] sm:$0xff] %v259
    %286 = vst [vmem:[#allocation3 + $0xa8] sm:$0xff] %v196
    %287 = vst [vmem:[#allocation3 + $0xb0] sm:$0xff] %v198
    %288 = vst [vmem:[#allocation3 + $0xb8] sm:$0xff] %v262
    %v289 = vld [vmem:[#allocation2] sm:$0xff]
    %s290 = smul.u32 0, 3
    %s291 = smul.addr %s290, 8
    %s292 = scalar_lea.vmem [#allocation3], %s291
    %v293 = vld [vmem:[%s292] sm:$0xff]
    %v294 = vld [vmem:[%s292 + $0x8] sm:$0xff]
    %v295 = vld [vmem:[%s292 + $0x10] sm:$0xff]
    %v296 = vpack.c.bf16 %v289, %v289
    %v297 = vld [vmem:[#allocation5] sm:$0xff]
    %v298 = vld [vmem:[#allocation5 + $0x8] sm:$0xf]
    %v299 = vld [vmem:[#allocation5 + $0xc] sm:$0xff]
    %v300 = vld [vmem:[#allocation5 + $0x14] sm:$0xf]
    %v301 = vld [vmem:[#allocation5 + $0x18] sm:$0xff]
    %v302 = vld [vmem:[#allocation5 + $0x20] sm:$0xf]
    %v303 = vld [vmem:[#allocation5 + $0x24] sm:$0xff]
    %v304 = vld [vmem:[#allocation5 + $0x2c] sm:$0xf]
    %v305 = vld [vmem:[#allocation5 + $0x30] sm:$0xff]
    %v306 = vld [vmem:[#allocation5 + $0x38] sm:$0xf]
    %v307 = vld [vmem:[#allocation5 + $0x3c] sm:$0xff]
    %v308 = vld [vmem:[#allocation5 + $0x44] sm:$0xf]
    %v309 = vld [vmem:[#allocation5 + $0x48] sm:$0xff]
    %v310 = vld [vmem:[#allocation5 + $0x50] sm:$0xf]
    %v311 = vld [vmem:[#allocation5 + $0x54] sm:$0xff]
    %v312 = vld [vmem:[#allocation5 + $0x5c] sm:$0xf]
    %v313 = vld [vmem:[#allocation5 + $0x60] sm:$0xff]
    %v314 = vld [vmem:[#allocation5 + $0x68] sm:$0xf]
    %v315 = vld [vmem:[#allocation5 + $0x6c] sm:$0xff]
    %v316 = vld [vmem:[#allocation5 + $0x74] sm:$0xf]
    %v317 = vld [vmem:[#allocation5 + $0x78] sm:$0xff]
    %v318 = vld [vmem:[#allocation5 + $0x80] sm:$0xf]
    %v319 = vld [vmem:[#allocation5 + $0x84] sm:$0xff]
    %v320 = vld [vmem:[#allocation5 + $0x8c] sm:$0xf]
    %v321 = vld [vmem:[#allocation5 + $0x90] sm:$0xff]
    %v322 = vld [vmem:[#allocation5 + $0x98] sm:$0xf]
    %v323 = vld [vmem:[#allocation5 + $0x9c] sm:$0xff]
    %v324 = vld [vmem:[#allocation5 + $0xa4] sm:$0xf]
    %v325 = vld [vmem:[#allocation5 + $0xa8] sm:$0xff]
    %v326 = vld [vmem:[#allocation5 + $0xb0] sm:$0xf]
    %v327 = vld [vmem:[#allocation5 + $0xb4] sm:$0xff]
    %v328 = vld [vmem:[#allocation5 + $0xbc] sm:$0xf]
    %v329 = vld [vmem:[%s6] sm:$0x7]
    %v331 = vlaneseq
    %v332 = vshrl.u32 %v331, 7
    %v333 = vsub.s32 0, %v332
    %v334 = vrot.slane %v329, %v333
    %v335 = vlaneseq
    %v336 = vshrl.u32 %v335, 7
    %v337 = vsub.s32 1, %v336
    %v338 = vrot.slane %v329, %v337
    %v339 = vlaneseq
    %v340 = vshrl.u32 %v339, 7
    %v341 = vsub.s32 2, %v340
    %v342 = vrot.slane %v329, %v341
    %v378 = vunpack.c.l.b16 %v297
    %v379 = vunpack.c.h.b16 %v297
    %v380 = vunpack.c.l.b16 %v298
    %v381 = vunpack.c.l.b16 %v299
    %v382 = vunpack.c.h.b16 %v299
    %v383 = vunpack.c.l.b16 %v300
    %v384 = vunpack.c.l.b16 %v301
    %v385 = vunpack.c.h.b16 %v301
    %v386 = vunpack.c.l.b16 %v302
    %v387 = vunpack.c.l.b16 %v303
    %v388 = vunpack.c.h.b16 %v303
    %v389 = vunpack.c.l.b16 %v304
    %v390 = vunpack.c.l.b16 %v305
    %v391 = vunpack.c.h.b16 %v305
    %v392 = vunpack.c.l.b16 %v306
    %v393 = vunpack.c.l.b16 %v307
    %v394 = vunpack.c.h.b16 %v307
    %v395 = vunpack.c.l.b16 %v308
    %v396 = vunpack.c.l.b16 %v309
    %v397 = vunpack.c.h.b16 %v309
    %v398 = vunpack.c.l.b16 %v310
    %v399 = vunpack.c.l.b16 %v311
    %v400 = vunpack.c.h.b16 %v311
    %v401 = vunpack.c.l.b16 %v312
    %v402 = vunpack.c.l.b16 %v313
    %v403 = vunpack.c.h.b16 %v313
    %v404 = vunpack.c.l.b16 %v314
    %v405 = vunpack.c.l.b16 %v315
    %v406 = vunpack.c.h.b16 %v315
    %v407 = vunpack.c.l.b16 %v316
    %v408 = vunpack.c.l.b16 %v317
    %v409 = vunpack.c.h.b16 %v317
    %v410 = vunpack.c.l.b16 %v318
    %v411 = vunpack.c.l.b16 %v319
    %v412 = vunpack.c.h.b16 %v319
    %v413 = vunpack.c.l.b16 %v320
    %v414 = vunpack.c.l.b16 %v321
    %v415 = vunpack.c.h.b16 %v321
    %v416 = vunpack.c.l.b16 %v322
    %v417 = vunpack.c.l.b16 %v323
    %v418 = vunpack.c.h.b16 %v323
    %v419 = vunpack.c.l.b16 %v324
    %v420 = vunpack.c.l.b16 %v325
    %v421 = vunpack.c.h.b16 %v325
    %v422 = vunpack.c.l.b16 %v326
    %v423 = vunpack.c.l.b16 %v327
    %v424 = vunpack.c.h.b16 %v327
    %v425 = vunpack.c.l.b16 %v328
    %v426 = vpack.c.b16 %v381, %v378
    %v427 = vpack.c.b16 %v382, %v379
    %v428 = vpack.c.b16 %v383, %v380
    %v429 = vpack.c.b16 %v387, %v384
    %v430 = vpack.c.b16 %v388, %v385
    %v431 = vpack.c.b16 %v389, %v386
    %v432 = vpack.c.b16 %v393, %v390
    %v433 = vpack.c.b16 %v394, %v391
    %v434 = vpack.c.b16 %v395, %v392
    %v435 = vpack.c.b16 %v399, %v396
    %v436 = vpack.c.b16 %v400, %v397
    %v437 = vpack.c.b16 %v401, %v398
    %v438 = vpack.c.b16 %v405, %v402
    %v439 = vpack.c.b16 %v406, %v403
    %v440 = vpack.c.b16 %v407, %v404
    %v441 = vpack.c.b16 %v411, %v408
    %v442 = vpack.c.b16 %v412, %v409
    %v443 = vpack.c.b16 %v413, %v410
    %v444 = vpack.c.b16 %v417, %v414
    %v445 = vpack.c.b16 %v418, %v415
    %v446 = vpack.c.b16 %v419, %v416
    %v447 = vpack.c.b16 %v423, %v420
    %v448 = vpack.c.b16 %v424, %v421
    %v449 = vpack.c.b16 %v425, %v422
    %474 = vmatprep.subr.bf16.mxu0 %v427
    %475 = vmatpush1.bf16.msra.mxu0 %v426
    %476 = vmatprep.subr.bf16.mxu0 %v430
    %477 = vmatpush1.bf16.msra.mxu0 %v429
    %478 = vmatprep.subr.bf16.mxu0 %v433
    %479 = vmatpush1.bf16.msra.mxu0 %v432
    %480 = vmatprep.subr.bf16.mxu0 %v436
    %481 = vmatpush1.bf16.msra.mxu0 %v435
    %482 = vmatprep.subr.bf16.mxu0 %v439
    %483 = vmatpush1.bf16.msra.mxu0 %v438
    %484 = vmatprep.subr.bf16.mxu0 %v442
    %485 = vmatpush1.bf16.msra.mxu0 %v441
    %486 = vmatprep.subr.bf16.mxu0 %v445
    %487 = vmatpush1.bf16.msra.mxu0 %v444
    %488 = vmatprep.subr.bf16.mxu0 %v448
    %489 = vmatpush1.bf16.msra.mxu0 %v447
    %490 = vmatprep.subr.bf16.mxu0 0
    %491 = vmatpush1.bf16.msra.mxu0 0
    %492 = vmatprep.subr.bf16.mxu0 0
    %493 = vmatpush1.bf16.msra.mxu0 0
    %494 = vmatprep.subr.bf16.mxu0 0
    %495 = vmatpush1.bf16.msra.mxu0 0
    %496 = vmatprep.subr.bf16.mxu0 0
    %497 = vmatpush1.bf16.msra.mxu0 0
    %498 = vmatprep.subr.bf16.mxu0 0
    %499 = vmatpush1.bf16.msra.mxu0 0
    %500 = vmatprep.subr.bf16.mxu0 0
    %501 = vmatpush1.bf16.msra.mxu0 0
    %502 = vmatprep.subr.bf16.mxu0 0
    %503 = vmatpush1.bf16.msra.mxu0 0
    %504 = vmatprep.subr.bf16.mxu0 0
    %505 = vmatpush1.bf16.msra.mxu0 0
    %506 = vmatprep.mubr.bf16.mxu0 0
    %507 = vmatmul.mubr.bf16.gmra.mrb[0].mxu0 %v296
    %v508 = vpop.f32.mrb[0].mxu0
    %v509 = vadd.f32 %v334, %v508
    %v510 = vpop.f32.mrb[0].mxu0
    %v511 = vadd.f32 %v338, %v510
    %v512 = vpop.f32.mrb[0].mxu0
    %v513 = vpop.f32.mrb[0].mxu0
    %514 = vdwg.mxu0
    %515 = vmatprep.subr.bf16.mxu0 0
    %516 = vmatpush1.bf16.msra.mxu0 %v428
    %517 = vmatprep.subr.bf16.mxu0 0
    %518 = vmatpush1.bf16.msra.mxu0 %v431
    %519 = vmatprep.subr.bf16.mxu0 0
    %520 = vmatpush1.bf16.msra.mxu0 %v434
    %521 = vmatprep.subr.bf16.mxu0 0
    %522 = vmatpush1.bf16.msra.mxu0 %v437
    %523 = vmatprep.subr.bf16.mxu0 0
    %524 = vmatpush1.bf16.msra.mxu0 %v440
    %525 = vmatprep.subr.bf16.mxu0 0
    %526 = vmatpush1.bf16.msra.mxu0 %v443
    %527 = vmatprep.subr.bf16.mxu0 0
    %528 = vmatpush1.bf16.msra.mxu0 %v446
    %529 = vmatprep.subr.bf16.mxu0 0
    %530 = vmatpush1.bf16.msra.mxu0 %v449
    %531 = vmatprep.subr.bf16.mxu0 0
    %532 = vmatpush1.bf16.msra.mxu0 0
    %533 = vmatprep.subr.bf16.mxu0 0
    %534 = vmatpush1.bf16.msra.mxu0 0
    %535 = vmatprep.subr.bf16.mxu0 0
    %536 = vmatpush1.bf16.msra.mxu0 0
    %537 = vmatprep.subr.bf16.mxu0 0
    %538 = vmatpush1.bf16.msra.mxu0 0
    %539 = vmatprep.subr.bf16.mxu0 0
    %540 = vmatpush1.bf16.msra.mxu0 0
    %541 = vmatprep.subr.bf16.mxu0 0
    %542 = vmatpush1.bf16.msra.mxu0 0
    %543 = vmatprep.subr.bf16.mxu0 0
    %544 = vmatpush1.bf16.msra.mxu0 0
    %545 = vmatprep.subr.bf16.mxu0 0
    %546 = vmatpush1.bf16.msra.mxu0 0
    %547 = vmatprep.mubr.bf16.mxu0 0
    %548 = vmatmul.mubr.bf16.gmra.mrb[0].mxu0 %v296
    %v549 = vpop.f32.mrb[0].mxu0
    %v550 = vadd.f32 %v342, %v549
    %v551 = vpop.f32.mrb[0].mxu0
    %v552 = vpop.f32.mrb[0].mxu0
    %v553 = vpop.f32.mrb[0].mxu0
    %554 = vdwg.mxu0
    %v555 = vadd.f32 %v293, %v509
    %v556 = vxor.u32 %v555, 2147483648
    %v557 = vmul.f32 %v556, 1.442695
    %v558 = vpow.pop %v557
    %v559 = vadd.f32 %v558, 1.0
    %v560 = vrcp.pop %v559
    %v561 = vmul.f32 1.0, %v560
    %v562 = vadd.f32 %v294, %v511
    %v563 = vxor.u32 %v562, 2147483648
    %v564 = vmul.f32 %v563, 1.442695
    %v565 = vpow.pop %v564
    %v566 = vadd.f32 %v565, 1.0
    %v567 = vrcp.pop %v566
    %v568 = vmul.f32 1.0, %v567
    %v569 = vmul.f32 %v561, %v550
    %v570 = vadd.f32 %v295, %v569
    %v571 = vtanh.pop %v570
    %v572 = vsub.f32 %v289, %v571
    %v573 = vmul.f32 %v568, %v572
    %v574 = vadd.f32 %v571, %v573
    %575 = vst [vmem:[#allocation4] sm:$0xff] %v574
    %s576 = smul.u32 1, 3
    %s577 = smul.addr %s576, 8
    %s578 = scalar_lea.vmem [#allocation3], %s577
    %v579 = vld [vmem:[%s578] sm:$0xff]
    %v580 = vld [vmem:[%s578 + $0x8] sm:$0xff]
    %v581 = vld [vmem:[%s578 + $0x10] sm:$0xff]
    %v582 = vpack.c.bf16 %v574, %v574
    %v583 = vld [vmem:[#allocation5] sm:$0xff]
    %v584 = vld [vmem:[#allocation5 + $0x8] sm:$0xf]
    %v585 = vld [vmem:[#allocation5 + $0xc] sm:$0xff]
    %v586 = vld [vmem:[#allocation5 + $0x14] sm:$0xf]
    %v587 = vld [vmem:[#allocation5 + $0x18] sm:$0xff]
    %v588 = vld [vmem:[#allocation5 + $0x20] sm:$0xf]
    %v589 = vld [vmem:[#allocation5 + $0x24] sm:$0xff]
    %v590 = vld [vmem:[#allocation5 + $0x2c] sm:$0xf]
    %v591 = vld [vmem:[#allocation5 + $0x30] sm:$0xff]
    %v592 = vld [vmem:[#allocation5 + $0x38] sm:$0xf]
    %v593 = vld [vmem:[#allocation5 + $0x3c] sm:$0xff]
    %v594 = vld [vmem:[#allocation5 + $0x44] sm:$0xf]
    %v595 = vld [vmem:[#allocation5 + $0x48] sm:$0xff]
    %v596 = vld [vmem:[#allocation5 + $0x50] sm:$0xf]
    %v597 = vld [vmem:[#allocation5 + $0x54] sm:$0xff]
    %v598 = vld [vmem:[#allocation5 + $0x5c] sm:$0xf]
    %v599 = vld [vmem:[#allocation5 + $0x60] sm:$0xff]
    %v600 = vld [vmem:[#allocation5 + $0x68] sm:$0xf]
    %v601 = vld [vmem:[#allocation5 + $0x6c] sm:$0xff]
    %v602 = vld [vmem:[#allocation5 + $0x74] sm:$0xf]
    %v603 = vld [vmem:[#allocation5 + $0x78] sm:$0xff]
    %v604 = vld [vmem:[#allocation5 + $0x80] sm:$0xf]
    %v605 = vld [vmem:[#allocation5 + $0x84] sm:$0xff]
    %v606 = vld [vmem:[#allocation5 + $0x8c] sm:$0xf]
    %v607 = vld [vmem:[#allocation5 + $0x90] sm:$0xff]
    %v608 = vld [vmem:[#allocation5 + $0x98] sm:$0xf]
    %v609 = vld [vmem:[#allocation5 + $0x9c] sm:$0xff]
    %v610 = vld [vmem:[#allocation5 + $0xa4] sm:$0xf]
    %v611 = vld [vmem:[#allocation5 + $0xa8] sm:$0xff]
    %v612 = vld [vmem:[#allocation5 + $0xb0] sm:$0xf]
    %v613 = vld [vmem:[#allocation5 + $0xb4] sm:$0xff]
    %v614 = vld [vmem:[#allocation5 + $0xbc] sm:$0xf]
    %v615 = vld [vmem:[%s6] sm:$0x7]
    %v617 = vlaneseq
    %v618 = vshrl.u32 %v617, 7
    %v619 = vsub.s32 0, %v618
    %v620 = vrot.slane %v615, %v619
    %v621 = vlaneseq
    %v622 = vshrl.u32 %v621, 7
    %v623 = vsub.s32 1, %v622
    %v624 = vrot.slane %v615, %v623
    %v625 = vlaneseq
    %v626 = vshrl.u32 %v625, 7
    %v627 = vsub.s32 2, %v626
    %v628 = vrot.slane %v615, %v627
    %v664 = vunpack.c.l.b16 %v583
    %v665 = vunpack.c.h.b16 %v583
    %v666 = vunpack.c.l.b16 %v584
    %v667 = vunpack.c.l.b16 %v585
    %v668 = vunpack.c.h.b16 %v585
    %v669 = vunpack.c.l.b16 %v586
    %v670 = vunpack.c.l.b16 %v587
    %v671 = vunpack.c.h.b16 %v587
    %v672 = vunpack.c.l.b16 %v588
    %v673 = vunpack.c.l.b16 %v589
    %v674 = vunpack.c.h.b16 %v589
    %v675 = vunpack.c.l.b16 %v590
    %v676 = vunpack.c.l.b16 %v591
    %v677 = vunpack.c.h.b16 %v591
    %v678 = vunpack.c.l.b16 %v592
    %v679 = vunpack.c.l.b16 %v593
    %v680 = vunpack.c.h.b16 %v593
    %v681 = vunpack.c.l.b16 %v594
    %v682 = vunpack.c.l.b16 %v595
    %v683 = vunpack.c.h.b16 %v595
    %v684 = vunpack.c.l.b16 %v596
    %v685 = vunpack.c.l.b16 %v597
    %v686 = vunpack.c.h.b16 %v597
    %v687 = vunpack.c.l.b16 %v598
    %v688 = vunpack.c.l.b16 %v599
    %v689 = vunpack.c.h.b16 %v599
    %v690 = vunpack.c.l.b16 %v600
    %v691 = vunpack.c.l.b16 %v601
    %v692 = vunpack.c.h.b16 %v601
    %v693 = vunpack.c.l.b16 %v602
    %v694 = vunpack.c.l.b16 %v603
    %v695 = vunpack.c.h.b16 %v603
    %v696 = vunpack.c.l.b16 %v604
    %v697 = vunpack.c.l.b16 %v605
    %v698 = vunpack.c.h.b16 %v605
    %v699 = vunpack.c.l.b16 %v606
    %v700 = vunpack.c.l.b16 %v607
    %v701 = vunpack.c.h.b16 %v607
    %v702 = vunpack.c.l.b16 %v608
    %v703 = vunpack.c.l.b16 %v609
    %v704 = vunpack.c.h.b16 %v609
    %v705 = vunpack.c.l.b16 %v610
    %v706 = vunpack.c.l.b16 %v611
    %v707 = vunpack.c.h.b16 %v611
    %v708 = vunpack.c.l.b16 %v612
    %v709 = vunpack.c.l.b16 %v613
    %v710 = vunpack.c.h.b16 %v613
    %v711 = vunpack.c.l.b16 %v614
    %v712 = vpack.c.b16 %v667, %v664
    %v713 = vpack.c.b16 %v668, %v665
    %v714 = vpack.c.b16 %v669, %v666
    %v715 = vpack.c.b16 %v673, %v670
    %v716 = vpack.c.b16 %v674, %v671
    %v717 = vpack.c.b16 %v675, %v672
    %v718 = vpack.c.b16 %v679, %v676
    %v719 = vpack.c.b16 %v680, %v677
    %v720 = vpack.c.b16 %v681, %v678
    %v721 = vpack.c.b16 %v685, %v682
    %v722 = vpack.c.b16 %v686, %v683
    %v723 = vpack.c.b16 %v687, %v684
    %v724 = vpack.c.b16 %v691, %v688
    %v725 = vpack.c.b16 %v692, %v689
    %v726 = vpack.c.b16 %v693, %v690
    %v727 = vpack.c.b16 %v697, %v694
    %v728 = vpack.c.b16 %v698, %v695
    %v729 = vpack.c.b16 %v699, %v696
    %v730 = vpack.c.b16 %v703, %v700
    %v731 = vpack.c.b16 %v704, %v701
    %v732 = vpack.c.b16 %v705, %v702
    %v733 = vpack.c.b16 %v709, %v706
    %v734 = vpack.c.b16 %v710, %v707
    %v735 = vpack.c.b16 %v711, %v708
    %760 = vmatprep.subr.bf16.mxu0 %v713
    %761 = vmatpush1.bf16.msra.mxu0 %v712
    %762 = vmatprep.subr.bf16.mxu0 %v716
    %763 = vmatpush1.bf16.msra.mxu0 %v715
    %764 = vmatprep.subr.bf16.mxu0 %v719
    %765 = vmatpush1.bf16.msra.mxu0 %v718
    %766 = vmatprep.subr.bf16.mxu0 %v722
    %767 = vmatpush1.bf16.msra.mxu0 %v721
    %768 = vmatprep.subr.bf16.mxu0 %v725
    %769 = vmatpush1.bf16.msra.mxu0 %v724
    %770 = vmatprep.subr.bf16.mxu0 %v728
    %771 = vmatpush1.bf16.msra.mxu0 %v727
    %772 = vmatprep.subr.bf16.mxu0 %v731
    %773 = vmatpush1.bf16.msra.mxu0 %v730
    %774 = vmatprep.subr.bf16.mxu0 %v734
    %775 = vmatpush1.bf16.msra.mxu0 %v733
    %776 = vmatprep.subr.bf16.mxu0 0
    %777 = vmatpush1.bf16.msra.mxu0 0
    %778 = vmatprep.subr.bf16.mxu0 0
    %779 = vmatpush1.bf16.msra.mxu0 0
    %780 = vmatprep.subr.bf16.mxu0 0
    %781 = vmatpush1.bf16.msra.mxu0 0
    %782 = vmatprep.subr.bf16.mxu0 0
    %783 = vmatpush1.bf16.msra.mxu0 0
    %784 = vmatprep.subr.bf16.mxu0 0
    %785 = vmatpush1.bf16.msra.mxu0 0
    %786 = vmatprep.subr.bf16.mxu0 0
    %787 = vmatpush1.bf16.msra.mxu0 0
    %788 = vmatprep.subr.bf16.mxu0 0
    %789 = vmatpush1.bf16.msra.mxu0 0
    %790 = vmatprep.subr.bf16.mxu0 0
    %791 = vmatpush1.bf16.msra.mxu0 0
    %792 = vmatprep.mubr.bf16.mxu0 0
    %793 = vmatmul.mubr.bf16.gmra.mrb[0].mxu0 %v582
    %v794 = vpop.f32.mrb[0].mxu0
    %v795 = vadd.f32 %v620, %v794
    %v796 = vpop.f32.mrb[0].mxu0
    %v797 = vadd.f32 %v624, %v796
    %v798 = vpop.f32.mrb[0].mxu0
    %v799 = vpop.f32.mrb[0].mxu0
    %800 = vdwg.mxu0
    %801 = vmatprep.subr.bf16.mxu0 0
    %802 = vmatpush1.bf16.msra.mxu0 %v714
    %803 = vmatprep.subr.bf16.mxu0 0
    %804 = vmatpush1.bf16.msra.mxu0 %v717
    %805 = vmatprep.subr.bf16.mxu0 0
    %806 = vmatpush1.bf16.msra.mxu0 %v720
    %807 = vmatprep.subr.bf16.mxu0 0
    %808 = vmatpush1.bf16.msra.mxu0 %v723
    %809 = vmatprep.subr.bf16.mxu0 0
    %810 = vmatpush1.bf16.msra.mxu0 %v726
    %811 = vmatprep.subr.bf16.mxu0 0
    %812 = vmatpush1.bf16.msra.mxu0 %v729
    %813 = vmatprep.subr.bf16.mxu0 0
    %814 = vmatpush1.bf16.msra.mxu0 %v732
    %815 = vmatprep.subr.bf16.mxu0 0
    %816 = vmatpush1.bf16.msra.mxu0 %v735
    %817 = vmatprep.subr.bf16.mxu0 0
    %818 = vmatpush1.bf16.msra.mxu0 0
    %819 = vmatprep.subr.bf16.mxu0 0
    %820 = vmatpush1.bf16.msra.mxu0 0
    %821 = vmatprep.subr.bf16.mxu0 0
    %822 = vmatpush1.bf16.msra.mxu0 0
    %823 = vmatprep.subr.bf16.mxu0 0
    %824 = vmatpush1.bf16.msra.mxu0 0
    %825 = vmatprep.subr.bf16.mxu0 0
    %826 = vmatpush1.bf16.msra.mxu0 0
    %827 = vmatprep.subr.bf16.mxu0 0
    %828 = vmatpush1.bf16.msra.mxu0 0
    %829 = vmatprep.subr.bf16.mxu0 0
    %830 = vmatpush1.bf16.msra.mxu0 0
    %831 = vmatprep.subr.bf16.mxu0 0
    %832 = vmatpush1.bf16.msra.mxu0 0
    %833 = vmatprep.mubr.bf16.mxu0 0
    %834 = vmatmul.mubr.bf16.gmra.mrb[0].mxu0 %v582
    %v835 = vpop.f32.mrb[0].mxu0
    %v836 = vadd.f32 %v628, %v835
    %v837 = vpop.f32.mrb[0].mxu0
    %v838 = vpop.f32.mrb[0].mxu0
    %v839 = vpop.f32.mrb[0].mxu0
    %840 = vdwg.mxu0
    %v841 = vadd.f32 %v579, %v795
    %v842 = vxor.u32 %v841, 2147483648
    %v843 = vmul.f32 %v842, 1.442695
    %v844 = vpow.pop %v843
    %v845 = vadd.f32 %v844, 1.0
    %v846 = vrcp.pop %v845
    %v847 = vmul.f32 1.0, %v846
    %v848 = vadd.f32 %v580, %v797
    %v849 = vxor.u32 %v848, 2147483648
    %v850 = vmul.f32 %v849, 1.442695
    %v851 = vpow.pop %v850
    %v852 = vadd.f32 %v851, 1.0
    %v853 = vrcp.pop %v852
    %v854 = vmul.f32 1.0, %v853
    %v855 = vmul.f32 %v847, %v836
    %v856 = vadd.f32 %v581, %v855
    %v857 = vtanh.pop %v856
    %v858 = vsub.f32 %v574, %v857
    %v859 = vmul.f32 %v854, %v858
    %v860 = vadd.f32 %v857, %v859
    %s861 = scalar_lea.vmem [#allocation4], 8
    %862 = vst [vmem:[%s861] sm:$0xff] %v860
    %s863 = smul.u32 2, 3
    %s864 = smul.addr %s863, 8
    %s865 = scalar_lea.vmem [#allocation3], %s864
    %v866 = vld [vmem:[%s865] sm:$0xff]
    %v867 = vld [vmem:[%s865 + $0x8] sm:$0xff]
    %v868 = vld [vmem:[%s865 + $0x10] sm:$0xff]
    %v869 = vpack.c.bf16 %v860, %v860
    %v870 = vld [vmem:[#allocation5] sm:$0xff]
    %v871 = vld [vmem:[#allocation5 + $0x8] sm:$0xf]
    %v872 = vld [vmem:[#allocation5 + $0xc] sm:$0xff]
    %v873 = vld [vmem:[#allocation5 + $0x14] sm:$0xf]
    %v874 = vld [vmem:[#allocation5 + $0x18] sm:$0xff]
    %v875 = vld [vmem:[#allocation5 + $0x20] sm:$0xf]
    %v876 = vld [vmem:[#allocation5 + $0x24] sm:$0xff]
    %v877 = vld [vmem:[#allocation5 + $0x2c] sm:$0xf]
    %v878 = vld [vmem:[#allocation5 + $0x30] sm:$0xff]
    %v879 = vld [vmem:[#allocation5 + $0x38] sm:$0xf]
    %v880 = vld [vmem:[#allocation5 + $0x3c] sm:$0xff]
    %v881 = vld [vmem:[#allocation5 + $0x44] sm:$0xf]
    %v882 = vld [vmem:[#allocation5 + $0x48] sm:$0xff]
    %v883 = vld [vmem:[#allocation5 + $0x50] sm:$0xf]
    %v884 = vld [vmem:[#allocation5 + $0x54] sm:$0xff]
    %v885 = vld [vmem:[#allocation5 + $0x5c] sm:$0xf]
    %v886 = vld [vmem:[#allocation5 + $0x60] sm:$0xff]
    %v887 = vld [vmem:[#allocation5 + $0x68] sm:$0xf]
    %v888 = vld [vmem:[#allocation5 + $0x6c] sm:$0xff]
    %v889 = vld [vmem:[#allocation5 + $0x74] sm:$0xf]
    %v890 = vld [vmem:[#allocation5 + $0x78] sm:$0xff]
    %v891 = vld [vmem:[#allocation5 + $0x80] sm:$0xf]
    %v892 = vld [vmem:[#allocation5 + $0x84] sm:$0xff]
    %v893 = vld [vmem:[#allocation5 + $0x8c] sm:$0xf]
    %v894 = vld [vmem:[#allocation5 + $0x90] sm:$0xff]
    %v895 = vld [vmem:[#allocation5 + $0x98] sm:$0xf]
    %v896 = vld [vmem:[#allocation5 + $0x9c] sm:$0xff]
    %v897 = vld [vmem:[#allocation5 + $0xa4] sm:$0xf]
    %v898 = vld [vmem:[#allocation5 + $0xa8] sm:$0xff]
    %v899 = vld [vmem:[#allocation5 + $0xb0] sm:$0xf]
    %v900 = vld [vmem:[#allocation5 + $0xb4] sm:$0xff]
    %v901 = vld [vmem:[#allocation5 + $0xbc] sm:$0xf]
    %v902 = vld [vmem:[%s6] sm:$0x7]
    %v904 = vlaneseq
    %v905 = vshrl.u32 %v904, 7
    %v906 = vsub.s32 0, %v905
    %v907 = vrot.slane %v902, %v906
    %v908 = vlaneseq
    %v909 = vshrl.u32 %v908, 7
    %v910 = vsub.s32 1, %v909
    %v911 = vrot.slane %v902, %v910
    %v912 = vlaneseq
    %v913 = vshrl.u32 %v912, 7
    %v914 = vsub.s32 2, %v913
    %v915 = vrot.slane %v902, %v914
    %v951 = vunpack.c.l.b16 %v870
    %v952 = vunpack.c.h.b16 %v870
    %v953 = vunpack.c.l.b16 %v871
    %v954 = vunpack.c.l.b16 %v872
    %v955 = vunpack.c.h.b16 %v872
    %v956 = vunpack.c.l.b16 %v873
    %v957 = vunpack.c.l.b16 %v874
    %v958 = vunpack.c.h.b16 %v874
    %v959 = vunpack.c.l.b16 %v875
    %v960 = vunpack.c.l.b16 %v876
    %v961 = vunpack.c.h.b16 %v876
    %v962 = vunpack.c.l.b16 %v877
    %v963 = vunpack.c.l.b16 %v878
    %v964 = vunpack.c.h.b16 %v878
    %v965 = vunpack.c.l.b16 %v879
    %v966 = vunpack.c.l.b16 %v880
    %v967 = vunpack.c.h.b16 %v880
    %v968 = vunpack.c.l.b16 %v881
    %v969 = vunpack.c.l.b16 %v882
    %v970 = vunpack.c.h.b16 %v882
    %v971 = vunpack.c.l.b16 %v883
    %v972 = vunpack.c.l.b16 %v884
    %v973 = vunpack.c.h.b16 %v884
    %v974 = vunpack.c.l.b16 %v885
    %v975 = vunpack.c.l.b16 %v886
    %v976 = vunpack.c.h.b16 %v886
    %v977 = vunpack.c.l.b16 %v887
    %v978 = vunpack.c.l.b16 %v888
    %v979 = vunpack.c.h.b16 %v888
    %v980 = vunpack.c.l.b16 %v889
    %v981 = vunpack.c.l.b16 %v890
    %v982 = vunpack.c.h.b16 %v890
    %v983 = vunpack.c.l.b16 %v891
    %v984 = vunpack.c.l.b16 %v892
    %v985 = vunpack.c.h.b16 %v892
    %v986 = vunpack.c.l.b16 %v893
    %v987 = vunpack.c.l.b16 %v894
    %v988 = vunpack.c.h.b16 %v894
    %v989 = vunpack.c.l.b16 %v895
    %v990 = vunpack.c.l.b16 %v896
    %v991 = vunpack.c.h.b16 %v896
    %v992 = vunpack.c.l.b16 %v897
    %v993 = vunpack.c.l.b16 %v898
    %v994 = vunpack.c.h.b16 %v898
    %v995 = vunpack.c.l.b16 %v899
    %v996 = vunpack.c.l.b16 %v900
    %v997 = vunpack.c.h.b16 %v900
    %v998 = vunpack.c.l.b16 %v901
    %v999 = vpack.c.b16 %v954, %v951
    %v1000 = vpack.c.b16 %v955, %v952
    %v1001 = vpack.c.b16 %v956, %v953
    %v1002 = vpack.c.b16 %v960, %v957
    %v1003 = vpack.c.b16 %v961, %v958
    %v1004 = vpack.c.b16 %v962, %v959
    %v1005 = vpack.c.b16 %v966, %v963
    %v1006 = vpack.c.b16 %v967, %v964
    %v1007 = vpack.c.b16 %v968, %v965
    %v1008 = vpack.c.b16 %v972, %v969
    %v1009 = vpack.c.b16 %v973, %v970
    %v1010 = vpack.c.b16 %v974, %v971
    %v1011 = vpack.c.b16 %v978, %v975
    %v1012 = vpack.c.b16 %v979, %v976
    %v1013 = vpack.c.b16 %v980, %v977
    %v1014 = vpack.c.b16 %v984, %v981
    %v1015 = vpack.c.b16 %v985, %v982
    %v1016 = vpack.c.b16 %v986, %v983
    %v1017 = vpack.c.b16 %v990, %v987
    %v1018 = vpack.c.b16 %v991, %v988
    %v1019 = vpack.c.b16 %v992, %v989
    %v1020 = vpack.c.b16 %v996, %v993
    %v1021 = vpack.c.b16 %v997, %v994
    %v1022 = vpack.c.b16 %v998, %v995
    %1047 = vmatprep.subr.bf16.mxu0 %v1000
    %1048 = vmatpush1.bf16.msra.mxu0 %v999
    %1049 = vmatprep.subr.bf16.mxu0 %v1003
    %1050 = vmatpush1.bf16.msra.mxu0 %v1002
    %1051 = vmatprep.subr.bf16.mxu0 %v1006
    %1052 = vmatpush1.bf16.msra.mxu0 %v1005
    %1053 = vmatprep.subr.bf16.mxu0 %v1009
    %1054 = vmatpush1.bf16.msra.mxu0 %v1008
    %1055 = vmatprep.subr.bf16.mxu0 %v1012
    %1056 = vmatpush1.bf16.msra.mxu0 %v1011
    %1057 = vmatprep.subr.bf16.mxu0 %v1015
    %1058 = vmatpush1.bf16.msra.mxu0 %v1014
    %1059 = vmatprep.subr.bf16.mxu0 %v1018
    %1060 = vmatpush1.bf16.msra.mxu0 %v1017
    %1061 = vmatprep.subr.bf16.mxu0 %v1021
    %1062 = vmatpush1.bf16.msra.mxu0 %v1020
    %1063 = vmatprep.subr.bf16.mxu0 0
    %1064 = vmatpush1.bf16.msra.mxu0 0
    %1065 = vmatprep.subr.bf16.mxu0 0
    %1066 = vmatpush1.bf16.msra.mxu0 0
    %1067 = vmatprep.subr.bf16.mxu0 0
    %1068 = vmatpush1.bf16.msra.mxu0 0
    %1069 = vmatprep.subr.bf16.mxu0 0
    %1070 = vmatpush1.bf16.msra.mxu0 0
    %1071 = vmatprep.subr.bf16.mxu0 0
    %1072 = vmatpush1.bf16.msra.mxu0 0
    %1073 = vmatprep.subr.bf16.mxu0 0
    %1074 = vmatpush1.bf16.msra.mxu0 0
    %1075 = vmatprep.subr.bf16.mxu0 0
    %1076 = vmatpush1.bf16.msra.mxu0 0
    %1077 = vmatprep.subr.bf16.mxu0 0
    %1078 = vmatpush1.bf16.msra.mxu0 0
    %1079 = vmatprep.mubr.bf16.mxu0 0
    %1080 = vmatmul.mubr.bf16.gmra.mrb[0].mxu0 %v869
    %v1081 = vpop.f32.mrb[0].mxu0
    %v1082 = vadd.f32 %v907, %v1081
    %v1083 = vpop.f32.mrb[0].mxu0
    %v1084 = vadd.f32 %v911, %v1083
    %v1085 = vpop.f32.mrb[0].mxu0
    %v1086 = vpop.f32.mrb[0].mxu0
    %1087 = vdwg.mxu0
    %1088 = vmatprep.subr.bf16.mxu0 0
    %1089 = vmatpush1.bf16.msra.mxu0 %v1001
    %1090 = vmatprep.subr.bf16.mxu0 0
    %1091 = vmatpush1.bf16.msra.mxu0 %v1004
    %1092 = vmatprep.subr.bf16.mxu0 0
    %1093 = vmatpush1.bf16.msra.mxu0 %v1007
    %1094 = vmatprep.subr.bf16.mxu0 0
    %1095 = vmatpush1.bf16.msra.mxu0 %v1010
    %1096 = vmatprep.subr.bf16.mxu0 0
    %1097 = vmatpush1.bf16.msra.mxu0 %v1013
    %1098 = vmatprep.subr.bf16.mxu0 0
    %1099 = vmatpush1.bf16.msra.mxu0 %v1016
    %1100 = vmatprep.subr.bf16.mxu0 0
    %1101 = vmatpush1.bf16.msra.mxu0 %v1019
    %1102 = vmatprep.subr.bf16.mxu0 0
    %1103 = vmatpush1.bf16.msra.mxu0 %v1022
    %1104 = vmatprep.subr.bf16.mxu0 0
    %1105 = vmatpush1.bf16.msra.mxu0 0
    %1106 = vmatprep.subr.bf16.mxu0 0
    %1107 = vmatpush1.bf16.msra.mxu0 0
    %1108 = vmatprep.subr.bf16.mxu0 0
    %1109 = vmatpush1.bf16.msra.mxu0 0
    %1110 = vmatprep.subr.bf16.mxu0 0
    %1111 = vmatpush1.bf16.msra.mxu0 0
    %1112 = vmatprep.subr.bf16.mxu0 0
    %1113 = vmatpush1.bf16.msra.mxu0 0
    %1114 = vmatprep.subr.bf16.mxu0 0
    %1115 = vmatpush1.bf16.msra.mxu0 0
    %1116 = vmatprep.subr.bf16.mxu0 0
    %1117 = vmatpush1.bf16.msra.mxu0 0
    %1118 = vmatprep.subr.bf16.mxu0 0
    %1119 = vmatpush1.bf16.msra.mxu0 0
    %1120 = vmatprep.mubr.bf16.mxu0 0
    %1121 = vmatmul.mubr.bf16.gmra.mrb[0].mxu0 %v869
    %v1122 = vpop.f32.mrb[0].mxu0
    %v1123 = vadd.f32 %v915, %v1122
    %v1124 = vpop.f32.mrb[0].mxu0
    %v1125 = vpop.f32.mrb[0].mxu0
    %v1126 = vpop.f32.mrb[0].mxu0
    %1127 = vdwg.mxu0
    %v1128 = vadd.f32 %v866, %v1082
    %v1129 = vxor.u32 %v1128, 2147483648
    %v1130 = vmul.f32 %v1129, 1.442695
    %v1131 = vpow.pop %v1130
    %v1132 = vadd.f32 %v1131, 1.0
    %v1133 = vrcp.pop %v1132
    %v1134 = vmul.f32 1.0, %v1133
    %v1135 = vadd.f32 %v867, %v1084
    %v1136 = vxor.u32 %v1135, 2147483648
    %v1137 = vmul.f32 %v1136, 1.442695
    %v1138 = vpow.pop %v1137
    %v1139 = vadd.f32 %v1138, 1.0
    %v1140 = vrcp.pop %v1139
    %v1141 = vmul.f32 1.0, %v1140
    %v1142 = vmul.f32 %v1134, %v1123
    %v1143 = vadd.f32 %v868, %v1142
    %v1144 = vtanh.pop %v1143
    %v1145 = vsub.f32 %v860, %v1144
    %v1146 = vmul.f32 %v1141, %v1145
    %v1147 = vadd.f32 %v1144, %v1146
    %s1148 = scalar_lea.vmem [#allocation4], 16
    %1149 = vst [vmem:[%s1148] sm:$0xff] %v1147
    %s1150 = smul.u32 3, 3
    %s1151 = smul.addr %s1150, 8
    %s1152 = scalar_lea.vmem [#allocation3], %s1151
    %v1153 = vld [vmem:[%s1152] sm:$0xff]
    %v1154 = vld [vmem:[%s1152 + $0x8] sm:$0xff]
    %v1155 = vld [vmem:[%s1152 + $0x10] sm:$0xff]
    %v1156 = vpack.c.bf16 %v1147, %v1147
    %v1157 = vld [vmem:[#allocation5] sm:$0xff]
    %v1158 = vld [vmem:[#allocation5 + $0x8] sm:$0xf]
    %v1159 = vld [vmem:[#allocation5 + $0xc] sm:$0xff]
    %v1160 = vld [vmem:[#allocation5 + $0x14] sm:$0xf]
    %v1161 = vld [vmem:[#allocation5 + $0x18] sm:$0xff]
    %v1162 = vld [vmem:[#allocation5 + $0x20] sm:$0xf]
    %v1163 = vld [vmem:[#allocation5 + $0x24] sm:$0xff]
    %v1164 = vld [vmem:[#allocation5 + $0x2c] sm:$0xf]
    %v1165 = vld [vmem:[#allocation5 + $0x30] sm:$0xff]
    %v1166 = vld [vmem:[#allocation5 + $0x38] sm:$0xf]
    %v1167 = vld [vmem:[#allocation5 + $0x3c] sm:$0xff]
    %v1168 = vld [vmem:[#allocation5 + $0x44] sm:$0xf]
    %v1169 = vld [vmem:[#allocation5 + $0x48] sm:$0xff]
    %v1170 = vld [vmem:[#allocation5 + $0x50] sm:$0xf]
    %v1171 = vld [vmem:[#allocation5 + $0x54] sm:$0xff]
    %v1172 = vld [vmem:[#allocation5 + $0x5c] sm:$0xf]
    %v1173 = vld [vmem:[#allocation5 + $0x60] sm:$0xff]
    %v1174 = vld [vmem:[#allocation5 + $0x68] sm:$0xf]
    %v1175 = vld [vmem:[#allocation5 + $0x6c] sm:$0xff]
    %v1176 = vld [vmem:[#allocation5 + $0x74] sm:$0xf]
    %v1177 = vld [vmem:[#allocation5 + $0x78] sm:$0xff]
    %v1178 = vld [vmem:[#allocation5 + $0x80] sm:$0xf]
    %v1179 = vld [vmem:[#allocation5 + $0x84] sm:$0xff]
    %v1180 = vld [vmem:[#allocation5 + $0x8c] sm:$0xf]
    %v1181 = vld [vmem:[#allocation5 + $0x90] sm:$0xff]
    %v1182 = vld [vmem:[#allocation5 + $0x98] sm:$0xf]
    %v1183 = vld [vmem:[#allocation5 + $0x9c] sm:$0xff]
    %v1184 = vld [vmem:[#allocation5 + $0xa4] sm:$0xf]
    %v1185 = vld [vmem:[#allocation5 + $0xa8] sm:$0xff]
    %v1186 = vld [vmem:[#allocation5 + $0xb0] sm:$0xf]
    %v1187 = vld [vmem:[#allocation5 + $0xb4] sm:$0xff]
    %v1188 = vld [vmem:[#allocation5 + $0xbc] sm:$0xf]
    %v1189 = vld [vmem:[%s6] sm:$0x7]
    %v1191 = vlaneseq
    %v1192 = vshrl.u32 %v1191, 7
    %v1193 = vsub.s32 0, %v1192
    %v1194 = vrot.slane %v1189, %v1193
    %v1195 = vlaneseq
    %v1196 = vshrl.u32 %v1195, 7
    %v1197 = vsub.s32 1, %v1196
    %v1198 = vrot.slane %v1189, %v1197
    %v1199 = vlaneseq
    %v1200 = vshrl.u32 %v1199, 7
    %v1201 = vsub.s32 2, %v1200
    %v1202 = vrot.slane %v1189, %v1201
    %v1238 = vunpack.c.l.b16 %v1157
    %v1239 = vunpack.c.h.b16 %v1157
    %v1240 = vunpack.c.l.b16 %v1158
    %v1241 = vunpack.c.l.b16 %v1159
    %v1242 = vunpack.c.h.b16 %v1159
    %v1243 = vunpack.c.l.b16 %v1160
    %v1244 = vunpack.c.l.b16 %v1161
    %v1245 = vunpack.c.h.b16 %v1161
    %v1246 = vunpack.c.l.b16 %v1162
    %v1247 = vunpack.c.l.b16 %v1163
    %v1248 = vunpack.c.h.b16 %v1163
    %v1249 = vunpack.c.l.b16 %v1164
    %v1250 = vunpack.c.l.b16 %v1165
    %v1251 = vunpack.c.h.b16 %v1165
    %v1252 = vunpack.c.l.b16 %v1166
    %v1253 = vunpack.c.l.b16 %v1167
    %v1254 = vunpack.c.h.b16 %v1167
    %v1255 = vunpack.c.l.b16 %v1168
    %v1256 = vunpack.c.l.b16 %v1169
    %v1257 = vunpack.c.h.b16 %v1169
    %v1258 = vunpack.c.l.b16 %v1170
    %v1259 = vunpack.c.l.b16 %v1171
    %v1260 = vunpack.c.h.b16 %v1171
    %v1261 = vunpack.c.l.b16 %v1172
    %v1262 = vunpack.c.l.b16 %v1173
    %v1263 = vunpack.c.h.b16 %v1173
    %v1264 = vunpack.c.l.b16 %v1174
    %v1265 = vunpack.c.l.b16 %v1175
    %v1266 = vunpack.c.h.b16 %v1175
    %v1267 = vunpack.c.l.b16 %v1176
    %v1268 = vunpack.c.l.b16 %v1177
    %v1269 = vunpack.c.h.b16 %v1177
    %v1270 = vunpack.c.l.b16 %v1178
    %v1271 = vunpack.c.l.b16 %v1179
    %v1272 = vunpack.c.h.b16 %v1179
    %v1273 = vunpack.c.l.b16 %v1180
    %v1274 = vunpack.c.l.b16 %v1181
    %v1275 = vunpack.c.h.b16 %v1181
    %v1276 = vunpack.c.l.b16 %v1182
    %v1277 = vunpack.c.l.b16 %v1183
    %v1278 = vunpack.c.h.b16 %v1183
    %v1279 = vunpack.c.l.b16 %v1184
    %v1280 = vunpack.c.l.b16 %v1185
    %v1281 = vunpack.c.h.b16 %v1185
    %v1282 = vunpack.c.l.b16 %v1186
    %v1283 = vunpack.c.l.b16 %v1187
    %v1284 = vunpack.c.h.b16 %v1187
    %v1285 = vunpack.c.l.b16 %v1188
    %v1286 = vpack.c.b16 %v1241, %v1238
    %v1287 = vpack.c.b16 %v1242, %v1239
    %v1288 = vpack.c.b16 %v1243, %v1240
    %v1289 = vpack.c.b16 %v1247, %v1244
    %v1290 = vpack.c.b16 %v1248, %v1245
    %v1291 = vpack.c.b16 %v1249, %v1246
    %v1292 = vpack.c.b16 %v1253, %v1250
    %v1293 = vpack.c.b16 %v1254, %v1251
    %v1294 = vpack.c.b16 %v1255, %v1252
    %v1295 = vpack.c.b16 %v1259, %v1256
    %v1296 = vpack.c.b16 %v1260, %v1257
    %v1297 = vpack.c.b16 %v1261, %v1258
    %v1298 = vpack.c.b16 %v1265, %v1262
    %v1299 = vpack.c.b16 %v1266, %v1263
    %v1300 = vpack.c.b16 %v1267, %v1264
    %v1301 = vpack.c.b16 %v1271, %v1268
    %v1302 = vpack.c.b16 %v1272, %v1269
    %v1303 = vpack.c.b16 %v1273, %v1270
    %v1304 = vpack.c.b16 %v1277, %v1274
    %v1305 = vpack.c.b16 %v1278, %v1275
    %v1306 = vpack.c.b16 %v1279, %v1276
    %v1307 = vpack.c.b16 %v1283, %v1280
    %v1308 = vpack.c.b16 %v1284, %v1281
    %v1309 = vpack.c.b16 %v1285, %v1282
    %1334 = vmatprep.subr.bf16.mxu0 %v1287
    %1335 = vmatpush1.bf16.msra.mxu0 %v1286
    %1336 = vmatprep.subr.bf16.mxu0 %v1290
    %1337 = vmatpush1.bf16.msra.mxu0 %v1289
    %1338 = vmatprep.subr.bf16.mxu0 %v1293
    %1339 = vmatpush1.bf16.msra.mxu0 %v1292
    %1340 = vmatprep.subr.bf16.mxu0 %v1296
    %1341 = vmatpush1.bf16.msra.mxu0 %v1295
    %1342 = vmatprep.subr.bf16.mxu0 %v1299
    %1343 = vmatpush1.bf16.msra.mxu0 %v1298
    %1344 = vmatprep.subr.bf16.mxu0 %v1302
    %1345 = vmatpush1.bf16.msra.mxu0 %v1301
    %1346 = vmatprep.subr.bf16.mxu0 %v1305
    %1347 = vmatpush1.bf16.msra.mxu0 %v1304
    %1348 = vmatprep.subr.bf16.mxu0 %v1308
    %1349 = vmatpush1.bf16.msra.mxu0 %v1307
    %1350 = vmatprep.subr.bf16.mxu0 0
    %1351 = vmatpush1.bf16.msra.mxu0 0
    %1352 = vmatprep.subr.bf16.mxu0 0
    %1353 = vmatpush1.bf16.msra.mxu0 0
    %1354 = vmatprep.subr.bf16.mxu0 0
    %1355 = vmatpush1.bf16.msra.mxu0 0
    %1356 = vmatprep.subr.bf16.mxu0 0
    %1357 = vmatpush1.bf16.msra.mxu0 0
    %1358 = vmatprep.subr.bf16.mxu0 0
    %1359 = vmatpush1.bf16.msra.mxu0 0
    %1360 = vmatprep.subr.bf16.mxu0 0
    %1361 = vmatpush1.bf16.msra.mxu0 0
    %1362 = vmatprep.subr.bf16.mxu0 0
    %1363 = vmatpush1.bf16.msra.mxu0 0
    %1364 = vmatprep.subr.bf16.mxu0 0
    %1365 = vmatpush1.bf16.msra.mxu0 0
    %1366 = vmatprep.mubr.bf16.mxu0 0
    %1367 = vmatmul.mubr.bf16.gmra.mrb[0].mxu0 %v1156
    %v1368 = vpop.f32.mrb[0].mxu0
    %v1369 = vadd.f32 %v1194, %v1368
    %v1370 = vpop.f32.mrb[0].mxu0
    %v1371 = vadd.f32 %v1198, %v1370
    %v1372 = vpop.f32.mrb[0].mxu0
    %v1373 = vpop.f32.mrb[0].mxu0
    %1374 = vdwg.mxu0
    %1375 = vmatprep.subr.bf16.mxu0 0
    %1376 = vmatpush1.bf16.msra.mxu0 %v1288
    %1377 = vmatprep.subr.bf16.mxu0 0
    %1378 = vmatpush1.bf16.msra.mxu0 %v1291
    %1379 = vmatprep.subr.bf16.mxu0 0
    %1380 = vmatpush1.bf16.msra.mxu0 %v1294
    %1381 = vmatprep.subr.bf16.mxu0 0
    %1382 = vmatpush1.bf16.msra.mxu0 %v1297
    %1383 = vmatprep.subr.bf16.mxu0 0
    %1384 = vmatpush1.bf16.msra.mxu0 %v1300
    %1385 = vmatprep.subr.bf16.mxu0 0
    %1386 = vmatpush1.bf16.msra.mxu0 %v1303
    %1387 = vmatprep.subr.bf16.mxu0 0
    %1388 = vmatpush1.bf16.msra.mxu0 %v1306
    %1389 = vmatprep.subr.bf16.mxu0 0
    %1390 = vmatpush1.bf16.msra.mxu0 %v1309
    %1391 = vmatprep.subr.bf16.mxu0 0
    %1392 = vmatpush1.bf16.msra.mxu0 0
    %1393 = vmatprep.subr.bf16.mxu0 0
    %1394 = vmatpush1.bf16.msra.mxu0 0
    %1395 = vmatprep.subr.bf16.mxu0 0
    %1396 = vmatpush1.bf16.msra.mxu0 0
    %1397 = vmatprep.subr.bf16.mxu0 0
    %1398 = vmatpush1.bf16.msra.mxu0 0
    %1399 = vmatprep.subr.bf16.mxu0 0
    %1400 = vmatpush1.bf16.msra.mxu0 0
    %1401 = vmatprep.subr.bf16.mxu0 0
    %1402 = vmatpush1.bf16.msra.mxu0 0
    %1403 = vmatprep.subr.bf16.mxu0 0
    %1404 = vmatpush1.bf16.msra.mxu0 0
    %1405 = vmatprep.subr.bf16.mxu0 0
    %1406 = vmatpush1.bf16.msra.mxu0 0
    %1407 = vmatprep.mubr.bf16.mxu0 0
    %1408 = vmatmul.mubr.bf16.gmra.mrb[0].mxu0 %v1156
    %v1409 = vpop.f32.mrb[0].mxu0
    %v1410 = vadd.f32 %v1202, %v1409
    %v1411 = vpop.f32.mrb[0].mxu0
    %v1412 = vpop.f32.mrb[0].mxu0
    %v1413 = vpop.f32.mrb[0].mxu0
    %1414 = vdwg.mxu0
    %v1415 = vadd.f32 %v1153, %v1369
    %v1416 = vxor.u32 %v1415, 2147483648
    %v1417 = vmul.f32 %v1416, 1.442695
    %v1418 = vpow.pop %v1417
    %v1419 = vadd.f32 %v1418, 1.0
    %v1420 = vrcp.pop %v1419
    %v1421 = vmul.f32 1.0, %v1420
    %v1422 = vadd.f32 %v1154, %v1371
    %v1423 = vxor.u32 %v1422, 2147483648
    %v1424 = vmul.f32 %v1423, 1.442695
    %v1425 = vpow.pop %v1424
    %v1426 = vadd.f32 %v1425, 1.0
    %v1427 = vrcp.pop %v1426
    %v1428 = vmul.f32 1.0, %v1427
    %v1429 = vmul.f32 %v1421, %v1410
    %v1430 = vadd.f32 %v1155, %v1429
    %v1431 = vtanh.pop %v1430
    %v1432 = vsub.f32 %v1147, %v1431
    %v1433 = vmul.f32 %v1428, %v1432
    %v1434 = vadd.f32 %v1431, %v1433
    %s1435 = scalar_lea.vmem [#allocation4], 24
    %1436 = vst [vmem:[%s1435] sm:$0xff] %v1434
    %s1437 = smul.u32 4, 3
    %s1438 = smul.addr %s1437, 8
    %s1439 = scalar_lea.vmem [#allocation3], %s1438
    %v1440 = vld [vmem:[%s1439] sm:$0xff]
    %v1441 = vld [vmem:[%s1439 + $0x8] sm:$0xff]
    %v1442 = vld [vmem:[%s1439 + $0x10] sm:$0xff]
    %v1443 = vpack.c.bf16 %v1434, %v1434
    %v1444 = vld [vmem:[#allocation5] sm:$0xff]
    %v1445 = vld [vmem:[#allocation5 + $0x8] sm:$0xf]
    %v1446 = vld [vmem:[#allocation5 + $0xc] sm:$0xff]
    %v1447 = vld [vmem:[#allocation5 + $0x14] sm:$0xf]
    %v1448 = vld [vmem:[#allocation5 + $0x18] sm:$0xff]
    %v1449 = vld [vmem:[#allocation5 + $0x20] sm:$0xf]
    %v1450 = vld [vmem:[#allocation5 + $0x24] sm:$0xff]
    %v1451 = vld [vmem:[#allocation5 + $0x2c] sm:$0xf]
    %v1452 = vld [vmem:[#allocation5 + $0x30] sm:$0xff]
    %v1453 = vld [vmem:[#allocation5 + $0x38] sm:$0xf]
    %v1454 = vld [vmem:[#allocation5 + $0x3c] sm:$0xff]
    %v1455 = vld [vmem:[#allocation5 + $0x44] sm:$0xf]
    %v1456 = vld [vmem:[#allocation5 + $0x48] sm:$0xff]
    %v1457 = vld [vmem:[#allocation5 + $0x50] sm:$0xf]
    %v1458 = vld [vmem:[#allocation5 + $0x54] sm:$0xff]
    %v1459 = vld [vmem:[#allocation5 + $0x5c] sm:$0xf]
    %v1460 = vld [vmem:[#allocation5 + $0x60] sm:$0xff]
    %v1461 = vld [vmem:[#allocation5 + $0x68] sm:$0xf]
    %v1462 = vld [vmem:[#allocation5 + $0x6c] sm:$0xff]
    %v1463 = vld [vmem:[#allocation5 + $0x74] sm:$0xf]
    %v1464 = vld [vmem:[#allocation5 + $0x78] sm:$0xff]
    %v1465 = vld [vmem:[#allocation5 + $0x80] sm:$0xf]
    %v1466 = vld [vmem:[#allocation5 + $0x84] sm:$0xff]
    %v1467 = vld [vmem:[#allocation5 + $0x8c] sm:$0xf]
    %v1468 = vld [vmem:[#allocation5 + $0x90] sm:$0xff]
    %v1469 = vld [vmem:[#allocation5 + $0x98] sm:$0xf]
    %v1470 = vld [vmem:[#allocation5 + $0x9c] sm:$0xff]
    %v1471 = vld [vmem:[#allocation5 + $0xa4] sm:$0xf]
    %v1472 = vld [vmem:[#allocation5 + $0xa8] sm:$0xff]
    %v1473 = vld [vmem:[#allocation5 + $0xb0] sm:$0xf]
    %v1474 = vld [vmem:[#allocation5 + $0xb4] sm:$0xff]
    %v1475 = vld [vmem:[#allocation5 + $0xbc] sm:$0xf]
    %v1476 = vld [vmem:[%s6] sm:$0x7]
    %v1478 = vlaneseq
    %v1479 = vshrl.u32 %v1478, 7
    %v1480 = vsub.s32 0, %v1479
    %v1481 = vrot.slane %v1476, %v1480
    %v1482 = vlaneseq
    %v1483 = vshrl.u32 %v1482, 7
    %v1484 = vsub.s32 1, %v1483
    %v1485 = vrot.slane %v1476, %v1484
    %v1486 = vlaneseq
    %v1487 = vshrl.u32 %v1486, 7
    %v1488 = vsub.s32 2, %v1487
    %v1489 = vrot.slane %v1476, %v1488
    %v1525 = vunpack.c.l.b16 %v1444
    %v1526 = vunpack.c.h.b16 %v1444
    %v1527 = vunpack.c.l.b16 %v1445
    %v1528 = vunpack.c.l.b16 %v1446
    %v1529 = vunpack.c.h.b16 %v1446
    %v1530 = vunpack.c.l.b16 %v1447
    %v1531 = vunpack.c.l.b16 %v1448
    %v1532 = vunpack.c.h.b16 %v1448
    %v1533 = vunpack.c.l.b16 %v1449
    %v1534 = vunpack.c.l.b16 %v1450
    %v1535 = vunpack.c.h.b16 %v1450
    %v1536 = vunpack.c.l.b16 %v1451
    %v1537 = vunpack.c.l.b16 %v1452
    %v1538 = vunpack.c.h.b16 %v1452
    %v1539 = vunpack.c.l.b16 %v1453
    %v1540 = vunpack.c.l.b16 %v1454
    %v1541 = vunpack.c.h.b16 %v1454
    %v1542 = vunpack.c.l.b16 %v1455
    %v1543 = vunpack.c.l.b16 %v1456
    %v1544 = vunpack.c.h.b16 %v1456
    %v1545 = vunpack.c.l.b16 %v1457
    %v1546 = vunpack.c.l.b16 %v1458
    %v1547 = vunpack.c.h.b16 %v1458
    %v1548 = vunpack.c.l.b16 %v1459
    %v1549 = vunpack.c.l.b16 %v1460
    %v1550 = vunpack.c.h.b16 %v1460
    %v1551 = vunpack.c.l.b16 %v1461
    %v1552 = vunpack.c.l.b16 %v1462
    %v1553 = vunpack.c.h.b16 %v1462
    %v1554 = vunpack.c.l.b16 %v1463
    %v1555 = vunpack.c.l.b16 %v1464
    %v1556 = vunpack.c.h.b16 %v1464
    %v1557 = vunpack.c.l.b16 %v1465
    %v1558 = vunpack.c.l.b16 %v1466
    %v1559 = vunpack.c.h.b16 %v1466
    %v1560 = vunpack.c.l.b16 %v1467
    %v1561 = vunpack.c.l.b16 %v1468
    %v1562 = vunpack.c.h.b16 %v1468
    %v1563 = vunpack.c.l.b16 %v1469
    %v1564 = vunpack.c.l.b16 %v1470
    %v1565 = vunpack.c.h.b16 %v1470
    %v1566 = vunpack.c.l.b16 %v1471
    %v1567 = vunpack.c.l.b16 %v1472
    %v1568 = vunpack.c.h.b16 %v1472
    %v1569 = vunpack.c.l.b16 %v1473
    %v1570 = vunpack.c.l.b16 %v1474
    %v1571 = vunpack.c.h.b16 %v1474
    %v1572 = vunpack.c.l.b16 %v1475
    %v1573 = vpack.c.b16 %v1528, %v1525
    %v1574 = vpack.c.b16 %v1529, %v1526
    %v1575 = vpack.c.b16 %v1530, %v1527
    %v1576 = vpack.c.b16 %v1534, %v1531
    %v1577 = vpack.c.b16 %v1535, %v1532
    %v1578 = vpack.c.b16 %v1536, %v1533
    %v1579 = vpack.c.b16 %v1540, %v1537
    %v1580 = vpack.c.b16 %v1541, %v1538
    %v1581 = vpack.c.b16 %v1542, %v1539
    %v1582 = vpack.c.b16 %v1546, %v1543
    %v1583 = vpack.c.b16 %v1547, %v1544
    %v1584 = vpack.c.b16 %v1548, %v1545
    %v1585 = vpack.c.b16 %v1552, %v1549
    %v1586 = vpack.c.b16 %v1553, %v1550
    %v1587 = vpack.c.b16 %v1554, %v1551
    %v1588 = vpack.c.b16 %v1558, %v1555
    %v1589 = vpack.c.b16 %v1559, %v1556
    %v1590 = vpack.c.b16 %v1560, %v1557
    %v1591 = vpack.c.b16 %v1564, %v1561
    %v1592 = vpack.c.b16 %v1565, %v1562
    %v1593 = vpack.c.b16 %v1566, %v1563
    %v1594 = vpack.c.b16 %v1570, %v1567
    %v1595 = vpack.c.b16 %v1571, %v1568
    %v1596 = vpack.c.b16 %v1572, %v1569
    %1621 = vmatprep.subr.bf16.mxu0 %v1574
    %1622 = vmatpush1.bf16.msra.mxu0 %v1573
    %1623 = vmatprep.subr.bf16.mxu0 %v1577
    %1624 = vmatpush1.bf16.msra.mxu0 %v1576
    %1625 = vmatprep.subr.bf16.mxu0 %v1580
    %1626 = vmatpush1.bf16.msra.mxu0 %v1579
    %1627 = vmatprep.subr.bf16.mxu0 %v1583
    %1628 = vmatpush1.bf16.msra.mxu0 %v1582
    %1629 = vmatprep.subr.bf16.mxu0 %v1586
    %1630 = vmatpush1.bf16.msra.mxu0 %v1585
    %1631 = vmatprep.subr.bf16.mxu0 %v1589
    %1632 = vmatpush1.bf16.msra.mxu0 %v1588
    %1633 = vmatprep.subr.bf16.mxu0 %v1592
    %1634 = vmatpush1.bf16.msra.mxu0 %v1591
    %1635 = vmatprep.subr.bf16.mxu0 %v1595
    %1636 = vmatpush1.bf16.msra.mxu0 %v1594
    %1637 = vmatprep.subr.bf16.mxu0 0
    %1638 = vmatpush1.bf16.msra.mxu0 0
    %1639 = vmatprep.subr.bf16.mxu0 0
    %1640 = vmatpush1.bf16.msra.mxu0 0
    %1641 = vmatprep.subr.bf16.mxu0 0
    %1642 = vmatpush1.bf16.msra.mxu0 0
    %1643 = vmatprep.subr.bf16.mxu0 0
    %1644 = vmatpush1.bf16.msra.mxu0 0
    %1645 = vmatprep.subr.bf16.mxu0 0
    %1646 = vmatpush1.bf16.msra.mxu0 0
    %1647 = vmatprep.subr.bf16.mxu0 0
    %1648 = vmatpush1.bf16.msra.mxu0 0
    %1649 = vmatprep.subr.bf16.mxu0 0
    %1650 = vmatpush1.bf16.msra.mxu0 0
    %1651 = vmatprep.subr.bf16.mxu0 0
    %1652 = vmatpush1.bf16.msra.mxu0 0
    %1653 = vmatprep.mubr.bf16.mxu0 0
    %1654 = vmatmul.mubr.bf16.gmra.mrb[0].mxu0 %v1443
    %v1655 = vpop.f32.mrb[0].mxu0
    %v1656 = vadd.f32 %v1481, %v1655
    %v1657 = vpop.f32.mrb[0].mxu0
    %v1658 = vadd.f32 %v1485, %v1657
    %v1659 = vpop.f32.mrb[0].mxu0
    %v1660 = vpop.f32.mrb[0].mxu0
    %1661 = vdwg.mxu0
    %1662 = vmatprep.subr.bf16.mxu0 0
    %1663 = vmatpush1.bf16.msra.mxu0 %v1575
    %1664 = vmatprep.subr.bf16.mxu0 0
    %1665 = vmatpush1.bf16.msra.mxu0 %v1578
    %1666 = vmatprep.subr.bf16.mxu0 0
    %1667 = vmatpush1.bf16.msra.mxu0 %v1581
    %1668 = vmatprep.subr.bf16.mxu0 0
    %1669 = vmatpush1.bf16.msra.mxu0 %v1584
    %1670 = vmatprep.subr.bf16.mxu0 0
    %1671 = vmatpush1.bf16.msra.mxu0 %v1587
    %1672 = vmatprep.subr.bf16.mxu0 0
    %1673 = vmatpush1.bf16.msra.mxu0 %v1590
    %1674 = vmatprep.subr.bf16.mxu0 0
    %1675 = vmatpush1.bf16.msra.mxu0 %v1593
    %1676 = vmatprep.subr.bf16.mxu0 0
    %1677 = vmatpush1.bf16.msra.mxu0 %v1596
    %1678 = vmatprep.subr.bf16.mxu0 0
    %1679 = vmatpush1.bf16.msra.mxu0 0
    %1680 = vmatprep.subr.bf16.mxu0 0
    %1681 = vmatpush1.bf16.msra.mxu0 0
    %1682 = vmatprep.subr.bf16.mxu0 0
    %1683 = vmatpush1.bf16.msra.mxu0 0
    %1684 = vmatprep.subr.bf16.mxu0 0
    %1685 = vmatpush1.bf16.msra.mxu0 0
    %1686 = vmatprep.subr.bf16.mxu0 0
    %1687 = vmatpush1.bf16.msra.mxu0 0
    %1688 = vmatprep.subr.bf16.mxu0 0
    %1689 = vmatpush1.bf16.msra.mxu0 0
    %1690 = vmatprep.subr.bf16.mxu0 0
    %1691 = vmatpush1.bf16.msra.mxu0 0
    %1692 = vmatprep.subr.bf16.mxu0 0
    %1693 = vmatpush1.bf16.msra.mxu0 0
    %1694 = vmatprep.mubr.bf16.mxu0 0
    %1695 = vmatmul.mubr.bf16.gmra.mrb[0].mxu0 %v1443
    %v1696 = vpop.f32.mrb[0].mxu0
    %v1697 = vadd.f32 %v1489, %v1696
    %v1698 = vpop.f32.mrb[0].mxu0
    %v1699 = vpop.f32.mrb[0].mxu0
    %v1700 = vpop.f32.mrb[0].mxu0
    %1701 = vdwg.mxu0
    %v1702 = vadd.f32 %v1440, %v1656
    %v1703 = vxor.u32 %v1702, 2147483648
    %v1704 = vmul.f32 %v1703, 1.442695
    %v1705 = vpow.pop %v1704
    %v1706 = vadd.f32 %v1705, 1.0
    %v1707 = vrcp.pop %v1706
    %v1708 = vmul.f32 1.0, %v1707
    %v1709 = vadd.f32 %v1441, %v1658
    %v1710 = vxor.u32 %v1709, 2147483648
    %v1711 = vmul.f32 %v1710, 1.442695
    %v1712 = vpow.pop %v1711
    %v1713 = vadd.f32 %v1712, 1.0
    %v1714 = vrcp.pop %v1713
    %v1715 = vmul.f32 1.0, %v1714
    %v1716 = vmul.f32 %v1708, %v1697
    %v1717 = vadd.f32 %v1442, %v1716
    %v1718 = vtanh.pop %v1717
    %v1719 = vsub.f32 %v1434, %v1718
    %v1720 = vmul.f32 %v1715, %v1719
    %v1721 = vadd.f32 %v1718, %v1720
    %s1722 = scalar_lea.vmem [#allocation4], 32
    %1723 = vst [vmem:[%s1722] sm:$0xff] %v1721
    %s1724 = smul.u32 5, 3
    %s1725 = smul.addr %s1724, 8
    %s1726 = scalar_lea.vmem [#allocation3], %s1725
    %v1727 = vld [vmem:[%s1726] sm:$0xff]
    %v1728 = vld [vmem:[%s1726 + $0x8] sm:$0xff]
    %v1729 = vld [vmem:[%s1726 + $0x10] sm:$0xff]
    %v1730 = vpack.c.bf16 %v1721, %v1721
    %v1731 = vld [vmem:[#allocation5] sm:$0xff]
    %v1732 = vld [vmem:[#allocation5 + $0x8] sm:$0xf]
    %v1733 = vld [vmem:[#allocation5 + $0xc] sm:$0xff]
    %v1734 = vld [vmem:[#allocation5 + $0x14] sm:$0xf]
    %v1735 = vld [vmem:[#allocation5 + $0x18] sm:$0xff]
    %v1736 = vld [vmem:[#allocation5 + $0x20] sm:$0xf]
    %v1737 = vld [vmem:[#allocation5 + $0x24] sm:$0xff]
    %v1738 = vld [vmem:[#allocation5 + $0x2c] sm:$0xf]
    %v1739 = vld [vmem:[#allocation5 + $0x30] sm:$0xff]
    %v1740 = vld [vmem:[#allocation5 + $0x38] sm:$0xf]
    %v1741 = vld [vmem:[#allocation5 + $0x3c] sm:$0xff]
    %v1742 = vld [vmem:[#allocation5 + $0x44] sm:$0xf]
    %v1743 = vld [vmem:[#allocation5 + $0x48] sm:$0xff]
    %v1744 = vld [vmem:[#allocation5 + $0x50] sm:$0xf]
    %v1745 = vld [vmem:[#allocation5 + $0x54] sm:$0xff]
    %v1746 = vld [vmem:[#allocation5 + $0x5c] sm:$0xf]
    %v1747 = vld [vmem:[#allocation5 + $0x60] sm:$0xff]
    %v1748 = vld [vmem:[#allocation5 + $0x68] sm:$0xf]
    %v1749 = vld [vmem:[#allocation5 + $0x6c] sm:$0xff]
    %v1750 = vld [vmem:[#allocation5 + $0x74] sm:$0xf]
    %v1751 = vld [vmem:[#allocation5 + $0x78] sm:$0xff]
    %v1752 = vld [vmem:[#allocation5 + $0x80] sm:$0xf]
    %v1753 = vld [vmem:[#allocation5 + $0x84] sm:$0xff]
    %v1754 = vld [vmem:[#allocation5 + $0x8c] sm:$0xf]
    %v1755 = vld [vmem:[#allocation5 + $0x90] sm:$0xff]
    %v1756 = vld [vmem:[#allocation5 + $0x98] sm:$0xf]
    %v1757 = vld [vmem:[#allocation5 + $0x9c] sm:$0xff]
    %v1758 = vld [vmem:[#allocation5 + $0xa4] sm:$0xf]
    %v1759 = vld [vmem:[#allocation5 + $0xa8] sm:$0xff]
    %v1760 = vld [vmem:[#allocation5 + $0xb0] sm:$0xf]
    %v1761 = vld [vmem:[#allocation5 + $0xb4] sm:$0xff]
    %v1762 = vld [vmem:[#allocation5 + $0xbc] sm:$0xf]
    %v1763 = vld [vmem:[%s6] sm:$0x7]
    %v1765 = vlaneseq
    %v1766 = vshrl.u32 %v1765, 7
    %v1767 = vsub.s32 0, %v1766
    %v1768 = vrot.slane %v1763, %v1767
    %v1769 = vlaneseq
    %v1770 = vshrl.u32 %v1769, 7
    %v1771 = vsub.s32 1, %v1770
    %v1772 = vrot.slane %v1763, %v1771
    %v1773 = vlaneseq
    %v1774 = vshrl.u32 %v1773, 7
    %v1775 = vsub.s32 2, %v1774
    %v1776 = vrot.slane %v1763, %v1775
    %v1812 = vunpack.c.l.b16 %v1731
    %v1813 = vunpack.c.h.b16 %v1731
    %v1814 = vunpack.c.l.b16 %v1732
    %v1815 = vunpack.c.l.b16 %v1733
    %v1816 = vunpack.c.h.b16 %v1733
    %v1817 = vunpack.c.l.b16 %v1734
    %v1818 = vunpack.c.l.b16 %v1735
    %v1819 = vunpack.c.h.b16 %v1735
    %v1820 = vunpack.c.l.b16 %v1736
    %v1821 = vunpack.c.l.b16 %v1737
    %v1822 = vunpack.c.h.b16 %v1737
    %v1823 = vunpack.c.l.b16 %v1738
    %v1824 = vunpack.c.l.b16 %v1739
    %v1825 = vunpack.c.h.b16 %v1739
    %v1826 = vunpack.c.l.b16 %v1740
    %v1827 = vunpack.c.l.b16 %v1741
    %v1828 = vunpack.c.h.b16 %v1741
    %v1829 = vunpack.c.l.b16 %v1742
    %v1830 = vunpack.c.l.b16 %v1743
    %v1831 = vunpack.c.h.b16 %v1743
    %v1832 = vunpack.c.l.b16 %v1744
    %v1833 = vunpack.c.l.b16 %v1745
    %v1834 = vunpack.c.h.b16 %v1745
    %v1835 = vunpack.c.l.b16 %v1746
    %v1836 = vunpack.c.l.b16 %v1747
    %v1837 = vunpack.c.h.b16 %v1747
    %v1838 = vunpack.c.l.b16 %v1748
    %v1839 = vunpack.c.l.b16 %v1749
    %v1840 = vunpack.c.h.b16 %v1749
    %v1841 = vunpack.c.l.b16 %v1750
    %v1842 = vunpack.c.l.b16 %v1751
    %v1843 = vunpack.c.h.b16 %v1751
    %v1844 = vunpack.c.l.b16 %v1752
    %v1845 = vunpack.c.l.b16 %v1753
    %v1846 = vunpack.c.h.b16 %v1753
    %v1847 = vunpack.c.l.b16 %v1754
    %v1848 = vunpack.c.l.b16 %v1755
    %v1849 = vunpack.c.h.b16 %v1755
    %v1850 = vunpack.c.l.b16 %v1756
    %v1851 = vunpack.c.l.b16 %v1757
    %v1852 = vunpack.c.h.b16 %v1757
    %v1853 = vunpack.c.l.b16 %v1758
    %v1854 = vunpack.c.l.b16 %v1759
    %v1855 = vunpack.c.h.b16 %v1759
    %v1856 = vunpack.c.l.b16 %v1760
    %v1857 = vunpack.c.l.b16 %v1761
    %v1858 = vunpack.c.h.b16 %v1761
    %v1859 = vunpack.c.l.b16 %v1762
    %v1860 = vpack.c.b16 %v1815, %v1812
    %v1861 = vpack.c.b16 %v1816, %v1813
    %v1862 = vpack.c.b16 %v1817, %v1814
    %v1863 = vpack.c.b16 %v1821, %v1818
    %v1864 = vpack.c.b16 %v1822, %v1819
    %v1865 = vpack.c.b16 %v1823, %v1820
    %v1866 = vpack.c.b16 %v1827, %v1824
    %v1867 = vpack.c.b16 %v1828, %v1825
    %v1868 = vpack.c.b16 %v1829, %v1826
    %v1869 = vpack.c.b16 %v1833, %v1830
    %v1870 = vpack.c.b16 %v1834, %v1831
    %v1871 = vpack.c.b16 %v1835, %v1832
    %v1872 = vpack.c.b16 %v1839, %v1836
    %v1873 = vpack.c.b16 %v1840, %v1837
    %v1874 = vpack.c.b16 %v1841, %v1838
    %v1875 = vpack.c.b16 %v1845, %v1842
    %v1876 = vpack.c.b16 %v1846, %v1843
    %v1877 = vpack.c.b16 %v1847, %v1844
    %v1878 = vpack.c.b16 %v1851, %v1848
    %v1879 = vpack.c.b16 %v1852, %v1849
    %v1880 = vpack.c.b16 %v1853, %v1850
    %v1881 = vpack.c.b16 %v1857, %v1854
    %v1882 = vpack.c.b16 %v1858, %v1855
    %v1883 = vpack.c.b16 %v1859, %v1856
    %1908 = vmatprep.subr.bf16.mxu0 %v1861
    %1909 = vmatpush1.bf16.msra.mxu0 %v1860
    %1910 = vmatprep.subr.bf16.mxu0 %v1864
    %1911 = vmatpush1.bf16.msra.mxu0 %v1863
    %1912 = vmatprep.subr.bf16.mxu0 %v1867
    %1913 = vmatpush1.bf16.msra.mxu0 %v1866
    %1914 = vmatprep.subr.bf16.mxu0 %v1870
    %1915 = vmatpush1.bf16.msra.mxu0 %v1869
    %1916 = vmatprep.subr.bf16.mxu0 %v1873
    %1917 = vmatpush1.bf16.msra.mxu0 %v1872
    %1918 = vmatprep.subr.bf16.mxu0 %v1876
    %1919 = vmatpush1.bf16.msra.mxu0 %v1875
    %1920 = vmatprep.subr.bf16.mxu0 %v1879
    %1921 = vmatpush1.bf16.msra.mxu0 %v1878
    %1922 = vmatprep.subr.bf16.mxu0 %v1882
    %1923 = vmatpush1.bf16.msra.mxu0 %v1881
    %1924 = vmatprep.subr.bf16.mxu0 0
    %1925 = vmatpush1.bf16.msra.mxu0 0
    %1926 = vmatprep.subr.bf16.mxu0 0
    %1927 = vmatpush1.bf16.msra.mxu0 0
    %1928 = vmatprep.subr.bf16.mxu0 0
    %1929 = vmatpush1.bf16.msra.mxu0 0
    %1930 = vmatprep.subr.bf16.mxu0 0
    %1931 = vmatpush1.bf16.msra.mxu0 0
    %1932 = vmatprep.subr.bf16.mxu0 0
    %1933 = vmatpush1.bf16.msra.mxu0 0
    %1934 = vmatprep.subr.bf16.mxu0 0
    %1935 = vmatpush1.bf16.msra.mxu0 0
    %1936 = vmatprep.subr.bf16.mxu0 0
    %1937 = vmatpush1.bf16.msra.mxu0 0
    %1938 = vmatprep.subr.bf16.mxu0 0
    %1939 = vmatpush1.bf16.msra.mxu0 0
    %1940 = vmatprep.mubr.bf16.mxu0 0
    %1941 = vmatmul.mubr.bf16.gmra.mrb[0].mxu0 %v1730
    %v1942 = vpop.f32.mrb[0].mxu0
    %v1943 = vadd.f32 %v1768, %v1942
    %v1944 = vpop.f32.mrb[0].mxu0
    %v1945 = vadd.f32 %v1772, %v1944
    %v1946 = vpop.f32.mrb[0].mxu0
    %v1947 = vpop.f32.mrb[0].mxu0
    %1948 = vdwg.mxu0
    %1949 = vmatprep.subr.bf16.mxu0 0
    %1950 = vmatpush1.bf16.msra.mxu0 %v1862
    %1951 = vmatprep.subr.bf16.mxu0 0
    %1952 = vmatpush1.bf16.msra.mxu0 %v1865
    %1953 = vmatprep.subr.bf16.mxu0 0
    %1954 = vmatpush1.bf16.msra.mxu0 %v1868
    %1955 = vmatprep.subr.bf16.mxu0 0
    %1956 = vmatpush1.bf16.msra.mxu0 %v1871
    %1957 = vmatprep.subr.bf16.mxu0 0
    %1958 = vmatpush1.bf16.msra.mxu0 %v1874
    %1959 = vmatprep.subr.bf16.mxu0 0
    %1960 = vmatpush1.bf16.msra.mxu0 %v1877
    %1961 = vmatprep.subr.bf16.mxu0 0
    %1962 = vmatpush1.bf16.msra.mxu0 %v1880
    %1963 = vmatprep.subr.bf16.mxu0 0
    %1964 = vmatpush1.bf16.msra.mxu0 %v1883
    %1965 = vmatprep.subr.bf16.mxu0 0
    %1966 = vmatpush1.bf16.msra.mxu0 0
    %1967 = vmatprep.subr.bf16.mxu0 0
    %1968 = vmatpush1.bf16.msra.mxu0 0
    %1969 = vmatprep.subr.bf16.mxu0 0
    %1970 = vmatpush1.bf16.msra.mxu0 0
    %1971 = vmatprep.subr.bf16.mxu0 0
    %1972 = vmatpush1.bf16.msra.mxu0 0
    %1973 = vmatprep.subr.bf16.mxu0 0
    %1974 = vmatpush1.bf16.msra.mxu0 0
    %1975 = vmatprep.subr.bf16.mxu0 0
    %1976 = vmatpush1.bf16.msra.mxu0 0
    %1977 = vmatprep.subr.bf16.mxu0 0
    %1978 = vmatpush1.bf16.msra.mxu0 0
    %1979 = vmatprep.subr.bf16.mxu0 0
    %1980 = vmatpush1.bf16.msra.mxu0 0
    %1981 = vmatprep.mubr.bf16.mxu0 0
    %1982 = vmatmul.mubr.bf16.gmra.mrb[0].mxu0 %v1730
    %v1983 = vpop.f32.mrb[0].mxu0
    %v1984 = vadd.f32 %v1776, %v1983
    %v1985 = vpop.f32.mrb[0].mxu0
    %v1986 = vpop.f32.mrb[0].mxu0
    %v1987 = vpop.f32.mrb[0].mxu0
    %1988 = vdwg.mxu0
    %v1989 = vadd.f32 %v1727, %v1943
    %v1990 = vxor.u32 %v1989, 2147483648
    %v1991 = vmul.f32 %v1990, 1.442695
    %v1992 = vpow.pop %v1991
    %v1993 = vadd.f32 %v1992, 1.0
    %v1994 = vrcp.pop %v1993
    %v1995 = vmul.f32 1.0, %v1994
    %v1996 = vadd.f32 %v1728, %v1945
    %v1997 = vxor.u32 %v1996, 2147483648
    %v1998 = vmul.f32 %v1997, 1.442695
    %v1999 = vpow.pop %v1998
    %v2000 = vadd.f32 %v1999, 1.0
    %v2001 = vrcp.pop %v2000
    %v2002 = vmul.f32 1.0, %v2001
    %v2003 = vmul.f32 %v1995, %v1984
    %v2004 = vadd.f32 %v1729, %v2003
    %v2005 = vtanh.pop %v2004
    %v2006 = vsub.f32 %v1721, %v2005
    %v2007 = vmul.f32 %v2002, %v2006
    %v2008 = vadd.f32 %v2005, %v2007
    %s2009 = scalar_lea.vmem [#allocation4], 40
    %2010 = vst [vmem:[%s2009] sm:$0xff] %v2008
    %s2011 = smul.u32 6, 3
    %s2012 = smul.addr %s2011, 8
    %s2013 = scalar_lea.vmem [#allocation3], %s2012
    %v2014 = vld [vmem:[%s2013] sm:$0xff]
    %v2015 = vld [vmem:[%s2013 + $0x8] sm:$0xff]
    %v2016 = vld [vmem:[%s2013 + $0x10] sm:$0xff]
    %v2017 = vpack.c.bf16 %v2008, %v2008
    %v2018 = vld [vmem:[#allocation5] sm:$0xff]
    %v2019 = vld [vmem:[#allocation5 + $0x8] sm:$0xf]
    %v2020 = vld [vmem:[#allocation5 + $0xc] sm:$0xff]
    %v2021 = vld [vmem:[#allocation5 + $0x14] sm:$0xf]
    %v2022 = vld [vmem:[#allocation5 + $0x18] sm:$0xff]
    %v2023 = vld [vmem:[#allocation5 + $0x20] sm:$0xf]
    %v2024 = vld [vmem:[#allocation5 + $0x24] sm:$0xff]
    %v2025 = vld [vmem:[#allocation5 + $0x2c] sm:$0xf]
    %v2026 = vld [vmem:[#allocation5 + $0x30] sm:$0xff]
    %v2027 = vld [vmem:[#allocation5 + $0x38] sm:$0xf]
    %v2028 = vld [vmem:[#allocation5 + $0x3c] sm:$0xff]
    %v2029 = vld [vmem:[#allocation5 + $0x44] sm:$0xf]
    %v2030 = vld [vmem:[#allocation5 + $0x48] sm:$0xff]
    %v2031 = vld [vmem:[#allocation5 + $0x50] sm:$0xf]
    %v2032 = vld [vmem:[#allocation5 + $0x54] sm:$0xff]
    %v2033 = vld [vmem:[#allocation5 + $0x5c] sm:$0xf]
    %v2034 = vld [vmem:[#allocation5 + $0x60] sm:$0xff]
    %v2035 = vld [vmem:[#allocation5 + $0x68] sm:$0xf]
    %v2036 = vld [vmem:[#allocation5 + $0x6c] sm:$0xff]
    %v2037 = vld [vmem:[#allocation5 + $0x74] sm:$0xf]
    %v2038 = vld [vmem:[#allocation5 + $0x78] sm:$0xff]
    %v2039 = vld [vmem:[#allocation5 + $0x80] sm:$0xf]
    %v2040 = vld [vmem:[#allocation5 + $0x84] sm:$0xff]
    %v2041 = vld [vmem:[#allocation5 + $0x8c] sm:$0xf]
    %v2042 = vld [vmem:[#allocation5 + $0x90] sm:$0xff]
    %v2043 = vld [vmem:[#allocation5 + $0x98] sm:$0xf]
    %v2044 = vld [vmem:[#allocation5 + $0x9c] sm:$0xff]
    %v2045 = vld [vmem:[#allocation5 + $0xa4] sm:$0xf]
    %v2046 = vld [vmem:[#allocation5 + $0xa8] sm:$0xff]
    %v2047 = vld [vmem:[#allocation5 + $0xb0] sm:$0xf]
    %v2048 = vld [vmem:[#allocation5 + $0xb4] sm:$0xff]
    %v2049 = vld [vmem:[#allocation5 + $0xbc] sm:$0xf]
    %v2050 = vld [vmem:[%s6] sm:$0x7]
    %v2052 = vlaneseq
    %v2053 = vshrl.u32 %v2052, 7
    %v2054 = vsub.s32 0, %v2053
    %v2055 = vrot.slane %v2050, %v2054
    %v2056 = vlaneseq
    %v2057 = vshrl.u32 %v2056, 7
    %v2058 = vsub.s32 1, %v2057
    %v2059 = vrot.slane %v2050, %v2058
    %v2060 = vlaneseq
    %v2061 = vshrl.u32 %v2060, 7
    %v2062 = vsub.s32 2, %v2061
    %v2063 = vrot.slane %v2050, %v2062
    %v2099 = vunpack.c.l.b16 %v2018
    %v2100 = vunpack.c.h.b16 %v2018
    %v2101 = vunpack.c.l.b16 %v2019
    %v2102 = vunpack.c.l.b16 %v2020
    %v2103 = vunpack.c.h.b16 %v2020
    %v2104 = vunpack.c.l.b16 %v2021
    %v2105 = vunpack.c.l.b16 %v2022
    %v2106 = vunpack.c.h.b16 %v2022
    %v2107 = vunpack.c.l.b16 %v2023
    %v2108 = vunpack.c.l.b16 %v2024
    %v2109 = vunpack.c.h.b16 %v2024
    %v2110 = vunpack.c.l.b16 %v2025
    %v2111 = vunpack.c.l.b16 %v2026
    %v2112 = vunpack.c.h.b16 %v2026
    %v2113 = vunpack.c.l.b16 %v2027
    %v2114 = vunpack.c.l.b16 %v2028
    %v2115 = vunpack.c.h.b16 %v2028
    %v2116 = vunpack.c.l.b16 %v2029
    %v2117 = vunpack.c.l.b16 %v2030
    %v2118 = vunpack.c.h.b16 %v2030
    %v2119 = vunpack.c.l.b16 %v2031
    %v2120 = vunpack.c.l.b16 %v2032
    %v2121 = vunpack.c.h.b16 %v2032
    %v2122 = vunpack.c.l.b16 %v2033
    %v2123 = vunpack.c.l.b16 %v2034
    %v2124 = vunpack.c.h.b16 %v2034
    %v2125 = vunpack.c.l.b16 %v2035
    %v2126 = vunpack.c.l.b16 %v2036
    %v2127 = vunpack.c.h.b16 %v2036
    %v2128 = vunpack.c.l.b16 %v2037
    %v2129 = vunpack.c.l.b16 %v2038
    %v2130 = vunpack.c.h.b16 %v2038
    %v2131 = vunpack.c.l.b16 %v2039
    %v2132 = vunpack.c.l.b16 %v2040
    %v2133 = vunpack.c.h.b16 %v2040
    %v2134 = vunpack.c.l.b16 %v2041
    %v2135 = vunpack.c.l.b16 %v2042
    %v2136 = vunpack.c.h.b16 %v2042
    %v2137 = vunpack.c.l.b16 %v2043
    %v2138 = vunpack.c.l.b16 %v2044
    %v2139 = vunpack.c.h.b16 %v2044
    %v2140 = vunpack.c.l.b16 %v2045
    %v2141 = vunpack.c.l.b16 %v2046
    %v2142 = vunpack.c.h.b16 %v2046
    %v2143 = vunpack.c.l.b16 %v2047
    %v2144 = vunpack.c.l.b16 %v2048
    %v2145 = vunpack.c.h.b16 %v2048
    %v2146 = vunpack.c.l.b16 %v2049
    %v2147 = vpack.c.b16 %v2102, %v2099
    %v2148 = vpack.c.b16 %v2103, %v2100
    %v2149 = vpack.c.b16 %v2104, %v2101
    %v2150 = vpack.c.b16 %v2108, %v2105
    %v2151 = vpack.c.b16 %v2109, %v2106
    %v2152 = vpack.c.b16 %v2110, %v2107
    %v2153 = vpack.c.b16 %v2114, %v2111
    %v2154 = vpack.c.b16 %v2115, %v2112
    %v2155 = vpack.c.b16 %v2116, %v2113
    %v2156 = vpack.c.b16 %v2120, %v2117
    %v2157 = vpack.c.b16 %v2121, %v2118
    %v2158 = vpack.c.b16 %v2122, %v2119
    %v2159 = vpack.c.b16 %v2126, %v2123
    %v2160 = vpack.c.b16 %v2127, %v2124
    %v2161 = vpack.c.b16 %v2128, %v2125
    %v2162 = vpack.c.b16 %v2132, %v2129
    %v2163 = vpack.c.b16 %v2133, %v2130
    %v2164 = vpack.c.b16 %v2134, %v2131
    %v2165 = vpack.c.b16 %v2138, %v2135
    %v2166 = vpack.c.b16 %v2139, %v2136
    %v2167 = vpack.c.b16 %v2140, %v2137
    %v2168 = vpack.c.b16 %v2144, %v2141
    %v2169 = vpack.c.b16 %v2145, %v2142
    %v2170 = vpack.c.b16 %v2146, %v2143
    %2195 = vmatprep.subr.bf16.mxu0 %v2148
    %2196 = vmatpush1.bf16.msra.mxu0 %v2147
    %2197 = vmatprep.subr.bf16.mxu0 %v2151
    %2198 = vmatpush1.bf16.msra.mxu0 %v2150
    %2199 = vmatprep.subr.bf16.mxu0 %v2154
    %2200 = vmatpush1.bf16.msra.mxu0 %v2153
    %2201 = vmatprep.subr.bf16.mxu0 %v2157
    %2202 = vmatpush1.bf16.msra.mxu0 %v2156
    %2203 = vmatprep.subr.bf16.mxu0 %v2160
    %2204 = vmatpush1.bf16.msra.mxu0 %v2159
    %2205 = vmatprep.subr.bf16.mxu0 %v2163
    %2206 = vmatpush1.bf16.msra.mxu0 %v2162
    %2207 = vmatprep.subr.bf16.mxu0 %v2166
    %2208 = vmatpush1.bf16.msra.mxu0 %v2165
    %2209 = vmatprep.subr.bf16.mxu0 %v2169
    %2210 = vmatpush1.bf16.msra.mxu0 %v2168
    %2211 = vmatprep.subr.bf16.mxu0 0
    %2212 = vmatpush1.bf16.msra.mxu0 0
    %2213 = vmatprep.subr.bf16.mxu0 0
    %2214 = vmatpush1.bf16.msra.mxu0 0
    %2215 = vmatprep.subr.bf16.mxu0 0
    %2216 = vmatpush1.bf16.msra.mxu0 0
    %2217 = vmatprep.subr.bf16.mxu0 0
    %2218 = vmatpush1.bf16.msra.mxu0 0
    %2219 = vmatprep.subr.bf16.mxu0 0
    %2220 = vmatpush1.bf16.msra.mxu0 0
    %2221 = vmatprep.subr.bf16.mxu0 0
    %2222 = vmatpush1.bf16.msra.mxu0 0
    %2223 = vmatprep.subr.bf16.mxu0 0
    %2224 = vmatpush1.bf16.msra.mxu0 0
    %2225 = vmatprep.subr.bf16.mxu0 0
    %2226 = vmatpush1.bf16.msra.mxu0 0
    %2227 = vmatprep.mubr.bf16.mxu0 0
    %2228 = vmatmul.mubr.bf16.gmra.mrb[0].mxu0 %v2017
    %v2229 = vpop.f32.mrb[0].mxu0
    %v2230 = vadd.f32 %v2055, %v2229
    %v2231 = vpop.f32.mrb[0].mxu0
    %v2232 = vadd.f32 %v2059, %v2231
    %v2233 = vpop.f32.mrb[0].mxu0
    %v2234 = vpop.f32.mrb[0].mxu0
    %2235 = vdwg.mxu0
    %2236 = vmatprep.subr.bf16.mxu0 0
    %2237 = vmatpush1.bf16.msra.mxu0 %v2149
    %2238 = vmatprep.subr.bf16.mxu0 0
    %2239 = vmatpush1.bf16.msra.mxu0 %v2152
    %2240 = vmatprep.subr.bf16.mxu0 0
    %2241 = vmatpush1.bf16.msra.mxu0 %v2155
    %2242 = vmatprep.subr.bf16.mxu0 0
    %2243 = vmatpush1.bf16.msra.mxu0 %v2158
    %2244 = vmatprep.subr.bf16.mxu0 0
    %2245 = vmatpush1.bf16.msra.mxu0 %v2161
    %2246 = vmatprep.subr.bf16.mxu0 0
    %2247 = vmatpush1.bf16.msra.mxu0 %v2164
    %2248 = vmatprep.subr.bf16.mxu0 0
    %2249 = vmatpush1.bf16.msra.mxu0 %v2167
    %2250 = vmatprep.subr.bf16.mxu0 0
    %2251 = vmatpush1.bf16.msra.mxu0 %v2170
    %2252 = vmatprep.subr.bf16.mxu0 0
    %2253 = vmatpush1.bf16.msra.mxu0 0
    %2254 = vmatprep.subr.bf16.mxu0 0
    %2255 = vmatpush1.bf16.msra.mxu0 0
    %2256 = vmatprep.subr.bf16.mxu0 0
    %2257 = vmatpush1.bf16.msra.mxu0 0
    %2258 = vmatprep.subr.bf16.mxu0 0
    %2259 = vmatpush1.bf16.msra.mxu0 0
    %2260 = vmatprep.subr.bf16.mxu0 0
    %2261 = vmatpush1.bf16.msra.mxu0 0
    %2262 = vmatprep.subr.bf16.mxu0 0
    %2263 = vmatpush1.bf16.msra.mxu0 0
    %2264 = vmatprep.subr.bf16.mxu0 0
    %2265 = vmatpush1.bf16.msra.mxu0 0
    %2266 = vmatprep.subr.bf16.mxu0 0
    %2267 = vmatpush1.bf16.msra.mxu0 0
    %2268 = vmatprep.mubr.bf16.mxu0 0
    %2269 = vmatmul.mubr.bf16.gmra.mrb[0].mxu0 %v2017
    %v2270 = vpop.f32.mrb[0].mxu0
    %v2271 = vadd.f32 %v2063, %v2270
    %v2272 = vpop.f32.mrb[0].mxu0
    %v2273 = vpop.f32.mrb[0].mxu0
    %v2274 = vpop.f32.mrb[0].mxu0
    %2275 = vdwg.mxu0
    %v2276 = vadd.f32 %v2014, %v2230
    %v2277 = vxor.u32 %v2276, 2147483648
    %v2278 = vmul.f32 %v2277, 1.442695
    %v2279 = vpow.pop %v2278
    %v2280 = vadd.f32 %v2279, 1.0
    %v2281 = vrcp.pop %v2280
    %v2282 = vmul.f32 1.0, %v2281
    %v2283 = vadd.f32 %v2015, %v2232
    %v2284 = vxor.u32 %v2283, 2147483648
    %v2285 = vmul.f32 %v2284, 1.442695
    %v2286 = vpow.pop %v2285
    %v2287 = vadd.f32 %v2286, 1.0
    %v2288 = vrcp.pop %v2287
    %v2289 = vmul.f32 1.0, %v2288
    %v2290 = vmul.f32 %v2282, %v2271
    %v2291 = vadd.f32 %v2016, %v2290
    %v2292 = vtanh.pop %v2291
    %v2293 = vsub.f32 %v2008, %v2292
    %v2294 = vmul.f32 %v2289, %v2293
    %v2295 = vadd.f32 %v2292, %v2294
    %s2296 = scalar_lea.vmem [#allocation4], 48
    %2297 = vst [vmem:[%s2296] sm:$0xff] %v2295
    %s2298 = smul.u32 7, 3
    %s2299 = smul.addr %s2298, 8
    %s2300 = scalar_lea.vmem [#allocation3], %s2299
    %v2301 = vld [vmem:[%s2300] sm:$0xff]
    %v2302 = vld [vmem:[%s2300 + $0x8] sm:$0xff]
    %v2303 = vld [vmem:[%s2300 + $0x10] sm:$0xff]
    %v2304 = vpack.c.bf16 %v2295, %v2295
    %v2305 = vld [vmem:[#allocation5] sm:$0xff]
    %v2306 = vld [vmem:[#allocation5 + $0x8] sm:$0xf]
    %v2307 = vld [vmem:[#allocation5 + $0xc] sm:$0xff]
    %v2308 = vld [vmem:[#allocation5 + $0x14] sm:$0xf]
    %v2309 = vld [vmem:[#allocation5 + $0x18] sm:$0xff]
    %v2310 = vld [vmem:[#allocation5 + $0x20] sm:$0xf]
    %v2311 = vld [vmem:[#allocation5 + $0x24] sm:$0xff]
    %v2312 = vld [vmem:[#allocation5 + $0x2c] sm:$0xf]
    %v2313 = vld [vmem:[#allocation5 + $0x30] sm:$0xff]
    %v2314 = vld [vmem:[#allocation5 + $0x38] sm:$0xf]
    %v2315 = vld [vmem:[#allocation5 + $0x3c] sm:$0xff]
    %v2316 = vld [vmem:[#allocation5 + $0x44] sm:$0xf]
    %v2317 = vld [vmem:[#allocation5 + $0x48] sm:$0xff]
    %v2318 = vld [vmem:[#allocation5 + $0x50] sm:$0xf]
    %v2319 = vld [vmem:[#allocation5 + $0x54] sm:$0xff]
    %v2320 = vld [vmem:[#allocation5 + $0x5c] sm:$0xf]
    %v2321 = vld [vmem:[#allocation5 + $0x60] sm:$0xff]
    %v2322 = vld [vmem:[#allocation5 + $0x68] sm:$0xf]
    %v2323 = vld [vmem:[#allocation5 + $0x6c] sm:$0xff]
    %v2324 = vld [vmem:[#allocation5 + $0x74] sm:$0xf]
    %v2325 = vld [vmem:[#allocation5 + $0x78] sm:$0xff]
    %v2326 = vld [vmem:[#allocation5 + $0x80] sm:$0xf]
    %v2327 = vld [vmem:[#allocation5 + $0x84] sm:$0xff]
    %v2328 = vld [vmem:[#allocation5 + $0x8c] sm:$0xf]
    %v2329 = vld [vmem:[#allocation5 + $0x90] sm:$0xff]
    %v2330 = vld [vmem:[#allocation5 + $0x98] sm:$0xf]
    %v2331 = vld [vmem:[#allocation5 + $0x9c] sm:$0xff]
    %v2332 = vld [vmem:[#allocation5 + $0xa4] sm:$0xf]
    %v2333 = vld [vmem:[#allocation5 + $0xa8] sm:$0xff]
    %v2334 = vld [vmem:[#allocation5 + $0xb0] sm:$0xf]
    %v2335 = vld [vmem:[#allocation5 + $0xb4] sm:$0xff]
    %v2336 = vld [vmem:[#allocation5 + $0xbc] sm:$0xf]
    %v2337 = vld [vmem:[%s6] sm:$0x7]
    %v2339 = vlaneseq
    %v2340 = vshrl.u32 %v2339, 7
    %v2341 = vsub.s32 0, %v2340
    %v2342 = vrot.slane %v2337, %v2341
    %v2343 = vlaneseq
    %v2344 = vshrl.u32 %v2343, 7
    %v2345 = vsub.s32 1, %v2344
    %v2346 = vrot.slane %v2337, %v2345
    %v2347 = vlaneseq
    %v2348 = vshrl.u32 %v2347, 7
    %v2349 = vsub.s32 2, %v2348
    %v2350 = vrot.slane %v2337, %v2349
    %v2386 = vunpack.c.l.b16 %v2305
    %v2387 = vunpack.c.h.b16 %v2305
    %v2388 = vunpack.c.l.b16 %v2306
    %v2389 = vunpack.c.l.b16 %v2307
    %v2390 = vunpack.c.h.b16 %v2307
    %v2391 = vunpack.c.l.b16 %v2308
    %v2392 = vunpack.c.l.b16 %v2309
    %v2393 = vunpack.c.h.b16 %v2309
    %v2394 = vunpack.c.l.b16 %v2310
    %v2395 = vunpack.c.l.b16 %v2311
    %v2396 = vunpack.c.h.b16 %v2311
    %v2397 = vunpack.c.l.b16 %v2312
    %v2398 = vunpack.c.l.b16 %v2313
    %v2399 = vunpack.c.h.b16 %v2313
    %v2400 = vunpack.c.l.b16 %v2314
    %v2401 = vunpack.c.l.b16 %v2315
    %v2402 = vunpack.c.h.b16 %v2315
    %v2403 = vunpack.c.l.b16 %v2316
    %v2404 = vunpack.c.l.b16 %v2317
    %v2405 = vunpack.c.h.b16 %v2317
    %v2406 = vunpack.c.l.b16 %v2318
    %v2407 = vunpack.c.l.b16 %v2319
    %v2408 = vunpack.c.h.b16 %v2319
    %v2409 = vunpack.c.l.b16 %v2320
    %v2410 = vunpack.c.l.b16 %v2321
    %v2411 = vunpack.c.h.b16 %v2321
    %v2412 = vunpack.c.l.b16 %v2322
    %v2413 = vunpack.c.l.b16 %v2323
    %v2414 = vunpack.c.h.b16 %v2323
    %v2415 = vunpack.c.l.b16 %v2324
    %v2416 = vunpack.c.l.b16 %v2325
    %v2417 = vunpack.c.h.b16 %v2325
    %v2418 = vunpack.c.l.b16 %v2326
    %v2419 = vunpack.c.l.b16 %v2327
    %v2420 = vunpack.c.h.b16 %v2327
    %v2421 = vunpack.c.l.b16 %v2328
    %v2422 = vunpack.c.l.b16 %v2329
    %v2423 = vunpack.c.h.b16 %v2329
    %v2424 = vunpack.c.l.b16 %v2330
    %v2425 = vunpack.c.l.b16 %v2331
    %v2426 = vunpack.c.h.b16 %v2331
    %v2427 = vunpack.c.l.b16 %v2332
    %v2428 = vunpack.c.l.b16 %v2333
    %v2429 = vunpack.c.h.b16 %v2333
    %v2430 = vunpack.c.l.b16 %v2334
    %v2431 = vunpack.c.l.b16 %v2335
    %v2432 = vunpack.c.h.b16 %v2335
    %v2433 = vunpack.c.l.b16 %v2336
    %v2434 = vpack.c.b16 %v2389, %v2386
    %v2435 = vpack.c.b16 %v2390, %v2387
    %v2436 = vpack.c.b16 %v2391, %v2388
    %v2437 = vpack.c.b16 %v2395, %v2392
    %v2438 = vpack.c.b16 %v2396, %v2393
    %v2439 = vpack.c.b16 %v2397, %v2394
    %v2440 = vpack.c.b16 %v2401, %v2398
    %v2441 = vpack.c.b16 %v2402, %v2399
    %v2442 = vpack.c.b16 %v2403, %v2400
    %v2443 = vpack.c.b16 %v2407, %v2404
    %v2444 = vpack.c.b16 %v2408, %v2405
    %v2445 = vpack.c.b16 %v2409, %v2406
    %v2446 = vpack.c.b16 %v2413, %v2410
    %v2447 = vpack.c.b16 %v2414, %v2411
    %v2448 = vpack.c.b16 %v2415, %v2412
    %v2449 = vpack.c.b16 %v2419, %v2416
    %v2450 = vpack.c.b16 %v2420, %v2417
    %v2451 = vpack.c.b16 %v2421, %v2418
    %v2452 = vpack.c.b16 %v2425, %v2422
    %v2453 = vpack.c.b16 %v2426, %v2423
    %v2454 = vpack.c.b16 %v2427, %v2424
    %v2455 = vpack.c.b16 %v2431, %v2428
    %v2456 = vpack.c.b16 %v2432, %v2429
    %v2457 = vpack.c.b16 %v2433, %v2430
    %2482 = vmatprep.subr.bf16.mxu0 %v2435
    %2483 = vmatpush1.bf16.msra.mxu0 %v2434
    %2484 = vmatprep.subr.bf16.mxu0 %v2438
    %2485 = vmatpush1.bf16.msra.mxu0 %v2437
    %2486 = vmatprep.subr.bf16.mxu0 %v2441
    %2487 = vmatpush1.bf16.msra.mxu0 %v2440
    %2488 = vmatprep.subr.bf16.mxu0 %v2444
    %2489 = vmatpush1.bf16.msra.mxu0 %v2443
    %2490 = vmatprep.subr.bf16.mxu0 %v2447
    %2491 = vmatpush1.bf16.msra.mxu0 %v2446
    %2492 = vmatprep.subr.bf16.mxu0 %v2450
    %2493 = vmatpush1.bf16.msra.mxu0 %v2449
    %2494 = vmatprep.subr.bf16.mxu0 %v2453
    %2495 = vmatpush1.bf16.msra.mxu0 %v2452
    %2496 = vmatprep.subr.bf16.mxu0 %v2456
    %2497 = vmatpush1.bf16.msra.mxu0 %v2455
    %2498 = vmatprep.subr.bf16.mxu0 0
    %2499 = vmatpush1.bf16.msra.mxu0 0
    %2500 = vmatprep.subr.bf16.mxu0 0
    %2501 = vmatpush1.bf16.msra.mxu0 0
    %2502 = vmatprep.subr.bf16.mxu0 0
    %2503 = vmatpush1.bf16.msra.mxu0 0
    %2504 = vmatprep.subr.bf16.mxu0 0
    %2505 = vmatpush1.bf16.msra.mxu0 0
    %2506 = vmatprep.subr.bf16.mxu0 0
    %2507 = vmatpush1.bf16.msra.mxu0 0
    %2508 = vmatprep.subr.bf16.mxu0 0
    %2509 = vmatpush1.bf16.msra.mxu0 0
    %2510 = vmatprep.subr.bf16.mxu0 0
    %2511 = vmatpush1.bf16.msra.mxu0 0
    %2512 = vmatprep.subr.bf16.mxu0 0
    %2513 = vmatpush1.bf16.msra.mxu0 0
    %2514 = vmatprep.mubr.bf16.mxu0 0
    %2515 = vmatmul.mubr.bf16.gmra.mrb[0].mxu0 %v2304
    %v2516 = vpop.f32.mrb[0].mxu0
    %v2517 = vadd.f32 %v2342, %v2516
    %v2518 = vpop.f32.mrb[0].mxu0
    %v2519 = vadd.f32 %v2346, %v2518
    %v2520 = vpop.f32.mrb[0].mxu0
    %v2521 = vpop.f32.mrb[0].mxu0
    %2522 = vdwg.mxu0
    %2523 = vmatprep.subr.bf16.mxu0 0
    %2524 = vmatpush1.bf16.msra.mxu0 %v2436
    %2525 = vmatprep.subr.bf16.mxu0 0
    %2526 = vmatpush1.bf16.msra.mxu0 %v2439
    %2527 = vmatprep.subr.bf16.mxu0 0
    %2528 = vmatpush1.bf16.msra.mxu0 %v2442
    %2529 = vmatprep.subr.bf16.mxu0 0
    %2530 = vmatpush1.bf16.msra.mxu0 %v2445
    %2531 = vmatprep.subr.bf16.mxu0 0
    %2532 = vmatpush1.bf16.msra.mxu0 %v2448
    %2533 = vmatprep.subr.bf16.mxu0 0
    %2534 = vmatpush1.bf16.msra.mxu0 %v2451
    %2535 = vmatprep.subr.bf16.mxu0 0
    %2536 = vmatpush1.bf16.msra.mxu0 %v2454
    %2537 = vmatprep.subr.bf16.mxu0 0
    %2538 = vmatpush1.bf16.msra.mxu0 %v2457
    %2539 = vmatprep.subr.bf16.mxu0 0
    %2540 = vmatpush1.bf16.msra.mxu0 0
    %2541 = vmatprep.subr.bf16.mxu0 0
    %2542 = vmatpush1.bf16.msra.mxu0 0
    %2543 = vmatprep.subr.bf16.mxu0 0
    %2544 = vmatpush1.bf16.msra.mxu0 0
    %2545 = vmatprep.subr.bf16.mxu0 0
    %2546 = vmatpush1.bf16.msra.mxu0 0
    %2547 = vmatprep.subr.bf16.mxu0 0
    %2548 = vmatpush1.bf16.msra.mxu0 0
    %2549 = vmatprep.subr.bf16.mxu0 0
    %2550 = vmatpush1.bf16.msra.mxu0 0
    %2551 = vmatprep.subr.bf16.mxu0 0
    %2552 = vmatpush1.bf16.msra.mxu0 0
    %2553 = vmatprep.subr.bf16.mxu0 0
    %2554 = vmatpush1.bf16.msra.mxu0 0
    %2555 = vmatprep.mubr.bf16.mxu0 0
    %2556 = vmatmul.mubr.bf16.gmra.mrb[0].mxu0 %v2304
    %v2557 = vpop.f32.mrb[0].mxu0
    %v2558 = vadd.f32 %v2350, %v2557
    %v2559 = vpop.f32.mrb[0].mxu0
    %v2560 = vpop.f32.mrb[0].mxu0
    %v2561 = vpop.f32.mrb[0].mxu0
    %2562 = vdwg.mxu0
    %v2563 = vadd.f32 %v2301, %v2517
    %v2564 = vxor.u32 %v2563, 2147483648
    %v2565 = vmul.f32 %v2564, 1.442695
    %v2566 = vpow.pop %v2565
    %v2567 = vadd.f32 %v2566, 1.0
    %v2568 = vrcp.pop %v2567
    %v2569 = vmul.f32 1.0, %v2568
    %v2570 = vadd.f32 %v2302, %v2519
    %v2571 = vxor.u32 %v2570, 2147483648
    %v2572 = vmul.f32 %v2571, 1.442695
    %v2573 = vpow.pop %v2572
    %v2574 = vadd.f32 %v2573, 1.0
    %v2575 = vrcp.pop %v2574
    %v2576 = vmul.f32 1.0, %v2575
    %v2577 = vmul.f32 %v2569, %v2558
    %v2578 = vadd.f32 %v2303, %v2577
    %v2579 = vtanh.pop %v2578
    %v2580 = vsub.f32 %v2295, %v2579
    %v2581 = vmul.f32 %v2576, %v2580
    %v2582 = vadd.f32 %v2579, %v2581
    %s2583 = scalar_lea.vmem [#allocation4], 56
    %2584 = vst [vmem:[%s2583] sm:$0xff] %v2582
    %2585 = vst [vmem:[#allocation2] sm:$0xff] %v2582
    %v2586 = vld [vmem:[#allocation4] sm:$0xff]
    %v2587 = vld [vmem:[#allocation4 + $0x8] sm:$0xff]
    %v2588 = vld [vmem:[#allocation4 + $0x10] sm:$0xff]
    %v2589 = vld [vmem:[#allocation4 + $0x18] sm:$0xff]
    %v2590 = vld [vmem:[#allocation4 + $0x20] sm:$0xff]
    %v2591 = vld [vmem:[#allocation4 + $0x28] sm:$0xff]
    %v2592 = vld [vmem:[#allocation4 + $0x30] sm:$0xff]
    %v2593 = vld [vmem:[#allocation4 + $0x38] sm:$0xff]
    %v2594 = vpack.c.bf16 %v2587, %v2586
    %v2595 = vpack.c.bf16 %v2589, %v2588
    %v2596 = vpack.c.bf16 %v2591, %v2590
    %v2597 = vpack.c.bf16 %v2593, %v2592
    %v2598 = vld [vmem:[%s3] sm:$0xff]
    %v2599 = vld [vmem:[%s3 + $0x8] sm:$0xf]
    %v2600 = vld [vmem:[%s3 + $0xc] sm:$0xff]
    %v2601 = vld [vmem:[%s3 + $0x14] sm:$0xf]
    %v2602 = vld [vmem:[%s3 + $0x18] sm:$0xff]
    %v2603 = vld [vmem:[%s3 + $0x20] sm:$0xf]
    %v2604 = vld [vmem:[%s3 + $0x24] sm:$0xff]
    %v2605 = vld [vmem:[%s3 + $0x2c] sm:$0xf]
    %v2606 = vld [vmem:[%s3 + $0x30] sm:$0xff]
    %v2607 = vld [vmem:[%s3 + $0x38] sm:$0xf]
    %v2608 = vld [vmem:[%s3 + $0x3c] sm:$0xff]
    %v2609 = vld [vmem:[%s3 + $0x44] sm:$0xf]
    %v2610 = vld [vmem:[%s3 + $0x48] sm:$0xff]
    %v2611 = vld [vmem:[%s3 + $0x50] sm:$0xf]
    %v2612 = vld [vmem:[%s3 + $0x54] sm:$0xff]
    %v2613 = vld [vmem:[%s3 + $0x5c] sm:$0xf]
    %v2614 = vld [vmem:[%s3 + $0x60] sm:$0xff]
    %v2615 = vld [vmem:[%s3 + $0x68] sm:$0xf]
    %v2616 = vld [vmem:[%s3 + $0x6c] sm:$0xff]
    %v2617 = vld [vmem:[%s3 + $0x74] sm:$0xf]
    %v2618 = vld [vmem:[%s3 + $0x78] sm:$0xff]
    %v2619 = vld [vmem:[%s3 + $0x80] sm:$0xf]
    %v2620 = vld [vmem:[%s3 + $0x84] sm:$0xff]
    %v2621 = vld [vmem:[%s3 + $0x8c] sm:$0xf]
    %v2622 = vld [vmem:[%s3 + $0x90] sm:$0xff]
    %v2623 = vld [vmem:[%s3 + $0x98] sm:$0xf]
    %v2624 = vld [vmem:[%s3 + $0x9c] sm:$0xff]
    %v2625 = vld [vmem:[%s3 + $0xa4] sm:$0xf]
    %v2626 = vld [vmem:[%s3 + $0xa8] sm:$0xff]
    %v2627 = vld [vmem:[%s3 + $0xb0] sm:$0xf]
    %v2628 = vld [vmem:[%s3 + $0xb4] sm:$0xff]
    %v2629 = vld [vmem:[%s3 + $0xbc] sm:$0xf]
    %v2630 = vld [vmem:[%s4] sm:$0x7]
    %v2632 = vlaneseq
    %v2633 = vshrl.u32 %v2632, 7
    %v2634 = vsub.s32 0, %v2633
    %v2635 = vrot.slane %v2630, %v2634
    %v2636 = vlaneseq
    %v2637 = vshrl.u32 %v2636, 7
    %v2638 = vsub.s32 1, %v2637
    %v2639 = vrot.slane %v2630, %v2638
    %v2640 = vlaneseq
    %v2641 = vshrl.u32 %v2640, 7
    %v2642 = vsub.s32 2, %v2641
    %v2643 = vrot.slane %v2630, %v2642
    %v2679 = vunpack.c.l.b16 %v2598
    %v2680 = vunpack.c.h.b16 %v2598
    %v2681 = vunpack.c.l.b16 %v2599
    %v2682 = vunpack.c.l.b16 %v2600
    %v2683 = vunpack.c.h.b16 %v2600
    %v2684 = vunpack.c.l.b16 %v2601
    %v2685 = vunpack.c.l.b16 %v2602
    %v2686 = vunpack.c.h.b16 %v2602
    %v2687 = vunpack.c.l.b16 %v2603
    %v2688 = vunpack.c.l.b16 %v2604
    %v2689 = vunpack.c.h.b16 %v2604
    %v2690 = vunpack.c.l.b16 %v2605
    %v2691 = vunpack.c.l.b16 %v2606
    %v2692 = vunpack.c.h.b16 %v2606
    %v2693 = vunpack.c.l.b16 %v2607
    %v2694 = vunpack.c.l.b16 %v2608
    %v2695 = vunpack.c.h.b16 %v2608
    %v2696 = vunpack.c.l.b16 %v2609
    %v2697 = vunpack.c.l.b16 %v2610
    %v2698 = vunpack.c.h.b16 %v2610
    %v2699 = vunpack.c.l.b16 %v2611
    %v2700 = vunpack.c.l.b16 %v2612
    %v2701 = vunpack.c.h.b16 %v2612
    %v2702 = vunpack.c.l.b16 %v2613
    %v2703 = vunpack.c.l.b16 %v2614
    %v2704 = vunpack.c.h.b16 %v2614
    %v2705 = vunpack.c.l.b16 %v2615
    %v2706 = vunpack.c.l.b16 %v2616
    %v2707 = vunpack.c.h.b16 %v2616
    %v2708 = vunpack.c.l.b16 %v2617
    %v2709 = vunpack.c.l.b16 %v2618
    %v2710 = vunpack.c.h.b16 %v2618
    %v2711 = vunpack.c.l.b16 %v2619
    %v2712 = vunpack.c.l.b16 %v2620
    %v2713 = vunpack.c.h.b16 %v2620
    %v2714 = vunpack.c.l.b16 %v2621
    %v2715 = vunpack.c.l.b16 %v2622
    %v2716 = vunpack.c.h.b16 %v2622
    %v2717 = vunpack.c.l.b16 %v2623
    %v2718 = vunpack.c.l.b16 %v2624
    %v2719 = vunpack.c.h.b16 %v2624
    %v2720 = vunpack.c.l.b16 %v2625
    %v2721 = vunpack.c.l.b16 %v2626
    %v2722 = vunpack.c.h.b16 %v2626
    %v2723 = vunpack.c.l.b16 %v2627
    %v2724 = vunpack.c.l.b16 %v2628
    %v2725 = vunpack.c.h.b16 %v2628
    %v2726 = vunpack.c.l.b16 %v2629
    %v2727 = vpack.c.b16 %v2682, %v2679
    %v2728 = vpack.c.b16 %v2683, %v2680
    %v2729 = vpack.c.b16 %v2684, %v2681
    %v2730 = vpack.c.b16 %v2688, %v2685
    %v2731 = vpack.c.b16 %v2689, %v2686
    %v2732 = vpack.c.b16 %v2690, %v2687
    %v2733 = vpack.c.b16 %v2694, %v2691
    %v2734 = vpack.c.b16 %v2695, %v2692
    %v2735 = vpack.c.b16 %v2696, %v2693
    %v2736 = vpack.c.b16 %v2700, %v2697
    %v2737 = vpack.c.b16 %v2701, %v2698
    %v2738 = vpack.c.b16 %v2702, %v2699
    %v2739 = vpack.c.b16 %v2706, %v2703
    %v2740 = vpack.c.b16 %v2707, %v2704
    %v2741 = vpack.c.b16 %v2708, %v2705
    %v2742 = vpack.c.b16 %v2712, %v2709
    %v2743 = vpack.c.b16 %v2713, %v2710
    %v2744 = vpack.c.b16 %v2714, %v2711
    %v2745 = vpack.c.b16 %v2718, %v2715
    %v2746 = vpack.c.b16 %v2719, %v2716
    %v2747 = vpack.c.b16 %v2720, %v2717
    %v2748 = vpack.c.b16 %v2724, %v2721
    %v2749 = vpack.c.b16 %v2725, %v2722
    %v2750 = vpack.c.b16 %v2726, %v2723
    %2775 = vmatprep.subr.bf16.mxu0 %v2728
    %2776 = vmatpush1.bf16.msra.mxu0 %v2727
    %2777 = vmatprep.subr.bf16.mxu0 %v2731
    %2778 = vmatpush1.bf16.msra.mxu0 %v2730
    %2779 = vmatprep.subr.bf16.mxu0 %v2734
    %2780 = vmatpush1.bf16.msra.mxu0 %v2733
    %2781 = vmatprep.subr.bf16.mxu0 %v2737
    %2782 = vmatpush1.bf16.msra.mxu0 %v2736
    %2783 = vmatprep.subr.bf16.mxu0 %v2740
    %2784 = vmatpush1.bf16.msra.mxu0 %v2739
    %2785 = vmatprep.subr.bf16.mxu0 %v2743
    %2786 = vmatpush1.bf16.msra.mxu0 %v2742
    %2787 = vmatprep.subr.bf16.mxu0 %v2746
    %2788 = vmatpush1.bf16.msra.mxu0 %v2745
    %2789 = vmatprep.subr.bf16.mxu0 %v2749
    %2790 = vmatpush1.bf16.msra.mxu0 %v2748
    %2791 = vmatprep.subr.bf16.mxu0 0
    %2792 = vmatpush1.bf16.msra.mxu0 0
    %2793 = vmatprep.subr.bf16.mxu0 0
    %2794 = vmatpush1.bf16.msra.mxu0 0
    %2795 = vmatprep.subr.bf16.mxu0 0
    %2796 = vmatpush1.bf16.msra.mxu0 0
    %2797 = vmatprep.subr.bf16.mxu0 0
    %2798 = vmatpush1.bf16.msra.mxu0 0
    %2799 = vmatprep.subr.bf16.mxu0 0
    %2800 = vmatpush1.bf16.msra.mxu0 0
    %2801 = vmatprep.subr.bf16.mxu0 0
    %2802 = vmatpush1.bf16.msra.mxu0 0
    %2803 = vmatprep.subr.bf16.mxu0 0
    %2804 = vmatpush1.bf16.msra.mxu0 0
    %2805 = vmatprep.subr.bf16.mxu0 0
    %2806 = vmatpush1.bf16.msra.mxu0 0
    %2807 = vmatprep.mubr.bf16.mxu0 0
    %2808 = vmatmul.mubr.bf16.gmra.mrb[0].mxu0 %v2594
    %v2809 = vpop.f32.mrb[0].mxu0
    %v2810 = vadd.f32 %v2635, %v2809
    %v2811 = vpop.f32.mrb[0].mxu0
    %v2812 = vadd.f32 %v2639, %v2811
    %v2813 = vpop.f32.mrb[0].mxu0
    %v2814 = vadd.f32 %v2635, %v2813
    %v2815 = vpop.f32.mrb[0].mxu0
    %v2816 = vadd.f32 %v2639, %v2815
    %2817 = vmatprep.mubr.bf16.mxu0 0
    %2818 = vmatmul.mubr.bf16.gmra.mrb[0].mxu0 %v2595
    %v2819 = vpop.f32.mrb[0].mxu0
    %v2820 = vadd.f32 %v2635, %v2819
    %v2821 = vpop.f32.mrb[0].mxu0
    %v2822 = vadd.f32 %v2639, %v2821
    %v2823 = vpop.f32.mrb[0].mxu0
    %v2824 = vadd.f32 %v2635, %v2823
    %v2825 = vpop.f32.mrb[0].mxu0
    %v2826 = vadd.f32 %v2639, %v2825
    %2827 = vmatprep.mubr.bf16.mxu0 0
    %2828 = vmatmul.mubr.bf16.gmra.mrb[0].mxu0 %v2596
    %v2829 = vpop.f32.mrb[0].mxu0
    %v2830 = vadd.f32 %v2635, %v2829
    %v2831 = vpop.f32.mrb[0].mxu0
    %v2832 = vadd.f32 %v2639, %v2831
    %v2833 = vpop.f32.mrb[0].mxu0
    %v2834 = vadd.f32 %v2635, %v2833
    %v2835 = vpop.f32.mrb[0].mxu0
    %v2836 = vadd.f32 %v2639, %v2835
    %2837 = vmatprep.mubr.bf16.mxu0 0
    %2838 = vmatmul.mubr.bf16.gmra.mrb[0].mxu0 %v2597
    %v2839 = vpop.f32.mrb[0].mxu0
    %v2840 = vadd.f32 %v2635, %v2839
    %v2841 = vpop.f32.mrb[0].mxu0
    %v2842 = vadd.f32 %v2639, %v2841
    %v2843 = vpop.f32.mrb[0].mxu0
    %v2844 = vadd.f32 %v2635, %v2843
    %v2845 = vpop.f32.mrb[0].mxu0
    %v2846 = vadd.f32 %v2639, %v2845
    %2847 = vdwg.mxu0
    %2848 = vmatprep.subr.bf16.mxu0 0
    %2849 = vmatpush1.bf16.msra.mxu0 %v2729
    %2850 = vmatprep.subr.bf16.mxu0 0
    %2851 = vmatpush1.bf16.msra.mxu0 %v2732
    %2852 = vmatprep.subr.bf16.mxu0 0
    %2853 = vmatpush1.bf16.msra.mxu0 %v2735
    %2854 = vmatprep.subr.bf16.mxu0 0
    %2855 = vmatpush1.bf16.msra.mxu0 %v2738
    %2856 = vmatprep.subr.bf16.mxu0 0
    %2857 = vmatpush1.bf16.msra.mxu0 %v2741
    %2858 = vmatprep.subr.bf16.mxu0 0
    %2859 = vmatpush1.bf16.msra.mxu0 %v2744
    %2860 = vmatprep.subr.bf16.mxu0 0
    %2861 = vmatpush1.bf16.msra.mxu0 %v2747
    %2862 = vmatprep.subr.bf16.mxu0 0
    %2863 = vmatpush1.bf16.msra.mxu0 %v2750
    %2864 = vmatprep.subr.bf16.mxu0 0
    %2865 = vmatpush1.bf16.msra.mxu0 0
    %2866 = vmatprep.subr.bf16.mxu0 0
    %2867 = vmatpush1.bf16.msra.mxu0 0
    %2868 = vmatprep.subr.bf16.mxu0 0
    %2869 = vmatpush1.bf16.msra.mxu0 0
    %2870 = vmatprep.subr.bf16.mxu0 0
    %2871 = vmatpush1.bf16.msra.mxu0 0
    %2872 = vmatprep.subr.bf16.mxu0 0
    %2873 = vmatpush1.bf16.msra.mxu0 0
    %2874 = vmatprep.subr.bf16.mxu0 0
    %2875 = vmatpush1.bf16.msra.mxu0 0
    %2876 = vmatprep.subr.bf16.mxu0 0
    %2877 = vmatpush1.bf16.msra.mxu0 0
    %2878 = vmatprep.subr.bf16.mxu0 0
    %2879 = vmatpush1.bf16.msra.mxu0 0
    %2880 = vmatprep.mubr.bf16.mxu0 0
    %2881 = vmatmul.mubr.bf16.gmra.mrb[0].mxu0 %v2594
    %v2882 = vpop.f32.mrb[0].mxu0
    %v2883 = vadd.f32 %v2643, %v2882
    %v2884 = vpop.f32.mrb[0].mxu0
    %v2885 = vpop.f32.mrb[0].mxu0
    %v2886 = vadd.f32 %v2643, %v2885
    %v2887 = vpop.f32.mrb[0].mxu0
    %2888 = vmatprep.mubr.bf16.mxu0 0
    %2889 = vmatmul.mubr.bf16.gmra.mrb[0].mxu0 %v2595
    %v2890 = vpop.f32.mrb[0].mxu0
    %v2891 = vadd.f32 %v2643, %v2890
    %v2892 = vpop.f32.mrb[0].mxu0
    %v2893 = vpop.f32.mrb[0].mxu0
    %v2894 = vadd.f32 %v2643, %v2893
    %v2895 = vpop.f32.mrb[0].mxu0
    %2896 = vmatprep.mubr.bf16.mxu0 0
    %2897 = vmatmul.mubr.bf16.gmra.mrb[0].mxu0 %v2596
    %v2898 = vpop.f32.mrb[0].mxu0
    %v2899 = vadd.f32 %v2643, %v2898
    %v2900 = vpop.f32.mrb[0].mxu0
    %v2901 = vpop.f32.mrb[0].mxu0
    %v2902 = vadd.f32 %v2643, %v2901
    %v2903 = vpop.f32.mrb[0].mxu0
    %2904 = vmatprep.mubr.bf16.mxu0 0
    %2905 = vmatmul.mubr.bf16.gmra.mrb[0].mxu0 %v2597
    %v2906 = vpop.f32.mrb[0].mxu0
    %v2907 = vadd.f32 %v2643, %v2906
    %v2908 = vpop.f32.mrb[0].mxu0
    %v2909 = vpop.f32.mrb[0].mxu0
    %v2910 = vadd.f32 %v2643, %v2909
    %v2911 = vpop.f32.mrb[0].mxu0
    %2912 = vdwg.mxu0
    %2913 = vst [vmem:[#allocation3] sm:$0xff] %v2810
    %2914 = vst [vmem:[#allocation3 + $0x8] sm:$0xff] %v2812
    %2915 = vst [vmem:[#allocation3 + $0x10] sm:$0xff] %v2883
    %2916 = vst [vmem:[#allocation3 + $0x18] sm:$0xff] %v2814
    %2917 = vst [vmem:[#allocation3 + $0x20] sm:$0xff] %v2816
    %2918 = vst [vmem:[#allocation3 + $0x28] sm:$0xff] %v2886
    %2919 = vst [vmem:[#allocation3 + $0x30] sm:$0xff] %v2820
    %2920 = vst [vmem:[#allocation3 + $0x38] sm:$0xff] %v2822
    %2921 = vst [vmem:[#allocation3 + $0x40] sm:$0xff] %v2891
    %2922 = vst [vmem:[#allocation3 + $0x48] sm:$0xff] %v2824
    %2923 = vst [vmem:[#allocation3 + $0x50] sm:$0xff] %v2826
    %2924 = vst [vmem:[#allocation3 + $0x58] sm:$0xff] %v2894
    %2925 = vst [vmem:[#allocation3 + $0x60] sm:$0xff] %v2830
    %2926 = vst [vmem:[#allocation3 + $0x68] sm:$0xff] %v2832
    %2927 = vst [vmem:[#allocation3 + $0x70] sm:$0xff] %v2899
    %2928 = vst [vmem:[#allocation3 + $0x78] sm:$0xff] %v2834
    %2929 = vst [vmem:[#allocation3 + $0x80] sm:$0xff] %v2836
    %2930 = vst [vmem:[#allocation3 + $0x88] sm:$0xff] %v2902
    %2931 = vst [vmem:[#allocation3 + $0x90] sm:$0xff] %v2840
    %2932 = vst [vmem:[#allocation3 + $0x98] sm:$0xff] %v2842
    %2933 = vst [vmem:[#allocation3 + $0xa0] sm:$0xff] %v2907
    %2934 = vst [vmem:[#allocation3 + $0xa8] sm:$0xff] %v2844
    %2935 = vst [vmem:[#allocation3 + $0xb0] sm:$0xff] %v2846
    %2936 = vst [vmem:[#allocation3 + $0xb8] sm:$0xff] %v2910
    %s2937 = scalar_lea.vmem [#allocation2], 8
    %v2938 = vld [vmem:[%s2937] sm:$0xff]
    %v2939 = vld [vmem:[%s292] sm:$0xff]
    %v2940 = vld [vmem:[%s292 + $0x8] sm:$0xff]
    %v2941 = vld [vmem:[%s292 + $0x10] sm:$0xff]
    %v2942 = vpack.c.bf16 %v2938, %v2938
    %s2943 = scalar_lea.vmem [#allocation5], 192
    %v2944 = vld [vmem:[%s2943] sm:$0xff]
    %v2945 = vld [vmem:[%s2943 + $0x8] sm:$0xf]
    %v2946 = vld [vmem:[%s2943 + $0xc] sm:$0xff]
    %v2947 = vld [vmem:[%s2943 + $0x14] sm:$0xf]
    %v2948 = vld [vmem:[%s2943 + $0x18] sm:$0xff]
    %v2949 = vld [vmem:[%s2943 + $0x20] sm:$0xf]
    %v2950 = vld [vmem:[%s2943 + $0x24] sm:$0xff]
    %v2951 = vld [vmem:[%s2943 + $0x2c] sm:$0xf]
    %v2952 = vld [vmem:[%s2943 + $0x30] sm:$0xff]
    %v2953 = vld [vmem:[%s2943 + $0x38] sm:$0xf]
    %v2954 = vld [vmem:[%s2943 + $0x3c] sm:$0xff]
    %v2955 = vld [vmem:[%s2943 + $0x44] sm:$0xf]
    %v2956 = vld [vmem:[%s2943 + $0x48] sm:$0xff]
    %v2957 = vld [vmem:[%s2943 + $0x50] sm:$0xf]
    %v2958 = vld [vmem:[%s2943 + $0x54] sm:$0xff]
    %v2959 = vld [vmem:[%s2943 + $0x5c] sm:$0xf]
    %v2960 = vld [vmem:[%s2943 + $0x60] sm:$0xff]
    %v2961 = vld [vmem:[%s2943 + $0x68] sm:$0xf]
    %v2962 = vld [vmem:[%s2943 + $0x6c] sm:$0xff]
    %v2963 = vld [vmem:[%s2943 + $0x74] sm:$0xf]
    %v2964 = vld [vmem:[%s2943 + $0x78] sm:$0xff]
    %v2965 = vld [vmem:[%s2943 + $0x80] sm:$0xf]
    %v2966 = vld [vmem:[%s2943 + $0x84] sm:$0xff]
    %v2967 = vld [vmem:[%s2943 + $0x8c] sm:$0xf]
    %v2968 = vld [vmem:[%s2943 + $0x90] sm:$0xff]
    %v2969 = vld [vmem:[%s2943 + $0x98] sm:$0xf]
    %v2970 = vld [vmem:[%s2943 + $0x9c] sm:$0xff]
    %v2971 = vld [vmem:[%s2943 + $0xa4] sm:$0xf]
    %v2972 = vld [vmem:[%s2943 + $0xa8] sm:$0xff]
    %v2973 = vld [vmem:[%s2943 + $0xb0] sm:$0xf]
    %v2974 = vld [vmem:[%s2943 + $0xb4] sm:$0xff]
    %v2975 = vld [vmem:[%s2943 + $0xbc] sm:$0xf]
    %s2976 = scalar_lea.vmem %s6, 3
    %v2977 = vld [vmem:[%s2976] sm:$0x7]
    %v2979 = vlaneseq
    %v2980 = vshrl.u32 %v2979, 7
    %v2981 = vsub.s32 0, %v2980
    %v2982 = vrot.slane %v2977, %v2981
    %v2983 = vlaneseq
    %v2984 = vshrl.u32 %v2983, 7
    %v2985 = vsub.s32 1, %v2984
    %v2986 = vrot.slane %v2977, %v2985
    %v2987 = vlaneseq
    %v2988 = vshrl.u32 %v2987, 7
    %v2989 = vsub.s32 2, %v2988
    %v2990 = vrot.slane %v2977, %v2989
    %v3026 = vunpack.c.l.b16 %v2944
    %v3027 = vunpack.c.h.b16 %v2944
    %v3028 = vunpack.c.l.b16 %v2945
    %v3029 = vunpack.c.l.b16 %v2946
    %v3030 = vunpack.c.h.b16 %v2946
    %v3031 = vunpack.c.l.b16 %v2947
    %v3032 = vunpack.c.l.b16 %v2948
    %v3033 = vunpack.c.h.b16 %v2948
    %v3034 = vunpack.c.l.b16 %v2949
    %v3035 = vunpack.c.l.b16 %v2950
    %v3036 = vunpack.c.h.b16 %v2950
    %v3037 = vunpack.c.l.b16 %v2951
    %v3038 = vunpack.c.l.b16 %v2952
    %v3039 = vunpack.c.h.b16 %v2952
    %v3040 = vunpack.c.l.b16 %v2953
    %v3041 = vunpack.c.l.b16 %v2954
    %v3042 = vunpack.c.h.b16 %v2954
    %v3043 = vunpack.c.l.b16 %v2955
    %v3044 = vunpack.c.l.b16 %v2956
    %v3045 = vunpack.c.h.b16 %v2956
    %v3046 = vunpack.c.l.b16 %v2957
    %v3047 = vunpack.c.l.b16 %v2958
    %v3048 = vunpack.c.h.b16 %v2958
    %v3049 = vunpack.c.l.b16 %v2959
    %v3050 = vunpack.c.l.b16 %v2960
    %v3051 = vunpack.c.h.b16 %v2960
    %v3052 = vunpack.c.l.b16 %v2961
    %v3053 = vunpack.c.l.b16 %v2962
    %v3054 = vunpack.c.h.b16 %v2962
    %v3055 = vunpack.c.l.b16 %v2963
    %v3056 = vunpack.c.l.b16 %v2964
    %v3057 = vunpack.c.h.b16 %v2964
    %v3058 = vunpack.c.l.b16 %v2965
    %v3059 = vunpack.c.l.b16 %v2966
    %v3060 = vunpack.c.h.b16 %v2966
    %v3061 = vunpack.c.l.b16 %v2967
    %v3062 = vunpack.c.l.b16 %v2968
    %v3063 = vunpack.c.h.b16 %v2968
    %v3064 = vunpack.c.l.b16 %v2969
    %v3065 = vunpack.c.l.b16 %v2970
    %v3066 = vunpack.c.h.b16 %v2970
    %v3067 = vunpack.c.l.b16 %v2971
    %v3068 = vunpack.c.l.b16 %v2972
    %v3069 = vunpack.c.h.b16 %v2972
    %v3070 = vunpack.c.l.b16 %v2973
    %v3071 = vunpack.c.l.b16 %v2974
    %v3072 = vunpack.c.h.b16 %v2974
    %v3073 = vunpack.c.l.b16 %v2975
    %v3074 = vpack.c.b16 %v3029, %v3026
    %v3075 = vpack.c.b16 %v3030, %v3027
    %v3076 = vpack.c.b16 %v3031, %v3028
    %v3077 = vpack.c.b16 %v3035, %v3032
    %v3078 = vpack.c.b16 %v3036, %v3033
    %v3079 = vpack.c.b16 %v3037, %v3034
    %v3080 = vpack.c.b16 %v3041, %v3038
    %v3081 = vpack.c.b16 %v3042, %v3039
    %v3082 = vpack.c.b16 %v3043, %v3040
    %v3083 = vpack.c.b16 %v3047, %v3044
    %v3084 = vpack.c.b16 %v3048, %v3045
    %v3085 = vpack.c.b16 %v3049, %v3046
    %v3086 = vpack.c.b16 %v3053, %v3050
    %v3087 = vpack.c.b16 %v3054, %v3051
    %v3088 = vpack.c.b16 %v3055, %v3052
    %v3089 = vpack.c.b16 %v3059, %v3056
    %v3090 = vpack.c.b16 %v3060, %v3057
    %v3091 = vpack.c.b16 %v3061, %v3058
    %v3092 = vpack.c.b16 %v3065, %v3062
    %v3093 = vpack.c.b16 %v3066, %v3063
    %v3094 = vpack.c.b16 %v3067, %v3064
    %v3095 = vpack.c.b16 %v3071, %v3068
    %v3096 = vpack.c.b16 %v3072, %v3069
    %v3097 = vpack.c.b16 %v3073, %v3070
    %3122 = vmatprep.subr.bf16.mxu0 %v3075
    %3123 = vmatpush1.bf16.msra.mxu0 %v3074
    %3124 = vmatprep.subr.bf16.mxu0 %v3078
    %3125 = vmatpush1.bf16.msra.mxu0 %v3077
    %3126 = vmatprep.subr.bf16.mxu0 %v3081
    %3127 = vmatpush1.bf16.msra.mxu0 %v3080
    %3128 = vmatprep.subr.bf16.mxu0 %v3084
    %3129 = vmatpush1.bf16.msra.mxu0 %v3083
    %3130 = vmatprep.subr.bf16.mxu0 %v3087
    %3131 = vmatpush1.bf16.msra.mxu0 %v3086
    %3132 = vmatprep.subr.bf16.mxu0 %v3090
    %3133 = vmatpush1.bf16.msra.mxu0 %v3089
    %3134 = vmatprep.subr.bf16.mxu0 %v3093
    %3135 = vmatpush1.bf16.msra.mxu0 %v3092
    %3136 = vmatprep.subr.bf16.mxu0 %v3096
    %3137 = vmatpush1.bf16.msra.mxu0 %v3095
    %3138 = vmatprep.subr.bf16.mxu0 0
    %3139 = vmatpush1.bf16.msra.mxu0 0
    %3140 = vmatprep.subr.bf16.mxu0 0
    %3141 = vmatpush1.bf16.msra.mxu0 0
    %3142 = vmatprep.subr.bf16.mxu0 0
    %3143 = vmatpush1.bf16.msra.mxu0 0
    %3144 = vmatprep.subr.bf16.mxu0 0
    %3145 = vmatpush1.bf16.msra.mxu0 0
    %3146 = vmatprep.subr.bf16.mxu0 0
    %3147 = vmatpush1.bf16.msra.mxu0 0
    %3148 = vmatprep.subr.bf16.mxu0 0
    %3149 = vmatpush1.bf16.msra.mxu0 0
    %3150 = vmatprep.subr.bf16.mxu0 0
    %3151 = vmatpush1.bf16.msra.mxu0 0
    %3152 = vmatprep.subr.bf16.mxu0 0
    %3153 = vmatpush1.bf16.msra.mxu0 0
    %3154 = vmatprep.mubr.bf16.mxu0 0
    %3155 = vmatmul.mubr.bf16.gmra.mrb[0].mxu0 %v2942
    %v3156 = vpop.f32.mrb[0].mxu0
    %v3157 = vadd.f32 %v2982, %v3156
    %v3158 = vpop.f32.mrb[0].mxu0
    %v3159 = vadd.f32 %v2986, %v3158
    %v3160 = vpop.f32.mrb[0].mxu0
    %v3161 = vpop.f32.mrb[0].mxu0
    %3162 = vdwg.mxu0
    %3163 = vmatprep.subr.bf16.mxu0 0
    %3164 = vmatpush1.bf16.msra.mxu0 %v3076
    %3165 = vmatprep.subr.bf16.mxu0 0
    %3166 = vmatpush1.bf16.msra.mxu0 %v3079
    %3167 = vmatprep.subr.bf16.mxu0 0
    %3168 = vmatpush1.bf16.msra.mxu0 %v3082
    %3169 = vmatprep.subr.bf16.mxu0 0
    %3170 = vmatpush1.bf16.msra.mxu0 %v3085
    %3171 = vmatprep.subr.bf16.mxu0 0
    %3172 = vmatpush1.bf16.msra.mxu0 %v3088
    %3173 = vmatprep.subr.bf16.mxu0 0
    %3174 = vmatpush1.bf16.msra.mxu0 %v3091
    %3175 = vmatprep.subr.bf16.mxu0 0
    %3176 = vmatpush1.bf16.msra.mxu0 %v3094
    %3177 = vmatprep.subr.bf16.mxu0 0
    %3178 = vmatpush1.bf16.msra.mxu0 %v3097
    %3179 = vmatprep.subr.bf16.mxu0 0
    %3180 = vmatpush1.bf16.msra.mxu0 0
    %3181 = vmatprep.subr.bf16.mxu0 0
    %3182 = vmatpush1.bf16.msra.mxu0 0
    %3183 = vmatprep.subr.bf16.mxu0 0
    %3184 = vmatpush1.bf16.msra.mxu0 0
    %3185 = vmatprep.subr.bf16.mxu0 0
    %3186 = vmatpush1.bf16.msra.mxu0 0
    %3187 = vmatprep.subr.bf16.mxu0 0
    %3188 = vmatpush1.bf16.msra.mxu0 0
    %3189 = vmatprep.subr.bf16.mxu0 0
    %3190 = vmatpush1.bf16.msra.mxu0 0
    %3191 = vmatprep.subr.bf16.mxu0 0
    %3192 = vmatpush1.bf16.msra.mxu0 0
    %3193 = vmatprep.subr.bf16.mxu0 0
    %3194 = vmatpush1.bf16.msra.mxu0 0
    %3195 = vmatprep.mubr.bf16.mxu0 0
    %3196 = vmatmul.mubr.bf16.gmra.mrb[0].mxu0 %v2942
    %v3197 = vpop.f32.mrb[0].mxu0
    %v3198 = vadd.f32 %v2990, %v3197
    %v3199 = vpop.f32.mrb[0].mxu0
    %v3200 = vpop.f32.mrb[0].mxu0
    %v3201 = vpop.f32.mrb[0].mxu0
    %3202 = vdwg.mxu0
    %v3203 = vadd.f32 %v2939, %v3157
    %v3204 = vxor.u32 %v3203, 2147483648
    %v3205 = vmul.f32 %v3204, 1.442695
    %v3206 = vpow.pop %v3205
    %v3207 = vadd.f32 %v3206, 1.0
    %v3208 = vrcp.pop %v3207
    %v3209 = vmul.f32 1.0, %v3208
    %v3210 = vadd.f32 %v2940, %v3159
    %v3211 = vxor.u32 %v3210, 2147483648
    %v3212 = vmul.f32 %v3211, 1.442695
    %v3213 = vpow.pop %v3212
    %v3214 = vadd.f32 %v3213, 1.0
    %v3215 = vrcp.pop %v3214
    %v3216 = vmul.f32 1.0, %v3215
    %v3217 = vmul.f32 %v3209, %v3198
    %v3218 = vadd.f32 %v2941, %v3217
    %v3219 = vtanh.pop %v3218
    %v3220 = vsub.f32 %v2938, %v3219
    %v3221 = vmul.f32 %v3216, %v3220
    %v3222 = vadd.f32 %v3219, %v3221
    %v3223 = vpack.c.bf16 %v3222, %v3222
    %3224 = vst [vmem:[%s7] sm:$0xf] %v3223
    %v3225 = vld [vmem:[%s578] sm:$0xff]
    %v3226 = vld [vmem:[%s578 + $0x8] sm:$0xff]
    %v3227 = vld [vmem:[%s578 + $0x10] sm:$0xff]
    %v3228 = vld [vmem:[%s2943] sm:$0xff]
    %v3229 = vld [vmem:[%s2943 + $0x8] sm:$0xf]
    %v3230 = vld [vmem:[%s2943 + $0xc] sm:$0xff]
    %v3231 = vld [vmem:[%s2943 + $0x14] sm:$0xf]
    %v3232 = vld [vmem:[%s2943 + $0x18] sm:$0xff]
    %v3233 = vld [vmem:[%s2943 + $0x20] sm:$0xf]
    %v3234 = vld [vmem:[%s2943 + $0x24] sm:$0xff]
    %v3235 = vld [vmem:[%s2943 + $0x2c] sm:$0xf]
    %v3236 = vld [vmem:[%s2943 + $0x30] sm:$0xff]
    %v3237 = vld [vmem:[%s2943 + $0x38] sm:$0xf]
    %v3238 = vld [vmem:[%s2943 + $0x3c] sm:$0xff]
    %v3239 = vld [vmem:[%s2943 + $0x44] sm:$0xf]
    %v3240 = vld [vmem:[%s2943 + $0x48] sm:$0xff]
    %v3241 = vld [vmem:[%s2943 + $0x50] sm:$0xf]
    %v3242 = vld [vmem:[%s2943 + $0x54] sm:$0xff]
    %v3243 = vld [vmem:[%s2943 + $0x5c] sm:$0xf]
    %v3244 = vld [vmem:[%s2943 + $0x60] sm:$0xff]
    %v3245 = vld [vmem:[%s2943 + $0x68] sm:$0xf]
    %v3246 = vld [vmem:[%s2943 + $0x6c] sm:$0xff]
    %v3247 = vld [vmem:[%s2943 + $0x74] sm:$0xf]
    %v3248 = vld [vmem:[%s2943 + $0x78] sm:$0xff]
    %v3249 = vld [vmem:[%s2943 + $0x80] sm:$0xf]
    %v3250 = vld [vmem:[%s2943 + $0x84] sm:$0xff]
    %v3251 = vld [vmem:[%s2943 + $0x8c] sm:$0xf]
    %v3252 = vld [vmem:[%s2943 + $0x90] sm:$0xff]
    %v3253 = vld [vmem:[%s2943 + $0x98] sm:$0xf]
    %v3254 = vld [vmem:[%s2943 + $0x9c] sm:$0xff]
    %v3255 = vld [vmem:[%s2943 + $0xa4] sm:$0xf]
    %v3256 = vld [vmem:[%s2943 + $0xa8] sm:$0xff]
    %v3257 = vld [vmem:[%s2943 + $0xb0] sm:$0xf]
    %v3258 = vld [vmem:[%s2943 + $0xb4] sm:$0xff]
    %v3259 = vld [vmem:[%s2943 + $0xbc] sm:$0xf]
    %v3260 = vld [vmem:[%s2976] sm:$0x7]
    %v3262 = vlaneseq
    %v3263 = vshrl.u32 %v3262, 7
    %v3264 = vsub.s32 0, %v3263
    %v3265 = vrot.slane %v3260, %v3264
    %v3266 = vlaneseq
    %v3267 = vshrl.u32 %v3266, 7
    %v3268 = vsub.s32 1, %v3267
    %v3269 = vrot.slane %v3260, %v3268
    %v3270 = vlaneseq
    %v3271 = vshrl.u32 %v3270, 7
    %v3272 = vsub.s32 2, %v3271
    %v3273 = vrot.slane %v3260, %v3272
    %v3309 = vunpack.c.l.b16 %v3228
    %v3310 = vunpack.c.h.b16 %v3228
    %v3311 = vunpack.c.l.b16 %v3229
    %v3312 = vunpack.c.l.b16 %v3230
    %v3313 = vunpack.c.h.b16 %v3230
    %v3314 = vunpack.c.l.b16 %v3231
    %v3315 = vunpack.c.l.b16 %v3232
    %v3316 = vunpack.c.h.b16 %v3232
    %v3317 = vunpack.c.l.b16 %v3233
    %v3318 = vunpack.c.l.b16 %v3234
    %v3319 = vunpack.c.h.b16 %v3234
    %v3320 = vunpack.c.l.b16 %v3235
    %v3321 = vunpack.c.l.b16 %v3236
    %v3322 = vunpack.c.h.b16 %v3236
    %v3323 = vunpack.c.l.b16 %v3237
    %v3324 = vunpack.c.l.b16 %v3238
    %v3325 = vunpack.c.h.b16 %v3238
    %v3326 = vunpack.c.l.b16 %v3239
    %v3327 = vunpack.c.l.b16 %v3240
    %v3328 = vunpack.c.h.b16 %v3240
    %v3329 = vunpack.c.l.b16 %v3241
    %v3330 = vunpack.c.l.b16 %v3242
    %v3331 = vunpack.c.h.b16 %v3242
    %v3332 = vunpack.c.l.b16 %v3243
    %v3333 = vunpack.c.l.b16 %v3244
    %v3334 = vunpack.c.h.b16 %v3244
    %v3335 = vunpack.c.l.b16 %v3245
    %v3336 = vunpack.c.l.b16 %v3246
    %v3337 = vunpack.c.h.b16 %v3246
    %v3338 = vunpack.c.l.b16 %v3247
    %v3339 = vunpack.c.l.b16 %v3248
    %v3340 = vunpack.c.h.b16 %v3248
    %v3341 = vunpack.c.l.b16 %v3249
    %v3342 = vunpack.c.l.b16 %v3250
    %v3343 = vunpack.c.h.b16 %v3250
    %v3344 = vunpack.c.l.b16 %v3251
    %v3345 = vunpack.c.l.b16 %v3252
    %v3346 = vunpack.c.h.b16 %v3252
    %v3347 = vunpack.c.l.b16 %v3253
    %v3348 = vunpack.c.l.b16 %v3254
    %v3349 = vunpack.c.h.b16 %v3254
    %v3350 = vunpack.c.l.b16 %v3255
    %v3351 = vunpack.c.l.b16 %v3256
    %v3352 = vunpack.c.h.b16 %v3256
    %v3353 = vunpack.c.l.b16 %v3257
    %v3354 = vunpack.c.l.b16 %v3258
    %v3355 = vunpack.c.h.b16 %v3258
    %v3356 = vunpack.c.l.b16 %v3259
    %v3357 = vpack.c.b16 %v3312, %v3309
    %v3358 = vpack.c.b16 %v3313, %v3310
    %v3359 = vpack.c.b16 %v3314, %v3311
    %v3360 = vpack.c.b16 %v3318, %v3315
    %v3361 = vpack.c.b16 %v3319, %v3316
    %v3362 = vpack.c.b16 %v3320, %v3317
    %v3363 = vpack.c.b16 %v3324, %v3321
    %v3364 = vpack.c.b16 %v3325, %v3322
    %v3365 = vpack.c.b16 %v3326, %v3323
    %v3366 = vpack.c.b16 %v3330, %v3327
    %v3367 = vpack.c.b16 %v3331, %v3328
    %v3368 = vpack.c.b16 %v3332, %v3329
    %v3369 = vpack.c.b16 %v3336, %v3333
    %v3370 = vpack.c.b16 %v3337, %v3334
    %v3371 = vpack.c.b16 %v3338, %v3335
    %v3372 = vpack.c.b16 %v3342, %v3339
    %v3373 = vpack.c.b16 %v3343, %v3340
    %v3374 = vpack.c.b16 %v3344, %v3341
    %v3375 = vpack.c.b16 %v3348, %v3345
    %v3376 = vpack.c.b16 %v3349, %v3346
    %v3377 = vpack.c.b16 %v3350, %v3347
    %v3378 = vpack.c.b16 %v3354, %v3351
    %v3379 = vpack.c.b16 %v3355, %v3352
    %v3380 = vpack.c.b16 %v3356, %v3353
    %3405 = vmatprep.subr.bf16.mxu0 %v3358
    %3406 = vmatpush1.bf16.msra.mxu0 %v3357
    %3407 = vmatprep.subr.bf16.mxu0 %v3361
    %3408 = vmatpush1.bf16.msra.mxu0 %v3360
    %3409 = vmatprep.subr.bf16.mxu0 %v3364
    %3410 = vmatpush1.bf16.msra.mxu0 %v3363
    %3411 = vmatprep.subr.bf16.mxu0 %v3367
    %3412 = vmatpush1.bf16.msra.mxu0 %v3366
    %3413 = vmatprep.subr.bf16.mxu0 %v3370
    %3414 = vmatpush1.bf16.msra.mxu0 %v3369
    %3415 = vmatprep.subr.bf16.mxu0 %v3373
    %3416 = vmatpush1.bf16.msra.mxu0 %v3372
    %3417 = vmatprep.subr.bf16.mxu0 %v3376
    %3418 = vmatpush1.bf16.msra.mxu0 %v3375
    %3419 = vmatprep.subr.bf16.mxu0 %v3379
    %3420 = vmatpush1.bf16.msra.mxu0 %v3378
    %3421 = vmatprep.subr.bf16.mxu0 0
    %3422 = vmatpush1.bf16.msra.mxu0 0
    %3423 = vmatprep.subr.bf16.mxu0 0
    %3424 = vmatpush1.bf16.msra.mxu0 0
    %3425 = vmatprep.subr.bf16.mxu0 0
    %3426 = vmatpush1.bf16.msra.mxu0 0
    %3427 = vmatprep.subr.bf16.mxu0 0
    %3428 = vmatpush1.bf16.msra.mxu0 0
    %3429 = vmatprep.subr.bf16.mxu0 0
    %3430 = vmatpush1.bf16.msra.mxu0 0
    %3431 = vmatprep.subr.bf16.mxu0 0
    %3432 = vmatpush1.bf16.msra.mxu0 0
    %3433 = vmatprep.subr.bf16.mxu0 0
    %3434 = vmatpush1.bf16.msra.mxu0 0
    %3435 = vmatprep.subr.bf16.mxu0 0
    %3436 = vmatpush1.bf16.msra.mxu0 0
    %3437 = vmatprep.mubr.bf16.mxu0 0
    %3438 = vmatmul.mubr.bf16.gmra.mrb[0].mxu0 %v3223
    %v3439 = vpop.f32.mrb[0].mxu0
    %v3440 = vadd.f32 %v3265, %v3439
    %v3441 = vpop.f32.mrb[0].mxu0
    %v3442 = vadd.f32 %v3269, %v3441
    %v3443 = vpop.f32.mrb[0].mxu0
    %v3444 = vpop.f32.mrb[0].mxu0
    %3445 = vdwg.mxu0
    %3446 = vmatprep.subr.bf16.mxu0 0
    %3447 = vmatpush1.bf16.msra.mxu0 %v3359
    %3448 = vmatprep.subr.bf16.mxu0 0
    %3449 = vmatpush1.bf16.msra.mxu0 %v3362
    %3450 = vmatprep.subr.bf16.mxu0 0
    %3451 = vmatpush1.bf16.msra.mxu0 %v3365
    %3452 = vmatprep.subr.bf16.mxu0 0
    %3453 = vmatpush1.bf16.msra.mxu0 %v3368
    %3454 = vmatprep.subr.bf16.mxu0 0
    %3455 = vmatpush1.bf16.msra.mxu0 %v3371
    %3456 = vmatprep.subr.bf16.mxu0 0
    %3457 = vmatpush1.bf16.msra.mxu0 %v3374
    %3458 = vmatprep.subr.bf16.mxu0 0
    %3459 = vmatpush1.bf16.msra.mxu0 %v3377
    %3460 = vmatprep.subr.bf16.mxu0 0
    %3461 = vmatpush1.bf16.msra.mxu0 %v3380
    %3462 = vmatprep.subr.bf16.mxu0 0
    %3463 = vmatpush1.bf16.msra.mxu0 0
    %3464 = vmatprep.subr.bf16.mxu0 0
    %3465 = vmatpush1.bf16.msra.mxu0 0
    %3466 = vmatprep.subr.bf16.mxu0 0
    %3467 = vmatpush1.bf16.msra.mxu0 0
    %3468 = vmatprep.subr.bf16.mxu0 0
    %3469 = vmatpush1.bf16.msra.mxu0 0
    %3470 = vmatprep.subr.bf16.mxu0 0
    %3471 = vmatpush1.bf16.msra.mxu0 0
    %3472 = vmatprep.subr.bf16.mxu0 0
    %3473 = vmatpush1.bf16.msra.mxu0 0
    %3474 = vmatprep.subr.bf16.mxu0 0
    %3475 = vmatpush1.bf16.msra.mxu0 0
    %3476 = vmatprep.subr.bf16.mxu0 0
    %3477 = vmatpush1.bf16.msra.mxu0 0
    %3478 = vmatprep.mubr.bf16.mxu0 0
    %3479 = vmatmul.mubr.bf16.gmra.mrb[0].mxu0 %v3223
    %v3480 = vpop.f32.mrb[0].mxu0
    %v3481 = vadd.f32 %v3273, %v3480
    %v3482 = vpop.f32.mrb[0].mxu0
    %v3483 = vpop.f32.mrb[0].mxu0
    %v3484 = vpop.f32.mrb[0].mxu0
    %3485 = vdwg.mxu0
    %v3486 = vadd.f32 %v3225, %v3440
    %v3487 = vxor.u32 %v3486, 2147483648
    %v3488 = vmul.f32 %v3487, 1.442695
    %v3489 = vpow.pop %v3488
    %v3490 = vadd.f32 %v3489, 1.0
    %v3491 = vrcp.pop %v3490
    %v3492 = vmul.f32 1.0, %v3491
    %v3493 = vadd.f32 %v3226, %v3442
    %v3494 = vxor.u32 %v3493, 2147483648
    %v3495 = vmul.f32 %v3494, 1.442695
    %v3496 = vpow.pop %v3495
    %v3497 = vadd.f32 %v3496, 1.0
    %v3498 = vrcp.pop %v3497
    %v3499 = vmul.f32 1.0, %v3498
    %v3500 = vmul.f32 %v3492, %v3481
    %v3501 = vadd.f32 %v3227, %v3500
    %v3502 = vtanh.pop %v3501
    %v3503 = vsub.f32 %v3222, %v3502
    %v3504 = vmul.f32 %v3499, %v3503
    %v3505 = vadd.f32 %v3502, %v3504
    %v3506 = vpack.c.bf16 %v3505, %v3505
    %s3507 = scalar_lea.vmem %s7, 4
    %3508 = vst [vmem:[%s3507] sm:$0xf] %v3506
    %v3509 = vld [vmem:[%s865] sm:$0xff]
    %v3510 = vld [vmem:[%s865 + $0x8] sm:$0xff]
    %v3511 = vld [vmem:[%s865 + $0x10] sm:$0xff]
    %v3512 = vld [vmem:[%s2943] sm:$0xff]
    %v3513 = vld [vmem:[%s2943 + $0x8] sm:$0xf]
    %v3514 = vld [vmem:[%s2943 + $0xc] sm:$0xff]
    %v3515 = vld [vmem:[%s2943 + $0x14] sm:$0xf]
    %v3516 = vld [vmem:[%s2943 + $0x18] sm:$0xff]
    %v3517 = vld [vmem:[%s2943 + $0x20] sm:$0xf]
    %v3518 = vld [vmem:[%s2943 + $0x24] sm:$0xff]
    %v3519 = vld [vmem:[%s2943 + $0x2c] sm:$0xf]
    %v3520 = vld [vmem:[%s2943 + $0x30] sm:$0xff]
    %v3521 = vld [vmem:[%s2943 + $0x38] sm:$0xf]
    %v3522 = vld [vmem:[%s2943 + $0x3c] sm:$0xff]
    %v3523 = vld [vmem:[%s2943 + $0x44] sm:$0xf]
    %v3524 = vld [vmem:[%s2943 + $0x48] sm:$0xff]
    %v3525 = vld [vmem:[%s2943 + $0x50] sm:$0xf]
    %v3526 = vld [vmem:[%s2943 + $0x54] sm:$0xff]
    %v3527 = vld [vmem:[%s2943 + $0x5c] sm:$0xf]
    %v3528 = vld [vmem:[%s2943 + $0x60] sm:$0xff]
    %v3529 = vld [vmem:[%s2943 + $0x68] sm:$0xf]
    %v3530 = vld [vmem:[%s2943 + $0x6c] sm:$0xff]
    %v3531 = vld [vmem:[%s2943 + $0x74] sm:$0xf]
    %v3532 = vld [vmem:[%s2943 + $0x78] sm:$0xff]
    %v3533 = vld [vmem:[%s2943 + $0x80] sm:$0xf]
    %v3534 = vld [vmem:[%s2943 + $0x84] sm:$0xff]
    %v3535 = vld [vmem:[%s2943 + $0x8c] sm:$0xf]
    %v3536 = vld [vmem:[%s2943 + $0x90] sm:$0xff]
    %v3537 = vld [vmem:[%s2943 + $0x98] sm:$0xf]
    %v3538 = vld [vmem:[%s2943 + $0x9c] sm:$0xff]
    %v3539 = vld [vmem:[%s2943 + $0xa4] sm:$0xf]
    %v3540 = vld [vmem:[%s2943 + $0xa8] sm:$0xff]
    %v3541 = vld [vmem:[%s2943 + $0xb0] sm:$0xf]
    %v3542 = vld [vmem:[%s2943 + $0xb4] sm:$0xff]
    %v3543 = vld [vmem:[%s2943 + $0xbc] sm:$0xf]
    %v3544 = vld [vmem:[%s2976] sm:$0x7]
    %v3546 = vlaneseq
    %v3547 = vshrl.u32 %v3546, 7
    %v3548 = vsub.s32 0, %v3547
    %v3549 = vrot.slane %v3544, %v3548
    %v3550 = vlaneseq
    %v3551 = vshrl.u32 %v3550, 7
    %v3552 = vsub.s32 1, %v3551
    %v3553 = vrot.slane %v3544, %v3552
    %v3554 = vlaneseq
    %v3555 = vshrl.u32 %v3554, 7
    %v3556 = vsub.s32 2, %v3555
    %v3557 = vrot.slane %v3544, %v3556
    %v3593 = vunpack.c.l.b16 %v3512
    %v3594 = vunpack.c.h.b16 %v3512
    %v3595 = vunpack.c.l.b16 %v3513
    %v3596 = vunpack.c.l.b16 %v3514
    %v3597 = vunpack.c.h.b16 %v3514
    %v3598 = vunpack.c.l.b16 %v3515
    %v3599 = vunpack.c.l.b16 %v3516
    %v3600 = vunpack.c.h.b16 %v3516
    %v3601 = vunpack.c.l.b16 %v3517
    %v3602 = vunpack.c.l.b16 %v3518
    %v3603 = vunpack.c.h.b16 %v3518
    %v3604 = vunpack.c.l.b16 %v3519
    %v3605 = vunpack.c.l.b16 %v3520
    %v3606 = vunpack.c.h.b16 %v3520
    %v3607 = vunpack.c.l.b16 %v3521
    %v3608 = vunpack.c.l.b16 %v3522
    %v3609 = vunpack.c.h.b16 %v3522
    %v3610 = vunpack.c.l.b16 %v3523
    %v3611 = vunpack.c.l.b16 %v3524
    %v3612 = vunpack.c.h.b16 %v3524
    %v3613 = vunpack.c.l.b16 %v3525
    %v3614 = vunpack.c.l.b16 %v3526
    %v3615 = vunpack.c.h.b16 %v3526
    %v3616 = vunpack.c.l.b16 %v3527
    %v3617 = vunpack.c.l.b16 %v3528
    %v3618 = vunpack.c.h.b16 %v3528
    %v3619 = vunpack.c.l.b16 %v3529
    %v3620 = vunpack.c.l.b16 %v3530
    %v3621 = vunpack.c.h.b16 %v3530
    %v3622 = vunpack.c.l.b16 %v3531
    %v3623 = vunpack.c.l.b16 %v3532
    %v3624 = vunpack.c.h.b16 %v3532
    %v3625 = vunpack.c.l.b16 %v3533
    %v3626 = vunpack.c.l.b16 %v3534
    %v3627 = vunpack.c.h.b16 %v3534
    %v3628 = vunpack.c.l.b16 %v3535
    %v3629 = vunpack.c.l.b16 %v3536
    %v3630 = vunpack.c.h.b16 %v3536
    %v3631 = vunpack.c.l.b16 %v3537
    %v3632 = vunpack.c.l.b16 %v3538
    %v3633 = vunpack.c.h.b16 %v3538
    %v3634 = vunpack.c.l.b16 %v3539
    %v3635 = vunpack.c.l.b16 %v3540
    %v3636 = vunpack.c.h.b16 %v3540
    %v3637 = vunpack.c.l.b16 %v3541
    %v3638 = vunpack.c.l.b16 %v3542
    %v3639 = vunpack.c.h.b16 %v3542
    %v3640 = vunpack.c.l.b16 %v3543
    %v3641 = vpack.c.b16 %v3596, %v3593
    %v3642 = vpack.c.b16 %v3597, %v3594
    %v3643 = vpack.c.b16 %v3598, %v3595
    %v3644 = vpack.c.b16 %v3602, %v3599
    %v3645 = vpack.c.b16 %v3603, %v3600
    %v3646 = vpack.c.b16 %v3604, %v3601
    %v3647 = vpack.c.b16 %v3608, %v3605
    %v3648 = vpack.c.b16 %v3609, %v3606
    %v3649 = vpack.c.b16 %v3610, %v3607
    %v3650 = vpack.c.b16 %v3614, %v3611
    %v3651 = vpack.c.b16 %v3615, %v3612
    %v3652 = vpack.c.b16 %v3616, %v3613
    %v3653 = vpack.c.b16 %v3620, %v3617
    %v3654 = vpack.c.b16 %v3621, %v3618
    %v3655 = vpack.c.b16 %v3622, %v3619
    %v3656 = vpack.c.b16 %v3626, %v3623
    %v3657 = vpack.c.b16 %v3627, %v3624
    %v3658 = vpack.c.b16 %v3628, %v3625
    %v3659 = vpack.c.b16 %v3632, %v3629
    %v3660 = vpack.c.b16 %v3633, %v3630
    %v3661 = vpack.c.b16 %v3634, %v3631
    %v3662 = vpack.c.b16 %v3638, %v3635
    %v3663 = vpack.c.b16 %v3639, %v3636
    %v3664 = vpack.c.b16 %v3640, %v3637
    %3689 = vmatprep.subr.bf16.mxu0 %v3642
    %3690 = vmatpush1.bf16.msra.mxu0 %v3641
    %3691 = vmatprep.subr.bf16.mxu0 %v3645
    %3692 = vmatpush1.bf16.msra.mxu0 %v3644
    %3693 = vmatprep.subr.bf16.mxu0 %v3648
    %3694 = vmatpush1.bf16.msra.mxu0 %v3647
    %3695 = vmatprep.subr.bf16.mxu0 %v3651
    %3696 = vmatpush1.bf16.msra.mxu0 %v3650
    %3697 = vmatprep.subr.bf16.mxu0 %v3654
    %3698 = vmatpush1.bf16.msra.mxu0 %v3653
    %3699 = vmatprep.subr.bf16.mxu0 %v3657
    %3700 = vmatpush1.bf16.msra.mxu0 %v3656
    %3701 = vmatprep.subr.bf16.mxu0 %v3660
    %3702 = vmatpush1.bf16.msra.mxu0 %v3659
    %3703 = vmatprep.subr.bf16.mxu0 %v3663
    %3704 = vmatpush1.bf16.msra.mxu0 %v3662
    %3705 = vmatprep.subr.bf16.mxu0 0
    %3706 = vmatpush1.bf16.msra.mxu0 0
    %3707 = vmatprep.subr.bf16.mxu0 0
    %3708 = vmatpush1.bf16.msra.mxu0 0
    %3709 = vmatprep.subr.bf16.mxu0 0
    %3710 = vmatpush1.bf16.msra.mxu0 0
    %3711 = vmatprep.subr.bf16.mxu0 0
    %3712 = vmatpush1.bf16.msra.mxu0 0
    %3713 = vmatprep.subr.bf16.mxu0 0
    %3714 = vmatpush1.bf16.msra.mxu0 0
    %3715 = vmatprep.subr.bf16.mxu0 0
    %3716 = vmatpush1.bf16.msra.mxu0 0
    %3717 = vmatprep.subr.bf16.mxu0 0
    %3718 = vmatpush1.bf16.msra.mxu0 0
    %3719 = vmatprep.subr.bf16.mxu0 0
    %3720 = vmatpush1.bf16.msra.mxu0 0
    %3721 = vmatprep.mubr.bf16.mxu0 0
    %3722 = vmatmul.mubr.bf16.gmra.mrb[0].mxu0 %v3506
    %v3723 = vpop.f32.mrb[0].mxu0
    %v3724 = vadd.f32 %v3549, %v3723
    %v3725 = vpop.f32.mrb[0].mxu0
    %v3726 = vadd.f32 %v3553, %v3725
    %v3727 = vpop.f32.mrb[0].mxu0
    %v3728 = vpop.f32.mrb[0].mxu0
    %3729 = vdwg.mxu0
    %3730 = vmatprep.subr.bf16.mxu0 0
    %3731 = vmatpush1.bf16.msra.mxu0 %v3643
    %3732 = vmatprep.subr.bf16.mxu0 0
    %3733 = vmatpush1.bf16.msra.mxu0 %v3646
    %3734 = vmatprep.subr.bf16.mxu0 0
    %3735 = vmatpush1.bf16.msra.mxu0 %v3649
    %3736 = vmatprep.subr.bf16.mxu0 0
    %3737 = vmatpush1.bf16.msra.mxu0 %v3652
    %3738 = vmatprep.subr.bf16.mxu0 0
    %3739 = vmatpush1.bf16.msra.mxu0 %v3655
    %3740 = vmatprep.subr.bf16.mxu0 0
    %3741 = vmatpush1.bf16.msra.mxu0 %v3658
    %3742 = vmatprep.subr.bf16.mxu0 0
    %3743 = vmatpush1.bf16.msra.mxu0 %v3661
    %3744 = vmatprep.subr.bf16.mxu0 0
    %3745 = vmatpush1.bf16.msra.mxu0 %v3664
    %3746 = vmatprep.subr.bf16.mxu0 0
    %3747 = vmatpush1.bf16.msra.mxu0 0
    %3748 = vmatprep.subr.bf16.mxu0 0
    %3749 = vmatpush1.bf16.msra.mxu0 0
    %3750 = vmatprep.subr.bf16.mxu0 0
    %3751 = vmatpush1.bf16.msra.mxu0 0
    %3752 = vmatprep.subr.bf16.mxu0 0
    %3753 = vmatpush1.bf16.msra.mxu0 0
    %3754 = vmatprep.subr.bf16.mxu0 0
    %3755 = vmatpush1.bf16.msra.mxu0 0
    %3756 = vmatprep.subr.bf16.mxu0 0
    %3757 = vmatpush1.bf16.msra.mxu0 0
    %3758 = vmatprep.subr.bf16.mxu0 0
    %3759 = vmatpush1.bf16.msra.mxu0 0
    %3760 = vmatprep.subr.bf16.mxu0 0
    %3761 = vmatpush1.bf16.msra.mxu0 0
    %3762 = vmatprep.mubr.bf16.mxu0 0
    %3763 = vmatmul.mubr.bf16.gmra.mrb[0].mxu0 %v3506
    %v3764 = vpop.f32.mrb[0].mxu0
    %v3765 = vadd.f32 %v3557, %v3764
    %v3766 = vpop.f32.mrb[0].mxu0
    %v3767 = vpop.f32.mrb[0].mxu0
    %v3768 = vpop.f32.mrb[0].mxu0
    %3769 = vdwg.mxu0
    %v3770 = vadd.f32 %v3509, %v3724
    %v3771 = vxor.u32 %v3770, 2147483648
    %v3772 = vmul.f32 %v3771, 1.442695
    %v3773 = vpow.pop %v3772
    %v3774 = vadd.f32 %v3773, 1.0
    %v3775 = vrcp.pop %v3774
    %v3776 = vmul.f32 1.0, %v3775
    %v3777 = vadd.f32 %v3510, %v3726
    %v3778 = vxor.u32 %v3777, 2147483648
    %v3779 = vmul.f32 %v3778, 1.442695
    %v3780 = vpow.pop %v3779
    %v3781 = vadd.f32 %v3780, 1.0
    %v3782 = vrcp.pop %v3781
    %v3783 = vmul.f32 1.0, %v3782
    %v3784 = vmul.f32 %v3776, %v3765
    %v3785 = vadd.f32 %v3511, %v3784
    %v3786 = vtanh.pop %v3785
    %v3787 = vsub.f32 %v3505, %v3786
    %v3788 = vmul.f32 %v3783, %v3787
    %v3789 = vadd.f32 %v3786, %v3788
    %v3790 = vpack.c.bf16 %v3789, %v3789
    %s3791 = scalar_lea.vmem %s7, 8
    %3792 = vst [vmem:[%s3791] sm:$0xf] %v3790
    %v3793 = vld [vmem:[%s1152] sm:$0xff]
    %v3794 = vld [vmem:[%s1152 + $0x8] sm:$0xff]
    %v3795 = vld [vmem:[%s1152 + $0x10] sm:$0xff]
    %v3796 = vld [vmem:[%s2943] sm:$0xff]
    %v3797 = vld [vmem:[%s2943 + $0x8] sm:$0xf]
    %v3798 = vld [vmem:[%s2943 + $0xc] sm:$0xff]
    %v3799 = vld [vmem:[%s2943 + $0x14] sm:$0xf]
    %v3800 = vld [vmem:[%s2943 + $0x18] sm:$0xff]
    %v3801 = vld [vmem:[%s2943 + $0x20] sm:$0xf]
    %v3802 = vld [vmem:[%s2943 + $0x24] sm:$0xff]
    %v3803 = vld [vmem:[%s2943 + $0x2c] sm:$0xf]
    %v3804 = vld [vmem:[%s2943 + $0x30] sm:$0xff]
    %v3805 = vld [vmem:[%s2943 + $0x38] sm:$0xf]
    %v3806 = vld [vmem:[%s2943 + $0x3c] sm:$0xff]
    %v3807 = vld [vmem:[%s2943 + $0x44] sm:$0xf]
    %v3808 = vld [vmem:[%s2943 + $0x48] sm:$0xff]
    %v3809 = vld [vmem:[%s2943 + $0x50] sm:$0xf]
    %v3810 = vld [vmem:[%s2943 + $0x54] sm:$0xff]
    %v3811 = vld [vmem:[%s2943 + $0x5c] sm:$0xf]
    %v3812 = vld [vmem:[%s2943 + $0x60] sm:$0xff]
    %v3813 = vld [vmem:[%s2943 + $0x68] sm:$0xf]
    %v3814 = vld [vmem:[%s2943 + $0x6c] sm:$0xff]
    %v3815 = vld [vmem:[%s2943 + $0x74] sm:$0xf]
    %v3816 = vld [vmem:[%s2943 + $0x78] sm:$0xff]
    %v3817 = vld [vmem:[%s2943 + $0x80] sm:$0xf]
    %v3818 = vld [vmem:[%s2943 + $0x84] sm:$0xff]
    %v3819 = vld [vmem:[%s2943 + $0x8c] sm:$0xf]
    %v3820 = vld [vmem:[%s2943 + $0x90] sm:$0xff]
    %v3821 = vld [vmem:[%s2943 + $0x98] sm:$0xf]
    %v3822 = vld [vmem:[%s2943 + $0x9c] sm:$0xff]
    %v3823 = vld [vmem:[%s2943 + $0xa4] sm:$0xf]
    %v3824 = vld [vmem:[%s2943 + $0xa8] sm:$0xff]
    %v3825 = vld [vmem:[%s2943 + $0xb0] sm:$0xf]
    %v3826 = vld [vmem:[%s2943 + $0xb4] sm:$0xff]
    %v3827 = vld [vmem:[%s2943 + $0xbc] sm:$0xf]
    %v3828 = vld [vmem:[%s2976] sm:$0x7]
    %v3830 = vlaneseq
    %v3831 = vshrl.u32 %v3830, 7
    %v3832 = vsub.s32 0, %v3831
    %v3833 = vrot.slane %v3828, %v3832
    %v3834 = vlaneseq
    %v3835 = vshrl.u32 %v3834, 7
    %v3836 = vsub.s32 1, %v3835
    %v3837 = vrot.slane %v3828, %v3836
    %v3838 = vlaneseq
    %v3839 = vshrl.u32 %v3838, 7
    %v3840 = vsub.s32 2, %v3839
    %v3841 = vrot.slane %v3828, %v3840
    %v3877 = vunpack.c.l.b16 %v3796
    %v3878 = vunpack.c.h.b16 %v3796
    %v3879 = vunpack.c.l.b16 %v3797
    %v3880 = vunpack.c.l.b16 %v3798
    %v3881 = vunpack.c.h.b16 %v3798
    %v3882 = vunpack.c.l.b16 %v3799
    %v3883 = vunpack.c.l.b16 %v3800
    %v3884 = vunpack.c.h.b16 %v3800
    %v3885 = vunpack.c.l.b16 %v3801
    %v3886 = vunpack.c.l.b16 %v3802
    %v3887 = vunpack.c.h.b16 %v3802
    %v3888 = vunpack.c.l.b16 %v3803
    %v3889 = vunpack.c.l.b16 %v3804
    %v3890 = vunpack.c.h.b16 %v3804
    %v3891 = vunpack.c.l.b16 %v3805
    %v3892 = vunpack.c.l.b16 %v3806
    %v3893 = vunpack.c.h.b16 %v3806
    %v3894 = vunpack.c.l.b16 %v3807
    %v3895 = vunpack.c.l.b16 %v3808
    %v3896 = vunpack.c.h.b16 %v3808
    %v3897 = vunpack.c.l.b16 %v3809
    %v3898 = vunpack.c.l.b16 %v3810
    %v3899 = vunpack.c.h.b16 %v3810
    %v3900 = vunpack.c.l.b16 %v3811
    %v3901 = vunpack.c.l.b16 %v3812
    %v3902 = vunpack.c.h.b16 %v3812
    %v3903 = vunpack.c.l.b16 %v3813
    %v3904 = vunpack.c.l.b16 %v3814
    %v3905 = vunpack.c.h.b16 %v3814
    %v3906 = vunpack.c.l.b16 %v3815
    %v3907 = vunpack.c.l.b16 %v3816
    %v3908 = vunpack.c.h.b16 %v3816
    %v3909 = vunpack.c.l.b16 %v3817
    %v3910 = vunpack.c.l.b16 %v3818
    %v3911 = vunpack.c.h.b16 %v3818
    %v3912 = vunpack.c.l.b16 %v3819
    %v3913 = vunpack.c.l.b16 %v3820
    %v3914 = vunpack.c.h.b16 %v3820
    %v3915 = vunpack.c.l.b16 %v3821
    %v3916 = vunpack.c.l.b16 %v3822
    %v3917 = vunpack.c.h.b16 %v3822
    %v3918 = vunpack.c.l.b16 %v3823
    %v3919 = vunpack.c.l.b16 %v3824
    %v3920 = vunpack.c.h.b16 %v3824
    %v3921 = vunpack.c.l.b16 %v3825
    %v3922 = vunpack.c.l.b16 %v3826
    %v3923 = vunpack.c.h.b16 %v3826
    %v3924 = vunpack.c.l.b16 %v3827
    %v3925 = vpack.c.b16 %v3880, %v3877
    %v3926 = vpack.c.b16 %v3881, %v3878
    %v3927 = vpack.c.b16 %v3882, %v3879
    %v3928 = vpack.c.b16 %v3886, %v3883
    %v3929 = vpack.c.b16 %v3887, %v3884
    %v3930 = vpack.c.b16 %v3888, %v3885
    %v3931 = vpack.c.b16 %v3892, %v3889
    %v3932 = vpack.c.b16 %v3893, %v3890
    %v3933 = vpack.c.b16 %v3894, %v3891
    %v3934 = vpack.c.b16 %v3898, %v3895
    %v3935 = vpack.c.b16 %v3899, %v3896
    %v3936 = vpack.c.b16 %v3900, %v3897
    %v3937 = vpack.c.b16 %v3904, %v3901
    %v3938 = vpack.c.b16 %v3905, %v3902
    %v3939 = vpack.c.b16 %v3906, %v3903
    %v3940 = vpack.c.b16 %v3910, %v3907
    %v3941 = vpack.c.b16 %v3911, %v3908
    %v3942 = vpack.c.b16 %v3912, %v3909
    %v3943 = vpack.c.b16 %v3916, %v3913
    %v3944 = vpack.c.b16 %v3917, %v3914
    %v3945 = vpack.c.b16 %v3918, %v3915
    %v3946 = vpack.c.b16 %v3922, %v3919
    %v3947 = vpack.c.b16 %v3923, %v3920
    %v3948 = vpack.c.b16 %v3924, %v3921
    %3973 = vmatprep.subr.bf16.mxu0 %v3926
    %3974 = vmatpush1.bf16.msra.mxu0 %v3925
    %3975 = vmatprep.subr.bf16.mxu0 %v3929
    %3976 = vmatpush1.bf16.msra.mxu0 %v3928
    %3977 = vmatprep.subr.bf16.mxu0 %v3932
    %3978 = vmatpush1.bf16.msra.mxu0 %v3931
    %3979 = vmatprep.subr.bf16.mxu0 %v3935
    %3980 = vmatpush1.bf16.msra.mxu0 %v3934
    %3981 = vmatprep.subr.bf16.mxu0 %v3938
    %3982 = vmatpush1.bf16.msra.mxu0 %v3937
    %3983 = vmatprep.subr.bf16.mxu0 %v3941
    %3984 = vmatpush1.bf16.msra.mxu0 %v3940
    %3985 = vmatprep.subr.bf16.mxu0 %v3944
    %3986 = vmatpush1.bf16.msra.mxu0 %v3943
    %3987 = vmatprep.subr.bf16.mxu0 %v3947
    %3988 = vmatpush1.bf16.msra.mxu0 %v3946
    %3989 = vmatprep.subr.bf16.mxu0 0
    %3990 = vmatpush1.bf16.msra.mxu0 0
    %3991 = vmatprep.subr.bf16.mxu0 0
    %3992 = vmatpush1.bf16.msra.mxu0 0
    %3993 = vmatprep.subr.bf16.mxu0 0
    %3994 = vmatpush1.bf16.msra.mxu0 0
    %3995 = vmatprep.subr.bf16.mxu0 0
    %3996 = vmatpush1.bf16.msra.mxu0 0
    %3997 = vmatprep.subr.bf16.mxu0 0
    %3998 = vmatpush1.bf16.msra.mxu0 0
    %3999 = vmatprep.subr.bf16.mxu0 0
    %4000 = vmatpush1.bf16.msra.mxu0 0
    %4001 = vmatprep.subr.bf16.mxu0 0
    %4002 = vmatpush1.bf16.msra.mxu0 0
    %4003 = vmatprep.subr.bf16.mxu0 0
    %4004 = vmatpush1.bf16.msra.mxu0 0
    %4005 = vmatprep.mubr.bf16.mxu0 0
    %4006 = vmatmul.mubr.bf16.gmra.mrb[0].mxu0 %v3790
    %v4007 = vpop.f32.mrb[0].mxu0
    %v4008 = vadd.f32 %v3833, %v4007
    %v4009 = vpop.f32.mrb[0].mxu0
    %v4010 = vadd.f32 %v3837, %v4009
    %v4011 = vpop.f32.mrb[0].mxu0
    %v4012 = vpop.f32.mrb[0].mxu0
    %4013 = vdwg.mxu0
    %4014 = vmatprep.subr.bf16.mxu0 0
    %4015 = vmatpush1.bf16.msra.mxu0 %v3927
    %4016 = vmatprep.subr.bf16.mxu0 0
    %4017 = vmatpush1.bf16.msra.mxu0 %v3930
    %4018 = vmatprep.subr.bf16.mxu0 0
    %4019 = vmatpush1.bf16.msra.mxu0 %v3933
    %4020 = vmatprep.subr.bf16.mxu0 0
    %4021 = vmatpush1.bf16.msra.mxu0 %v3936
    %4022 = vmatprep.subr.bf16.mxu0 0
    %4023 = vmatpush1.bf16.msra.mxu0 %v3939
    %4024 = vmatprep.subr.bf16.mxu0 0
    %4025 = vmatpush1.bf16.msra.mxu0 %v3942
    %4026 = vmatprep.subr.bf16.mxu0 0
    %4027 = vmatpush1.bf16.msra.mxu0 %v3945
    %4028 = vmatprep.subr.bf16.mxu0 0
    %4029 = vmatpush1.bf16.msra.mxu0 %v3948
    %4030 = vmatprep.subr.bf16.mxu0 0
    %4031 = vmatpush1.bf16.msra.mxu0 0
    %4032 = vmatprep.subr.bf16.mxu0 0
    %4033 = vmatpush1.bf16.msra.mxu0 0
    %4034 = vmatprep.subr.bf16.mxu0 0
    %4035 = vmatpush1.bf16.msra.mxu0 0
    %4036 = vmatprep.subr.bf16.mxu0 0
    %4037 = vmatpush1.bf16.msra.mxu0 0
    %4038 = vmatprep.subr.bf16.mxu0 0
    %4039 = vmatpush1.bf16.msra.mxu0 0
    %4040 = vmatprep.subr.bf16.mxu0 0
    %4041 = vmatpush1.bf16.msra.mxu0 0
    %4042 = vmatprep.subr.bf16.mxu0 0
    %4043 = vmatpush1.bf16.msra.mxu0 0
    %4044 = vmatprep.subr.bf16.mxu0 0
    %4045 = vmatpush1.bf16.msra.mxu0 0
    %4046 = vmatprep.mubr.bf16.mxu0 0
    %4047 = vmatmul.mubr.bf16.gmra.mrb[0].mxu0 %v3790
    %v4048 = vpop.f32.mrb[0].mxu0
    %v4049 = vadd.f32 %v3841, %v4048
    %v4050 = vpop.f32.mrb[0].mxu0
    %v4051 = vpop.f32.mrb[0].mxu0
    %v4052 = vpop.f32.mrb[0].mxu0
    %4053 = vdwg.mxu0
    %v4054 = vadd.f32 %v3793, %v4008
    %v4055 = vxor.u32 %v4054, 2147483648
    %v4056 = vmul.f32 %v4055, 1.442695
    %v4057 = vpow.pop %v4056
    %v4058 = vadd.f32 %v4057, 1.0
    %v4059 = vrcp.pop %v4058
    %v4060 = vmul.f32 1.0, %v4059
    %v4061 = vadd.f32 %v3794, %v4010
    %v4062 = vxor.u32 %v4061, 2147483648
    %v4063 = vmul.f32 %v4062, 1.442695
    %v4064 = vpow.pop %v4063
    %v4065 = vadd.f32 %v4064, 1.0
    %v4066 = vrcp.pop %v4065
    %v4067 = vmul.f32 1.0, %v4066
    %v4068 = vmul.f32 %v4060, %v4049
    %v4069 = vadd.f32 %v3795, %v4068
    %v4070 = vtanh.pop %v4069
    %v4071 = vsub.f32 %v3789, %v4070
    %v4072 = vmul.f32 %v4067, %v4071
    %v4073 = vadd.f32 %v4070, %v4072
    %v4074 = vpack.c.bf16 %v4073, %v4073
    %s4075 = scalar_lea.vmem %s7, 12
    %4076 = vst [vmem:[%s4075] sm:$0xf] %v4074
    %v4077 = vld [vmem:[%s1439] sm:$0xff]
    %v4078 = vld [vmem:[%s1439 + $0x8] sm:$0xff]
    %v4079 = vld [vmem:[%s1439 + $0x10] sm:$0xff]
    %v4080 = vld [vmem:[%s2943] sm:$0xff]
    %v4081 = vld [vmem:[%s2943 + $0x8] sm:$0xf]
    %v4082 = vld [vmem:[%s2943 + $0xc] sm:$0xff]
    %v4083 = vld [vmem:[%s2943 + $0x14] sm:$0xf]
    %v4084 = vld [vmem:[%s2943 + $0x18] sm:$0xff]
    %v4085 = vld [vmem:[%s2943 + $0x20] sm:$0xf]
    %v4086 = vld [vmem:[%s2943 + $0x24] sm:$0xff]
    %v4087 = vld [vmem:[%s2943 + $0x2c] sm:$0xf]
    %v4088 = vld [vmem:[%s2943 + $0x30] sm:$0xff]
    %v4089 = vld [vmem:[%s2943 + $0x38] sm:$0xf]
    %v4090 = vld [vmem:[%s2943 + $0x3c] sm:$0xff]
    %v4091 = vld [vmem:[%s2943 + $0x44] sm:$0xf]
    %v4092 = vld [vmem:[%s2943 + $0x48] sm:$0xff]
    %v4093 = vld [vmem:[%s2943 + $0x50] sm:$0xf]
    %v4094 = vld [vmem:[%s2943 + $0x54] sm:$0xff]
    %v4095 = vld [vmem:[%s2943 + $0x5c] sm:$0xf]
    %v4096 = vld [vmem:[%s2943 + $0x60] sm:$0xff]
    %v4097 = vld [vmem:[%s2943 + $0x68] sm:$0xf]
    %v4098 = vld [vmem:[%s2943 + $0x6c] sm:$0xff]
    %v4099 = vld [vmem:[%s2943 + $0x74] sm:$0xf]
    %v4100 = vld [vmem:[%s2943 + $0x78] sm:$0xff]
    %v4101 = vld [vmem:[%s2943 + $0x80] sm:$0xf]
    %v4102 = vld [vmem:[%s2943 + $0x84] sm:$0xff]
    %v4103 = vld [vmem:[%s2943 + $0x8c] sm:$0xf]
    %v4104 = vld [vmem:[%s2943 + $0x90] sm:$0xff]
    %v4105 = vld [vmem:[%s2943 + $0x98] sm:$0xf]
    %v4106 = vld [vmem:[%s2943 + $0x9c] sm:$0xff]
    %v4107 = vld [vmem:[%s2943 + $0xa4] sm:$0xf]
    %v4108 = vld [vmem:[%s2943 + $0xa8] sm:$0xff]
    %v4109 = vld [vmem:[%s2943 + $0xb0] sm:$0xf]
    %v4110 = vld [vmem:[%s2943 + $0xb4] sm:$0xff]
    %v4111 = vld [vmem:[%s2943 + $0xbc] sm:$0xf]
    %v4112 = vld [vmem:[%s2976] sm:$0x7]
    %v4114 = vlaneseq
    %v4115 = vshrl.u32 %v4114, 7
    %v4116 = vsub.s32 0, %v4115
    %v4117 = vrot.slane %v4112, %v4116
    %v4118 = vlaneseq
    %v4119 = vshrl.u32 %v4118, 7
    %v4120 = vsub.s32 1, %v4119
    %v4121 = vrot.slane %v4112, %v4120
    %v4122 = vlaneseq
    %v4123 = vshrl.u32 %v4122, 7
    %v4124 = vsub.s32 2, %v4123
    %v4125 = vrot.slane %v4112, %v4124
    %v4161 = vunpack.c.l.b16 %v4080
    %v4162 = vunpack.c.h.b16 %v4080
    %v4163 = vunpack.c.l.b16 %v4081
    %v4164 = vunpack.c.l.b16 %v4082
    %v4165 = vunpack.c.h.b16 %v4082
    %v4166 = vunpack.c.l.b16 %v4083
    %v4167 = vunpack.c.l.b16 %v4084
    %v4168 = vunpack.c.h.b16 %v4084
    %v4169 = vunpack.c.l.b16 %v4085
    %v4170 = vunpack.c.l.b16 %v4086
    %v4171 = vunpack.c.h.b16 %v4086
    %v4172 = vunpack.c.l.b16 %v4087
    %v4173 = vunpack.c.l.b16 %v4088
    %v4174 = vunpack.c.h.b16 %v4088
    %v4175 = vunpack.c.l.b16 %v4089
    %v4176 = vunpack.c.l.b16 %v4090
    %v4177 = vunpack.c.h.b16 %v4090
    %v4178 = vunpack.c.l.b16 %v4091
    %v4179 = vunpack.c.l.b16 %v4092
    %v4180 = vunpack.c.h.b16 %v4092
    %v4181 = vunpack.c.l.b16 %v4093
    %v4182 = vunpack.c.l.b16 %v4094
    %v4183 = vunpack.c.h.b16 %v4094
    %v4184 = vunpack.c.l.b16 %v4095
    %v4185 = vunpack.c.l.b16 %v4096
    %v4186 = vunpack.c.h.b16 %v4096
    %v4187 = vunpack.c.l.b16 %v4097
    %v4188 = vunpack.c.l.b16 %v4098
    %v4189 = vunpack.c.h.b16 %v4098
    %v4190 = vunpack.c.l.b16 %v4099
    %v4191 = vunpack.c.l.b16 %v4100
    %v4192 = vunpack.c.h.b16 %v4100
    %v4193 = vunpack.c.l.b16 %v4101
    %v4194 = vunpack.c.l.b16 %v4102
    %v4195 = vunpack.c.h.b16 %v4102
    %v4196 = vunpack.c.l.b16 %v4103
    %v4197 = vunpack.c.l.b16 %v4104
    %v4198 = vunpack.c.h.b16 %v4104
    %v4199 = vunpack.c.l.b16 %v4105
    %v4200 = vunpack.c.l.b16 %v4106
    %v4201 = vunpack.c.h.b16 %v4106
    %v4202 = vunpack.c.l.b16 %v4107
    %v4203 = vunpack.c.l.b16 %v4108
    %v4204 = vunpack.c.h.b16 %v4108
    %v4205 = vunpack.c.l.b16 %v4109
    %v4206 = vunpack.c.l.b16 %v4110
    %v4207 = vunpack.c.h.b16 %v4110
    %v4208 = vunpack.c.l.b16 %v4111
    %v4209 = vpack.c.b16 %v4164, %v4161
    %v4210 = vpack.c.b16 %v4165, %v4162
    %v4211 = vpack.c.b16 %v4166, %v4163
    %v4212 = vpack.c.b16 %v4170, %v4167
    %v4213 = vpack.c.b16 %v4171, %v4168
    %v4214 = vpack.c.b16 %v4172, %v4169
    %v4215 = vpack.c.b16 %v4176, %v4173
    %v4216 = vpack.c.b16 %v4177, %v4174
    %v4217 = vpack.c.b16 %v4178, %v4175
    %v4218 = vpack.c.b16 %v4182, %v4179
    %v4219 = vpack.c.b16 %v4183, %v4180
    %v4220 = vpack.c.b16 %v4184, %v4181
    %v4221 = vpack.c.b16 %v4188, %v4185
    %v4222 = vpack.c.b16 %v4189, %v4186
    %v4223 = vpack.c.b16 %v4190, %v4187
    %v4224 = vpack.c.b16 %v4194, %v4191
    %v4225 = vpack.c.b16 %v4195, %v4192
    %v4226 = vpack.c.b16 %v4196, %v4193
    %v4227 = vpack.c.b16 %v4200, %v4197
    %v4228 = vpack.c.b16 %v4201, %v4198
    %v4229 = vpack.c.b16 %v4202, %v4199
    %v4230 = vpack.c.b16 %v4206, %v4203
    %v4231 = vpack.c.b16 %v4207, %v4204
    %v4232 = vpack.c.b16 %v4208, %v4205
    %4257 = vmatprep.subr.bf16.mxu0 %v4210
    %4258 = vmatpush1.bf16.msra.mxu0 %v4209
    %4259 = vmatprep.subr.bf16.mxu0 %v4213
    %4260 = vmatpush1.bf16.msra.mxu0 %v4212
    %4261 = vmatprep.subr.bf16.mxu0 %v4216
    %4262 = vmatpush1.bf16.msra.mxu0 %v4215
    %4263 = vmatprep.subr.bf16.mxu0 %v4219
    %4264 = vmatpush1.bf16.msra.mxu0 %v4218
    %4265 = vmatprep.subr.bf16.mxu0 %v4222
    %4266 = vmatpush1.bf16.msra.mxu0 %v4221
    %4267 = vmatprep.subr.bf16.mxu0 %v4225
    %4268 = vmatpush1.bf16.msra.mxu0 %v4224
    %4269 = vmatprep.subr.bf16.mxu0 %v4228
    %4270 = vmatpush1.bf16.msra.mxu0 %v4227
    %4271 = vmatprep.subr.bf16.mxu0 %v4231
    %4272 = vmatpush1.bf16.msra.mxu0 %v4230
    %4273 = vmatprep.subr.bf16.mxu0 0
    %4274 = vmatpush1.bf16.msra.mxu0 0
    %4275 = vmatprep.subr.bf16.mxu0 0
    %4276 = vmatpush1.bf16.msra.mxu0 0
    %4277 = vmatprep.subr.bf16.mxu0 0
    %4278 = vmatpush1.bf16.msra.mxu0 0
    %4279 = vmatprep.subr.bf16.mxu0 0
    %4280 = vmatpush1.bf16.msra.mxu0 0
    %4281 = vmatprep.subr.bf16.mxu0 0
    %4282 = vmatpush1.bf16.msra.mxu0 0
    %4283 = vmatprep.subr.bf16.mxu0 0
    %4284 = vmatpush1.bf16.msra.mxu0 0
    %4285 = vmatprep.subr.bf16.mxu0 0
    %4286 = vmatpush1.bf16.msra.mxu0 0
    %4287 = vmatprep.subr.bf16.mxu0 0
    %4288 = vmatpush1.bf16.msra.mxu0 0
    %4289 = vmatprep.mubr.bf16.mxu0 0
    %4290 = vmatmul.mubr.bf16.gmra.mrb[0].mxu0 %v4074
    %v4291 = vpop.f32.mrb[0].mxu0
    %v4292 = vadd.f32 %v4117, %v4291
    %v4293 = vpop.f32.mrb[0].mxu0
    %v4294 = vadd.f32 %v4121, %v4293
    %v4295 = vpop.f32.mrb[0].mxu0
    %v4296 = vpop.f32.mrb[0].mxu0
    %4297 = vdwg.mxu0
    %4298 = vmatprep.subr.bf16.mxu0 0
    %4299 = vmatpush1.bf16.msra.mxu0 %v4211
    %4300 = vmatprep.subr.bf16.mxu0 0
    %4301 = vmatpush1.bf16.msra.mxu0 %v4214
    %4302 = vmatprep.subr.bf16.mxu0 0
    %4303 = vmatpush1.bf16.msra.mxu0 %v4217
    %4304 = vmatprep.subr.bf16.mxu0 0
    %4305 = vmatpush1.bf16.msra.mxu0 %v4220
    %4306 = vmatprep.subr.bf16.mxu0 0
    %4307 = vmatpush1.bf16.msra.mxu0 %v4223
    %4308 = vmatprep.subr.bf16.mxu0 0
    %4309 = vmatpush1.bf16.msra.mxu0 %v4226
    %4310 = vmatprep.subr.bf16.mxu0 0
    %4311 = vmatpush1.bf16.msra.mxu0 %v4229
    %4312 = vmatprep.subr.bf16.mxu0 0
    %4313 = vmatpush1.bf16.msra.mxu0 %v4232
    %4314 = vmatprep.subr.bf16.mxu0 0
    %4315 = vmatpush1.bf16.msra.mxu0 0
    %4316 = vmatprep.subr.bf16.mxu0 0
    %4317 = vmatpush1.bf16.msra.mxu0 0
    %4318 = vmatprep.subr.bf16.mxu0 0
    %4319 = vmatpush1.bf16.msra.mxu0 0
    %4320 = vmatprep.subr.bf16.mxu0 0
    %4321 = vmatpush1.bf16.msra.mxu0 0
    %4322 = vmatprep.subr.bf16.mxu0 0
    %4323 = vmatpush1.bf16.msra.mxu0 0
    %4324 = vmatprep.subr.bf16.mxu0 0
    %4325 = vmatpush1.bf16.msra.mxu0 0
    %4326 = vmatprep.subr.bf16.mxu0 0
    %4327 = vmatpush1.bf16.msra.mxu0 0
    %4328 = vmatprep.subr.bf16.mxu0 0
    %4329 = vmatpush1.bf16.msra.mxu0 0
    %4330 = vmatprep.mubr.bf16.mxu0 0
    %4331 = vmatmul.mubr.bf16.gmra.mrb[0].mxu0 %v4074
    %v4332 = vpop.f32.mrb[0].mxu0
    %v4333 = vadd.f32 %v4125, %v4332
    %v4334 = vpop.f32.mrb[0].mxu0
    %v4335 = vpop.f32.mrb[0].mxu0
    %v4336 = vpop.f32.mrb[0].mxu0
    %4337 = vdwg.mxu0
    %v4338 = vadd.f32 %v4077, %v4292
    %v4339 = vxor.u32 %v4338, 2147483648
    %v4340 = vmul.f32 %v4339, 1.442695
    %v4341 = vpow.pop %v4340
    %v4342 = vadd.f32 %v4341, 1.0
    %v4343 = vrcp.pop %v4342
    %v4344 = vmul.f32 1.0, %v4343
    %v4345 = vadd.f32 %v4078, %v4294
    %v4346 = vxor.u32 %v4345, 2147483648
    %v4347 = vmul.f32 %v4346, 1.442695
    %v4348 = vpow.pop %v4347
    %v4349 = vadd.f32 %v4348, 1.0
    %v4350 = vrcp.pop %v4349
    %v4351 = vmul.f32 1.0, %v4350
    %v4352 = vmul.f32 %v4344, %v4333
    %v4353 = vadd.f32 %v4079, %v4352
    %v4354 = vtanh.pop %v4353
    %v4355 = vsub.f32 %v4073, %v4354
    %v4356 = vmul.f32 %v4351, %v4355
    %v4357 = vadd.f32 %v4354, %v4356
    %v4358 = vpack.c.bf16 %v4357, %v4357
    %s4359 = scalar_lea.vmem %s7, 16
    %4360 = vst [vmem:[%s4359] sm:$0xf] %v4358
    %v4361 = vld [vmem:[%s1726] sm:$0xff]
    %v4362 = vld [vmem:[%s1726 + $0x8] sm:$0xff]
    %v4363 = vld [vmem:[%s1726 + $0x10] sm:$0xff]
    %v4364 = vld [vmem:[%s2943] sm:$0xff]
    %v4365 = vld [vmem:[%s2943 + $0x8] sm:$0xf]
    %v4366 = vld [vmem:[%s2943 + $0xc] sm:$0xff]
    %v4367 = vld [vmem:[%s2943 + $0x14] sm:$0xf]
    %v4368 = vld [vmem:[%s2943 + $0x18] sm:$0xff]
    %v4369 = vld [vmem:[%s2943 + $0x20] sm:$0xf]
    %v4370 = vld [vmem:[%s2943 + $0x24] sm:$0xff]
    %v4371 = vld [vmem:[%s2943 + $0x2c] sm:$0xf]
    %v4372 = vld [vmem:[%s2943 + $0x30] sm:$0xff]
    %v4373 = vld [vmem:[%s2943 + $0x38] sm:$0xf]
    %v4374 = vld [vmem:[%s2943 + $0x3c] sm:$0xff]
    %v4375 = vld [vmem:[%s2943 + $0x44] sm:$0xf]
    %v4376 = vld [vmem:[%s2943 + $0x48] sm:$0xff]
    %v4377 = vld [vmem:[%s2943 + $0x50] sm:$0xf]
    %v4378 = vld [vmem:[%s2943 + $0x54] sm:$0xff]
    %v4379 = vld [vmem:[%s2943 + $0x5c] sm:$0xf]
    %v4380 = vld [vmem:[%s2943 + $0x60] sm:$0xff]
    %v4381 = vld [vmem:[%s2943 + $0x68] sm:$0xf]
    %v4382 = vld [vmem:[%s2943 + $0x6c] sm:$0xff]
    %v4383 = vld [vmem:[%s2943 + $0x74] sm:$0xf]
    %v4384 = vld [vmem:[%s2943 + $0x78] sm:$0xff]
    %v4385 = vld [vmem:[%s2943 + $0x80] sm:$0xf]
    %v4386 = vld [vmem:[%s2943 + $0x84] sm:$0xff]
    %v4387 = vld [vmem:[%s2943 + $0x8c] sm:$0xf]
    %v4388 = vld [vmem:[%s2943 + $0x90] sm:$0xff]
    %v4389 = vld [vmem:[%s2943 + $0x98] sm:$0xf]
    %v4390 = vld [vmem:[%s2943 + $0x9c] sm:$0xff]
    %v4391 = vld [vmem:[%s2943 + $0xa4] sm:$0xf]
    %v4392 = vld [vmem:[%s2943 + $0xa8] sm:$0xff]
    %v4393 = vld [vmem:[%s2943 + $0xb0] sm:$0xf]
    %v4394 = vld [vmem:[%s2943 + $0xb4] sm:$0xff]
    %v4395 = vld [vmem:[%s2943 + $0xbc] sm:$0xf]
    %v4396 = vld [vmem:[%s2976] sm:$0x7]
    %v4398 = vlaneseq
    %v4399 = vshrl.u32 %v4398, 7
    %v4400 = vsub.s32 0, %v4399
    %v4401 = vrot.slane %v4396, %v4400
    %v4402 = vlaneseq
    %v4403 = vshrl.u32 %v4402, 7
    %v4404 = vsub.s32 1, %v4403
    %v4405 = vrot.slane %v4396, %v4404
    %v4406 = vlaneseq
    %v4407 = vshrl.u32 %v4406, 7
    %v4408 = vsub.s32 2, %v4407
    %v4409 = vrot.slane %v4396, %v4408
    %v4445 = vunpack.c.l.b16 %v4364
    %v4446 = vunpack.c.h.b16 %v4364
    %v4447 = vunpack.c.l.b16 %v4365
    %v4448 = vunpack.c.l.b16 %v4366
    %v4449 = vunpack.c.h.b16 %v4366
    %v4450 = vunpack.c.l.b16 %v4367
    %v4451 = vunpack.c.l.b16 %v4368
    %v4452 = vunpack.c.h.b16 %v4368
    %v4453 = vunpack.c.l.b16 %v4369
    %v4454 = vunpack.c.l.b16 %v4370
    %v4455 = vunpack.c.h.b16 %v4370
    %v4456 = vunpack.c.l.b16 %v4371
    %v4457 = vunpack.c.l.b16 %v4372
    %v4458 = vunpack.c.h.b16 %v4372
    %v4459 = vunpack.c.l.b16 %v4373
    %v4460 = vunpack.c.l.b16 %v4374
    %v4461 = vunpack.c.h.b16 %v4374
    %v4462 = vunpack.c.l.b16 %v4375
    %v4463 = vunpack.c.l.b16 %v4376
    %v4464 = vunpack.c.h.b16 %v4376
    %v4465 = vunpack.c.l.b16 %v4377
    %v4466 = vunpack.c.l.b16 %v4378
    %v4467 = vunpack.c.h.b16 %v4378
    %v4468 = vunpack.c.l.b16 %v4379
    %v4469 = vunpack.c.l.b16 %v4380
    %v4470 = vunpack.c.h.b16 %v4380
    %v4471 = vunpack.c.l.b16 %v4381
    %v4472 = vunpack.c.l.b16 %v4382
    %v4473 = vunpack.c.h.b16 %v4382
    %v4474 = vunpack.c.l.b16 %v4383
    %v4475 = vunpack.c.l.b16 %v4384
    %v4476 = vunpack.c.h.b16 %v4384
    %v4477 = vunpack.c.l.b16 %v4385
    %v4478 = vunpack.c.l.b16 %v4386
    %v4479 = vunpack.c.h.b16 %v4386
    %v4480 = vunpack.c.l.b16 %v4387
    %v4481 = vunpack.c.l.b16 %v4388
    %v4482 = vunpack.c.h.b16 %v4388
    %v4483 = vunpack.c.l.b16 %v4389
    %v4484 = vunpack.c.l.b16 %v4390
    %v4485 = vunpack.c.h.b16 %v4390
    %v4486 = vunpack.c.l.b16 %v4391
    %v4487 = vunpack.c.l.b16 %v4392
    %v4488 = vunpack.c.h.b16 %v4392
    %v4489 = vunpack.c.l.b16 %v4393
    %v4490 = vunpack.c.l.b16 %v4394
    %v4491 = vunpack.c.h.b16 %v4394
    %v4492 = vunpack.c.l.b16 %v4395
    %v4493 = vpack.c.b16 %v4448, %v4445
    %v4494 = vpack.c.b16 %v4449, %v4446
    %v4495 = vpack.c.b16 %v4450, %v4447
    %v4496 = vpack.c.b16 %v4454, %v4451
    %v4497 = vpack.c.b16 %v4455, %v4452
    %v4498 = vpack.c.b16 %v4456, %v4453
    %v4499 = vpack.c.b16 %v4460, %v4457
    %v4500 = vpack.c.b16 %v4461, %v4458
    %v4501 = vpack.c.b16 %v4462, %v4459
    %v4502 = vpack.c.b16 %v4466, %v4463
    %v4503 = vpack.c.b16 %v4467, %v4464
    %v4504 = vpack.c.b16 %v4468, %v4465
    %v4505 = vpack.c.b16 %v4472, %v4469
    %v4506 = vpack.c.b16 %v4473, %v4470
    %v4507 = vpack.c.b16 %v4474, %v4471
    %v4508 = vpack.c.b16 %v4478, %v4475
    %v4509 = vpack.c.b16 %v4479, %v4476
    %v4510 = vpack.c.b16 %v4480, %v4477
    %v4511 = vpack.c.b16 %v4484, %v4481
    %v4512 = vpack.c.b16 %v4485, %v4482
    %v4513 = vpack.c.b16 %v4486, %v4483
    %v4514 = vpack.c.b16 %v4490, %v4487
    %v4515 = vpack.c.b16 %v4491, %v4488
    %v4516 = vpack.c.b16 %v4492, %v4489
    %4541 = vmatprep.subr.bf16.mxu0 %v4494
    %4542 = vmatpush1.bf16.msra.mxu0 %v4493
    %4543 = vmatprep.subr.bf16.mxu0 %v4497
    %4544 = vmatpush1.bf16.msra.mxu0 %v4496
    %4545 = vmatprep.subr.bf16.mxu0 %v4500
    %4546 = vmatpush1.bf16.msra.mxu0 %v4499
    %4547 = vmatprep.subr.bf16.mxu0 %v4503
    %4548 = vmatpush1.bf16.msra.mxu0 %v4502
    %4549 = vmatprep.subr.bf16.mxu0 %v4506
    %4550 = vmatpush1.bf16.msra.mxu0 %v4505
    %4551 = vmatprep.subr.bf16.mxu0 %v4509
    %4552 = vmatpush1.bf16.msra.mxu0 %v4508
    %4553 = vmatprep.subr.bf16.mxu0 %v4512
    %4554 = vmatpush1.bf16.msra.mxu0 %v4511
    %4555 = vmatprep.subr.bf16.mxu0 %v4515
    %4556 = vmatpush1.bf16.msra.mxu0 %v4514
    %4557 = vmatprep.subr.bf16.mxu0 0
    %4558 = vmatpush1.bf16.msra.mxu0 0
    %4559 = vmatprep.subr.bf16.mxu0 0
    %4560 = vmatpush1.bf16.msra.mxu0 0
    %4561 = vmatprep.subr.bf16.mxu0 0
    %4562 = vmatpush1.bf16.msra.mxu0 0
    %4563 = vmatprep.subr.bf16.mxu0 0
    %4564 = vmatpush1.bf16.msra.mxu0 0
    %4565 = vmatprep.subr.bf16.mxu0 0
    %4566 = vmatpush1.bf16.msra.mxu0 0
    %4567 = vmatprep.subr.bf16.mxu0 0
    %4568 = vmatpush1.bf16.msra.mxu0 0
    %4569 = vmatprep.subr.bf16.mxu0 0
    %4570 = vmatpush1.bf16.msra.mxu0 0
    %4571 = vmatprep.subr.bf16.mxu0 0
    %4572 = vmatpush1.bf16.msra.mxu0 0
    %4573 = vmatprep.mubr.bf16.mxu0 0
    %4574 = vmatmul.mubr.bf16.gmra.mrb[0].mxu0 %v4358
    %v4575 = vpop.f32.mrb[0].mxu0
    %v4576 = vadd.f32 %v4401, %v4575
    %v4577 = vpop.f32.mrb[0].mxu0
    %v4578 = vadd.f32 %v4405, %v4577
    %v4579 = vpop.f32.mrb[0].mxu0
    %v4580 = vpop.f32.mrb[0].mxu0
    %4581 = vdwg.mxu0
    %4582 = vmatprep.subr.bf16.mxu0 0
    %4583 = vmatpush1.bf16.msra.mxu0 %v4495
    %4584 = vmatprep.subr.bf16.mxu0 0
    %4585 = vmatpush1.bf16.msra.mxu0 %v4498
    %4586 = vmatprep.subr.bf16.mxu0 0
    %4587 = vmatpush1.bf16.msra.mxu0 %v4501
    %4588 = vmatprep.subr.bf16.mxu0 0
    %4589 = vmatpush1.bf16.msra.mxu0 %v4504
    %4590 = vmatprep.subr.bf16.mxu0 0
    %4591 = vmatpush1.bf16.msra.mxu0 %v4507
    %4592 = vmatprep.subr.bf16.mxu0 0
    %4593 = vmatpush1.bf16.msra.mxu0 %v4510
    %4594 = vmatprep.subr.bf16.mxu0 0
    %4595 = vmatpush1.bf16.msra.mxu0 %v4513
    %4596 = vmatprep.subr.bf16.mxu0 0
    %4597 = vmatpush1.bf16.msra.mxu0 %v4516
    %4598 = vmatprep.subr.bf16.mxu0 0
    %4599 = vmatpush1.bf16.msra.mxu0 0
    %4600 = vmatprep.subr.bf16.mxu0 0
    %4601 = vmatpush1.bf16.msra.mxu0 0
    %4602 = vmatprep.subr.bf16.mxu0 0
    %4603 = vmatpush1.bf16.msra.mxu0 0
    %4604 = vmatprep.subr.bf16.mxu0 0
    %4605 = vmatpush1.bf16.msra.mxu0 0
    %4606 = vmatprep.subr.bf16.mxu0 0
    %4607 = vmatpush1.bf16.msra.mxu0 0
    %4608 = vmatprep.subr.bf16.mxu0 0
    %4609 = vmatpush1.bf16.msra.mxu0 0
    %4610 = vmatprep.subr.bf16.mxu0 0
    %4611 = vmatpush1.bf16.msra.mxu0 0
    %4612 = vmatprep.subr.bf16.mxu0 0
    %4613 = vmatpush1.bf16.msra.mxu0 0
    %4614 = vmatprep.mubr.bf16.mxu0 0
    %4615 = vmatmul.mubr.bf16.gmra.mrb[0].mxu0 %v4358
    %v4616 = vpop.f32.mrb[0].mxu0
    %v4617 = vadd.f32 %v4409, %v4616
    %v4618 = vpop.f32.mrb[0].mxu0
    %v4619 = vpop.f32.mrb[0].mxu0
    %v4620 = vpop.f32.mrb[0].mxu0
    %4621 = vdwg.mxu0
    %v4622 = vadd.f32 %v4361, %v4576
    %v4623 = vxor.u32 %v4622, 2147483648
    %v4624 = vmul.f32 %v4623, 1.442695
    %v4625 = vpow.pop %v4624
    %v4626 = vadd.f32 %v4625, 1.0
    %v4627 = vrcp.pop %v4626
    %v4628 = vmul.f32 1.0, %v4627
    %v4629 = vadd.f32 %v4362, %v4578
    %v4630 = vxor.u32 %v4629, 2147483648
    %v4631 = vmul.f32 %v4630, 1.442695
    %v4632 = vpow.pop %v4631
    %v4633 = vadd.f32 %v4632, 1.0
    %v4634 = vrcp.pop %v4633
    %v4635 = vmul.f32 1.0, %v4634
    %v4636 = vmul.f32 %v4628, %v4617
    %v4637 = vadd.f32 %v4363, %v4636
    %v4638 = vtanh.pop %v4637
    %v4639 = vsub.f32 %v4357, %v4638
    %v4640 = vmul.f32 %v4635, %v4639
    %v4641 = vadd.f32 %v4638, %v4640
    %v4642 = vpack.c.bf16 %v4641, %v4641
    %s4643 = scalar_lea.vmem %s7, 20
    %4644 = vst [vmem:[%s4643] sm:$0xf] %v4642
    %v4645 = vld [vmem:[%s2013] sm:$0xff]
    %v4646 = vld [vmem:[%s2013 + $0x8] sm:$0xff]
    %v4647 = vld [vmem:[%s2013 + $0x10] sm:$0xff]
    %v4648 = vld [vmem:[%s2943] sm:$0xff]
    %v4649 = vld [vmem:[%s2943 + $0x8] sm:$0xf]
    %v4650 = vld [vmem:[%s2943 + $0xc] sm:$0xff]
    %v4651 = vld [vmem:[%s2943 + $0x14] sm:$0xf]
    %v4652 = vld [vmem:[%s2943 + $0x18] sm:$0xff]
    %v4653 = vld [vmem:[%s2943 + $0x20] sm:$0xf]
    %v4654 = vld [vmem:[%s2943 + $0x24] sm:$0xff]
    %v4655 = vld [vmem:[%s2943 + $0x2c] sm:$0xf]
    %v4656 = vld [vmem:[%s2943 + $0x30] sm:$0xff]
    %v4657 = vld [vmem:[%s2943 + $0x38] sm:$0xf]
    %v4658 = vld [vmem:[%s2943 + $0x3c] sm:$0xff]
    %v4659 = vld [vmem:[%s2943 + $0x44] sm:$0xf]
    %v4660 = vld [vmem:[%s2943 + $0x48] sm:$0xff]
    %v4661 = vld [vmem:[%s2943 + $0x50] sm:$0xf]
    %v4662 = vld [vmem:[%s2943 + $0x54] sm:$0xff]
    %v4663 = vld [vmem:[%s2943 + $0x5c] sm:$0xf]
    %v4664 = vld [vmem:[%s2943 + $0x60] sm:$0xff]
    %v4665 = vld [vmem:[%s2943 + $0x68] sm:$0xf]
    %v4666 = vld [vmem:[%s2943 + $0x6c] sm:$0xff]
    %v4667 = vld [vmem:[%s2943 + $0x74] sm:$0xf]
    %v4668 = vld [vmem:[%s2943 + $0x78] sm:$0xff]
    %v4669 = vld [vmem:[%s2943 + $0x80] sm:$0xf]
    %v4670 = vld [vmem:[%s2943 + $0x84] sm:$0xff]
    %v4671 = vld [vmem:[%s2943 + $0x8c] sm:$0xf]
    %v4672 = vld [vmem:[%s2943 + $0x90] sm:$0xff]
    %v4673 = vld [vmem:[%s2943 + $0x98] sm:$0xf]
    %v4674 = vld [vmem:[%s2943 + $0x9c] sm:$0xff]
    %v4675 = vld [vmem:[%s2943 + $0xa4] sm:$0xf]
    %v4676 = vld [vmem:[%s2943 + $0xa8] sm:$0xff]
    %v4677 = vld [vmem:[%s2943 + $0xb0] sm:$0xf]
    %v4678 = vld [vmem:[%s2943 + $0xb4] sm:$0xff]
    %v4679 = vld [vmem:[%s2943 + $0xbc] sm:$0xf]
    %v4680 = vld [vmem:[%s2976] sm:$0x7]
    %v4682 = vlaneseq
    %v4683 = vshrl.u32 %v4682, 7
    %v4684 = vsub.s32 0, %v4683
    %v4685 = vrot.slane %v4680, %v4684
    %v4686 = vlaneseq
    %v4687 = vshrl.u32 %v4686, 7
    %v4688 = vsub.s32 1, %v4687
    %v4689 = vrot.slane %v4680, %v4688
    %v4690 = vlaneseq
    %v4691 = vshrl.u32 %v4690, 7
    %v4692 = vsub.s32 2, %v4691
    %v4693 = vrot.slane %v4680, %v4692
    %v4729 = vunpack.c.l.b16 %v4648
    %v4730 = vunpack.c.h.b16 %v4648
    %v4731 = vunpack.c.l.b16 %v4649
    %v4732 = vunpack.c.l.b16 %v4650
    %v4733 = vunpack.c.h.b16 %v4650
    %v4734 = vunpack.c.l.b16 %v4651
    %v4735 = vunpack.c.l.b16 %v4652
    %v4736 = vunpack.c.h.b16 %v4652
    %v4737 = vunpack.c.l.b16 %v4653
    %v4738 = vunpack.c.l.b16 %v4654
    %v4739 = vunpack.c.h.b16 %v4654
    %v4740 = vunpack.c.l.b16 %v4655
    %v4741 = vunpack.c.l.b16 %v4656
    %v4742 = vunpack.c.h.b16 %v4656
    %v4743 = vunpack.c.l.b16 %v4657
    %v4744 = vunpack.c.l.b16 %v4658
    %v4745 = vunpack.c.h.b16 %v4658
    %v4746 = vunpack.c.l.b16 %v4659
    %v4747 = vunpack.c.l.b16 %v4660
    %v4748 = vunpack.c.h.b16 %v4660
    %v4749 = vunpack.c.l.b16 %v4661
    %v4750 = vunpack.c.l.b16 %v4662
    %v4751 = vunpack.c.h.b16 %v4662
    %v4752 = vunpack.c.l.b16 %v4663
    %v4753 = vunpack.c.l.b16 %v4664
    %v4754 = vunpack.c.h.b16 %v4664
    %v4755 = vunpack.c.l.b16 %v4665
    %v4756 = vunpack.c.l.b16 %v4666
    %v4757 = vunpack.c.h.b16 %v4666
    %v4758 = vunpack.c.l.b16 %v4667
    %v4759 = vunpack.c.l.b16 %v4668
    %v4760 = vunpack.c.h.b16 %v4668
    %v4761 = vunpack.c.l.b16 %v4669
    %v4762 = vunpack.c.l.b16 %v4670
    %v4763 = vunpack.c.h.b16 %v4670
    %v4764 = vunpack.c.l.b16 %v4671
    %v4765 = vunpack.c.l.b16 %v4672
    %v4766 = vunpack.c.h.b16 %v4672
    %v4767 = vunpack.c.l.b16 %v4673
    %v4768 = vunpack.c.l.b16 %v4674
    %v4769 = vunpack.c.h.b16 %v4674
    %v4770 = vunpack.c.l.b16 %v4675
    %v4771 = vunpack.c.l.b16 %v4676
    %v4772 = vunpack.c.h.b16 %v4676
    %v4773 = vunpack.c.l.b16 %v4677
    %v4774 = vunpack.c.l.b16 %v4678
    %v4775 = vunpack.c.h.b16 %v4678
    %v4776 = vunpack.c.l.b16 %v4679
    %v4777 = vpack.c.b16 %v4732, %v4729
    %v4778 = vpack.c.b16 %v4733, %v4730
    %v4779 = vpack.c.b16 %v4734, %v4731
    %v4780 = vpack.c.b16 %v4738, %v4735
    %v4781 = vpack.c.b16 %v4739, %v4736
    %v4782 = vpack.c.b16 %v4740, %v4737
    %v4783 = vpack.c.b16 %v4744, %v4741
    %v4784 = vpack.c.b16 %v4745, %v4742
    %v4785 = vpack.c.b16 %v4746, %v4743
    %v4786 = vpack.c.b16 %v4750, %v4747
    %v4787 = vpack.c.b16 %v4751, %v4748
    %v4788 = vpack.c.b16 %v4752, %v4749
    %v4789 = vpack.c.b16 %v4756, %v4753
    %v4790 = vpack.c.b16 %v4757, %v4754
    %v4791 = vpack.c.b16 %v4758, %v4755
    %v4792 = vpack.c.b16 %v4762, %v4759
    %v4793 = vpack.c.b16 %v4763, %v4760
    %v4794 = vpack.c.b16 %v4764, %v4761
    %v4795 = vpack.c.b16 %v4768, %v4765
    %v4796 = vpack.c.b16 %v4769, %v4766
    %v4797 = vpack.c.b16 %v4770, %v4767
    %v4798 = vpack.c.b16 %v4774, %v4771
    %v4799 = vpack.c.b16 %v4775, %v4772
    %v4800 = vpack.c.b16 %v4776, %v4773
    %4825 = vmatprep.subr.bf16.mxu0 %v4778
    %4826 = vmatpush1.bf16.msra.mxu0 %v4777
    %4827 = vmatprep.subr.bf16.mxu0 %v4781
    %4828 = vmatpush1.bf16.msra.mxu0 %v4780
    %4829 = vmatprep.subr.bf16.mxu0 %v4784
    %4830 = vmatpush1.bf16.msra.mxu0 %v4783
    %4831 = vmatprep.subr.bf16.mxu0 %v4787
    %4832 = vmatpush1.bf16.msra.mxu0 %v4786
    %4833 = vmatprep.subr.bf16.mxu0 %v4790
    %4834 = vmatpush1.bf16.msra.mxu0 %v4789
    %4835 = vmatprep.subr.bf16.mxu0 %v4793
    %4836 = vmatpush1.bf16.msra.mxu0 %v4792
    %4837 = vmatprep.subr.bf16.mxu0 %v4796
    %4838 = vmatpush1.bf16.msra.mxu0 %v4795
    %4839 = vmatprep.subr.bf16.mxu0 %v4799
    %4840 = vmatpush1.bf16.msra.mxu0 %v4798
    %4841 = vmatprep.subr.bf16.mxu0 0
    %4842 = vmatpush1.bf16.msra.mxu0 0
    %4843 = vmatprep.subr.bf16.mxu0 0
    %4844 = vmatpush1.bf16.msra.mxu0 0
    %4845 = vmatprep.subr.bf16.mxu0 0
    %4846 = vmatpush1.bf16.msra.mxu0 0
    %4847 = vmatprep.subr.bf16.mxu0 0
    %4848 = vmatpush1.bf16.msra.mxu0 0
    %4849 = vmatprep.subr.bf16.mxu0 0
    %4850 = vmatpush1.bf16.msra.mxu0 0
    %4851 = vmatprep.subr.bf16.mxu0 0
    %4852 = vmatpush1.bf16.msra.mxu0 0
    %4853 = vmatprep.subr.bf16.mxu0 0
    %4854 = vmatpush1.bf16.msra.mxu0 0
    %4855 = vmatprep.subr.bf16.mxu0 0
    %4856 = vmatpush1.bf16.msra.mxu0 0
    %4857 = vmatprep.mubr.bf16.mxu0 0
    %4858 = vmatmul.mubr.bf16.gmra.mrb[0].mxu0 %v4642
    %v4859 = vpop.f32.mrb[0].mxu0
    %v4860 = vadd.f32 %v4685, %v4859
    %v4861 = vpop.f32.mrb[0].mxu0
    %v4862 = vadd.f32 %v4689, %v4861
    %v4863 = vpop.f32.mrb[0].mxu0
    %v4864 = vpop.f32.mrb[0].mxu0
    %4865 = vdwg.mxu0
    %4866 = vmatprep.subr.bf16.mxu0 0
    %4867 = vmatpush1.bf16.msra.mxu0 %v4779
    %4868 = vmatprep.subr.bf16.mxu0 0
    %4869 = vmatpush1.bf16.msra.mxu0 %v4782
    %4870 = vmatprep.subr.bf16.mxu0 0
    %4871 = vmatpush1.bf16.msra.mxu0 %v4785
    %4872 = vmatprep.subr.bf16.mxu0 0
    %4873 = vmatpush1.bf16.msra.mxu0 %v4788
    %4874 = vmatprep.subr.bf16.mxu0 0
    %4875 = vmatpush1.bf16.msra.mxu0 %v4791
    %4876 = vmatprep.subr.bf16.mxu0 0
    %4877 = vmatpush1.bf16.msra.mxu0 %v4794
    %4878 = vmatprep.subr.bf16.mxu0 0
    %4879 = vmatpush1.bf16.msra.mxu0 %v4797
    %4880 = vmatprep.subr.bf16.mxu0 0
    %4881 = vmatpush1.bf16.msra.mxu0 %v4800
    %4882 = vmatprep.subr.bf16.mxu0 0
    %4883 = vmatpush1.bf16.msra.mxu0 0
    %4884 = vmatprep.subr.bf16.mxu0 0
    %4885 = vmatpush1.bf16.msra.mxu0 0
    %4886 = vmatprep.subr.bf16.mxu0 0
    %4887 = vmatpush1.bf16.msra.mxu0 0
    %4888 = vmatprep.subr.bf16.mxu0 0
    %4889 = vmatpush1.bf16.msra.mxu0 0
    %4890 = vmatprep.subr.bf16.mxu0 0
    %4891 = vmatpush1.bf16.msra.mxu0 0
    %4892 = vmatprep.subr.bf16.mxu0 0
    %4893 = vmatpush1.bf16.msra.mxu0 0
    %4894 = vmatprep.subr.bf16.mxu0 0
    %4895 = vmatpush1.bf16.msra.mxu0 0
    %4896 = vmatprep.subr.bf16.mxu0 0
    %4897 = vmatpush1.bf16.msra.mxu0 0
    %4898 = vmatprep.mubr.bf16.mxu0 0
    %4899 = vmatmul.mubr.bf16.gmra.mrb[0].mxu0 %v4642
    %v4900 = vpop.f32.mrb[0].mxu0
    %v4901 = vadd.f32 %v4693, %v4900
    %v4902 = vpop.f32.mrb[0].mxu0
    %v4903 = vpop.f32.mrb[0].mxu0
    %v4904 = vpop.f32.mrb[0].mxu0
    %4905 = vdwg.mxu0
    %v4906 = vadd.f32 %v4645, %v4860
    %v4907 = vxor.u32 %v4906, 2147483648
    %v4908 = vmul.f32 %v4907, 1.442695
    %v4909 = vpow.pop %v4908
    %v4910 = vadd.f32 %v4909, 1.0
    %v4911 = vrcp.pop %v4910
    %v4912 = vmul.f32 1.0, %v4911
    %v4913 = vadd.f32 %v4646, %v4862
    %v4914 = vxor.u32 %v4913, 2147483648
    %v4915 = vmul.f32 %v4914, 1.442695
    %v4916 = vpow.pop %v4915
    %v4917 = vadd.f32 %v4916, 1.0
    %v4918 = vrcp.pop %v4917
    %v4919 = vmul.f32 1.0, %v4918
    %v4920 = vmul.f32 %v4912, %v4901
    %v4921 = vadd.f32 %v4647, %v4920
    %v4922 = vtanh.pop %v4921
    %v4923 = vsub.f32 %v4641, %v4922
    %v4924 = vmul.f32 %v4919, %v4923
    %v4925 = vadd.f32 %v4922, %v4924
    %v4926 = vpack.c.bf16 %v4925, %v4925
    %s4927 = scalar_lea.vmem %s7, 24
    %4928 = vst [vmem:[%s4927] sm:$0xf] %v4926
    %v4929 = vld [vmem:[%s2300] sm:$0xff]
    %v4930 = vld [vmem:[%s2300 + $0x8] sm:$0xff]
    %v4931 = vld [vmem:[%s2300 + $0x10] sm:$0xff]
    %v4932 = vld [vmem:[%s2943] sm:$0xff]
    %v4933 = vld [vmem:[%s2943 + $0x8] sm:$0xf]
    %v4934 = vld [vmem:[%s2943 + $0xc] sm:$0xff]
    %v4935 = vld [vmem:[%s2943 + $0x14] sm:$0xf]
    %v4936 = vld [vmem:[%s2943 + $0x18] sm:$0xff]
    %v4937 = vld [vmem:[%s2943 + $0x20] sm:$0xf]
    %v4938 = vld [vmem:[%s2943 + $0x24] sm:$0xff]
    %v4939 = vld [vmem:[%s2943 + $0x2c] sm:$0xf]
    %v4940 = vld [vmem:[%s2943 + $0x30] sm:$0xff]
    %v4941 = vld [vmem:[%s2943 + $0x38] sm:$0xf]
    %v4942 = vld [vmem:[%s2943 + $0x3c] sm:$0xff]
    %v4943 = vld [vmem:[%s2943 + $0x44] sm:$0xf]
    %v4944 = vld [vmem:[%s2943 + $0x48] sm:$0xff]
    %v4945 = vld [vmem:[%s2943 + $0x50] sm:$0xf]
    %v4946 = vld [vmem:[%s2943 + $0x54] sm:$0xff]
    %v4947 = vld [vmem:[%s2943 + $0x5c] sm:$0xf]
    %v4948 = vld [vmem:[%s2943 + $0x60] sm:$0xff]
    %v4949 = vld [vmem:[%s2943 + $0x68] sm:$0xf]
    %v4950 = vld [vmem:[%s2943 + $0x6c] sm:$0xff]
    %v4951 = vld [vmem:[%s2943 + $0x74] sm:$0xf]
    %v4952 = vld [vmem:[%s2943 + $0x78] sm:$0xff]
    %v4953 = vld [vmem:[%s2943 + $0x80] sm:$0xf]
    %v4954 = vld [vmem:[%s2943 + $0x84] sm:$0xff]
    %v4955 = vld [vmem:[%s2943 + $0x8c] sm:$0xf]
    %v4956 = vld [vmem:[%s2943 + $0x90] sm:$0xff]
    %v4957 = vld [vmem:[%s2943 + $0x98] sm:$0xf]
    %v4958 = vld [vmem:[%s2943 + $0x9c] sm:$0xff]
    %v4959 = vld [vmem:[%s2943 + $0xa4] sm:$0xf]
    %v4960 = vld [vmem:[%s2943 + $0xa8] sm:$0xff]
    %v4961 = vld [vmem:[%s2943 + $0xb0] sm:$0xf]
    %v4962 = vld [vmem:[%s2943 + $0xb4] sm:$0xff]
    %v4963 = vld [vmem:[%s2943 + $0xbc] sm:$0xf]
    %v4964 = vld [vmem:[%s2976] sm:$0x7]
    %v4966 = vlaneseq
    %v4967 = vshrl.u32 %v4966, 7
    %v4968 = vsub.s32 0, %v4967
    %v4969 = vrot.slane %v4964, %v4968
    %v4970 = vlaneseq
    %v4971 = vshrl.u32 %v4970, 7
    %v4972 = vsub.s32 1, %v4971
    %v4973 = vrot.slane %v4964, %v4972
    %v4974 = vlaneseq
    %v4975 = vshrl.u32 %v4974, 7
    %v4976 = vsub.s32 2, %v4975
    %v4977 = vrot.slane %v4964, %v4976
    %v5013 = vunpack.c.l.b16 %v4932
    %v5014 = vunpack.c.h.b16 %v4932
    %v5015 = vunpack.c.l.b16 %v4933
    %v5016 = vunpack.c.l.b16 %v4934
    %v5017 = vunpack.c.h.b16 %v4934
    %v5018 = vunpack.c.l.b16 %v4935
    %v5019 = vunpack.c.l.b16 %v4936
    %v5020 = vunpack.c.h.b16 %v4936
    %v5021 = vunpack.c.l.b16 %v4937
    %v5022 = vunpack.c.l.b16 %v4938
    %v5023 = vunpack.c.h.b16 %v4938
    %v5024 = vunpack.c.l.b16 %v4939
    %v5025 = vunpack.c.l.b16 %v4940
    %v5026 = vunpack.c.h.b16 %v4940
    %v5027 = vunpack.c.l.b16 %v4941
    %v5028 = vunpack.c.l.b16 %v4942
    %v5029 = vunpack.c.h.b16 %v4942
    %v5030 = vunpack.c.l.b16 %v4943
    %v5031 = vunpack.c.l.b16 %v4944
    %v5032 = vunpack.c.h.b16 %v4944
    %v5033 = vunpack.c.l.b16 %v4945
    %v5034 = vunpack.c.l.b16 %v4946
    %v5035 = vunpack.c.h.b16 %v4946
    %v5036 = vunpack.c.l.b16 %v4947
    %v5037 = vunpack.c.l.b16 %v4948
    %v5038 = vunpack.c.h.b16 %v4948
    %v5039 = vunpack.c.l.b16 %v4949
    %v5040 = vunpack.c.l.b16 %v4950
    %v5041 = vunpack.c.h.b16 %v4950
    %v5042 = vunpack.c.l.b16 %v4951
    %v5043 = vunpack.c.l.b16 %v4952
    %v5044 = vunpack.c.h.b16 %v4952
    %v5045 = vunpack.c.l.b16 %v4953
    %v5046 = vunpack.c.l.b16 %v4954
    %v5047 = vunpack.c.h.b16 %v4954
    %v5048 = vunpack.c.l.b16 %v4955
    %v5049 = vunpack.c.l.b16 %v4956
    %v5050 = vunpack.c.h.b16 %v4956
    %v5051 = vunpack.c.l.b16 %v4957
    %v5052 = vunpack.c.l.b16 %v4958
    %v5053 = vunpack.c.h.b16 %v4958
    %v5054 = vunpack.c.l.b16 %v4959
    %v5055 = vunpack.c.l.b16 %v4960
    %v5056 = vunpack.c.h.b16 %v4960
    %v5057 = vunpack.c.l.b16 %v4961
    %v5058 = vunpack.c.l.b16 %v4962
    %v5059 = vunpack.c.h.b16 %v4962
    %v5060 = vunpack.c.l.b16 %v4963
    %v5061 = vpack.c.b16 %v5016, %v5013
    %v5062 = vpack.c.b16 %v5017, %v5014
    %v5063 = vpack.c.b16 %v5018, %v5015
    %v5064 = vpack.c.b16 %v5022, %v5019
    %v5065 = vpack.c.b16 %v5023, %v5020
    %v5066 = vpack.c.b16 %v5024, %v5021
    %v5067 = vpack.c.b16 %v5028, %v5025
    %v5068 = vpack.c.b16 %v5029, %v5026
    %v5069 = vpack.c.b16 %v5030, %v5027
    %v5070 = vpack.c.b16 %v5034, %v5031
    %v5071 = vpack.c.b16 %v5035, %v5032
    %v5072 = vpack.c.b16 %v5036, %v5033
    %v5073 = vpack.c.b16 %v5040, %v5037
    %v5074 = vpack.c.b16 %v5041, %v5038
    %v5075 = vpack.c.b16 %v5042, %v5039
    %v5076 = vpack.c.b16 %v5046, %v5043
    %v5077 = vpack.c.b16 %v5047, %v5044
    %v5078 = vpack.c.b16 %v5048, %v5045
    %v5079 = vpack.c.b16 %v5052, %v5049
    %v5080 = vpack.c.b16 %v5053, %v5050
    %v5081 = vpack.c.b16 %v5054, %v5051
    %v5082 = vpack.c.b16 %v5058, %v5055
    %v5083 = vpack.c.b16 %v5059, %v5056
    %v5084 = vpack.c.b16 %v5060, %v5057
    %5109 = vmatprep.subr.bf16.mxu0 %v5062
    %5110 = vmatpush1.bf16.msra.mxu0 %v5061
    %5111 = vmatprep.subr.bf16.mxu0 %v5065
    %5112 = vmatpush1.bf16.msra.mxu0 %v5064
    %5113 = vmatprep.subr.bf16.mxu0 %v5068
    %5114 = vmatpush1.bf16.msra.mxu0 %v5067
    %5115 = vmatprep.subr.bf16.mxu0 %v5071
    %5116 = vmatpush1.bf16.msra.mxu0 %v5070
    %5117 = vmatprep.subr.bf16.mxu0 %v5074
    %5118 = vmatpush1.bf16.msra.mxu0 %v5073
    %5119 = vmatprep.subr.bf16.mxu0 %v5077
    %5120 = vmatpush1.bf16.msra.mxu0 %v5076
    %5121 = vmatprep.subr.bf16.mxu0 %v5080
    %5122 = vmatpush1.bf16.msra.mxu0 %v5079
    %5123 = vmatprep.subr.bf16.mxu0 %v5083
    %5124 = vmatpush1.bf16.msra.mxu0 %v5082
    %5125 = vmatprep.subr.bf16.mxu0 0
    %5126 = vmatpush1.bf16.msra.mxu0 0
    %5127 = vmatprep.subr.bf16.mxu0 0
    %5128 = vmatpush1.bf16.msra.mxu0 0
    %5129 = vmatprep.subr.bf16.mxu0 0
    %5130 = vmatpush1.bf16.msra.mxu0 0
    %5131 = vmatprep.subr.bf16.mxu0 0
    %5132 = vmatpush1.bf16.msra.mxu0 0
    %5133 = vmatprep.subr.bf16.mxu0 0
    %5134 = vmatpush1.bf16.msra.mxu0 0
    %5135 = vmatprep.subr.bf16.mxu0 0
    %5136 = vmatpush1.bf16.msra.mxu0 0
    %5137 = vmatprep.subr.bf16.mxu0 0
    %5138 = vmatpush1.bf16.msra.mxu0 0
    %5139 = vmatprep.subr.bf16.mxu0 0
    %5140 = vmatpush1.bf16.msra.mxu0 0
    %5141 = vmatprep.mubr.bf16.mxu0 0
    %5142 = vmatmul.mubr.bf16.gmra.mrb[0].mxu0 %v4926
    %v5143 = vpop.f32.mrb[0].mxu0
    %v5144 = vadd.f32 %v4969, %v5143
    %v5145 = vpop.f32.mrb[0].mxu0
    %v5146 = vadd.f32 %v4973, %v5145
    %v5147 = vpop.f32.mrb[0].mxu0
    %v5148 = vpop.f32.mrb[0].mxu0
    %5149 = vdwg.mxu0
    %5150 = vmatprep.subr.bf16.mxu0 0
    %5151 = vmatpush1.bf16.msra.mxu0 %v5063
    %5152 = vmatprep.subr.bf16.mxu0 0
    %5153 = vmatpush1.bf16.msra.mxu0 %v5066
    %5154 = vmatprep.subr.bf16.mxu0 0
    %5155 = vmatpush1.bf16.msra.mxu0 %v5069
    %5156 = vmatprep.subr.bf16.mxu0 0
    %5157 = vmatpush1.bf16.msra.mxu0 %v5072
    %5158 = vmatprep.subr.bf16.mxu0 0
    %5159 = vmatpush1.bf16.msra.mxu0 %v5075
    %5160 = vmatprep.subr.bf16.mxu0 0
    %5161 = vmatpush1.bf16.msra.mxu0 %v5078
    %5162 = vmatprep.subr.bf16.mxu0 0
    %5163 = vmatpush1.bf16.msra.mxu0 %v5081
    %5164 = vmatprep.subr.bf16.mxu0 0
    %5165 = vmatpush1.bf16.msra.mxu0 %v5084
    %5166 = vmatprep.subr.bf16.mxu0 0
    %5167 = vmatpush1.bf16.msra.mxu0 0
    %5168 = vmatprep.subr.bf16.mxu0 0
    %5169 = vmatpush1.bf16.msra.mxu0 0
    %5170 = vmatprep.subr.bf16.mxu0 0
    %5171 = vmatpush1.bf16.msra.mxu0 0
    %5172 = vmatprep.subr.bf16.mxu0 0
    %5173 = vmatpush1.bf16.msra.mxu0 0
    %5174 = vmatprep.subr.bf16.mxu0 0
    %5175 = vmatpush1.bf16.msra.mxu0 0
    %5176 = vmatprep.subr.bf16.mxu0 0
    %5177 = vmatpush1.bf16.msra.mxu0 0
    %5178 = vmatprep.subr.bf16.mxu0 0
    %5179 = vmatpush1.bf16.msra.mxu0 0
    %5180 = vmatprep.subr.bf16.mxu0 0
    %5181 = vmatpush1.bf16.msra.mxu0 0
    %5182 = vmatprep.mubr.bf16.mxu0 0
    %5183 = vmatmul.mubr.bf16.gmra.mrb[0].mxu0 %v4926
    %v5184 = vpop.f32.mrb[0].mxu0
    %v5185 = vadd.f32 %v4977, %v5184
    %v5186 = vpop.f32.mrb[0].mxu0
    %v5187 = vpop.f32.mrb[0].mxu0
    %v5188 = vpop.f32.mrb[0].mxu0
    %5189 = vdwg.mxu0
    %v5190 = vadd.f32 %v4929, %v5144
    %v5191 = vxor.u32 %v5190, 2147483648
    %v5192 = vmul.f32 %v5191, 1.442695
    %v5193 = vpow.pop %v5192
    %v5194 = vadd.f32 %v5193, 1.0
    %v5195 = vrcp.pop %v5194
    %v5196 = vmul.f32 1.0, %v5195
    %v5197 = vadd.f32 %v4930, %v5146
    %v5198 = vxor.u32 %v5197, 2147483648
    %v5199 = vmul.f32 %v5198, 1.442695
    %v5200 = vpow.pop %v5199
    %v5201 = vadd.f32 %v5200, 1.0
    %v5202 = vrcp.pop %v5201
    %v5203 = vmul.f32 1.0, %v5202
    %v5204 = vmul.f32 %v5196, %v5185
    %v5205 = vadd.f32 %v4931, %v5204
    %v5206 = vtanh.pop %v5205
    %v5207 = vsub.f32 %v4925, %v5206
    %v5208 = vmul.f32 %v5203, %v5207
    %v5209 = vadd.f32 %v5206, %v5208
    %v5210 = vpack.c.bf16 %v5209, %v5209
    %s5211 = scalar_lea.vmem %s7, 28
    %5212 = vst [vmem:[%s5211] sm:$0xf] %v5210
    %5213 = vst [vmem:[%s2937] sm:$0xff] %v5209
    %v5214 = vld [vmem:[#allocation2] sm:$0xff]
    %v5215 = vld [vmem:[#allocation2 + $0x8] sm:$0xff]
    %5216 = vst [vmem:[%s8] sm:$0xff] %v5214
    %5217 = vst [vmem:[%s8 + $0x8] sm:$0xff] %v5215
    // Predicated region
    $region38: #{char_rnn_forward.2} parent=1 // pred_check
      _
    $region39: #{char_rnn_forward.2} parent=1 // pred_check_branch
      %5219 = sbr.rel (0) target = $region41
    $region40: #{char_rnn_forward.2} parent=1 // pred_region
      _
    $region41: #{char_rnn_forward.2} parent=1 // pred_fallthru
      _
    // Predicated region
    $region42: #{char_rnn_forward.2} parent=1 // pred_check
      _
    $region43: #{char_rnn_forward.2} parent=1 // pred_check_branch
      %5221 = sbr.rel (0) target = $region45
    $region44: #{char_rnn_forward.2} parent=1 // pred_region
      _
    $region45: #{char_rnn_forward.2} parent=1 // pred_fallthru
      _
    // Predicated region
    $region46: #{char_rnn_forward.2} parent=1 // pred_check
      _
    $region47: #{char_rnn_forward.2} parent=1 // pred_check_branch
      %5223 = sbr.rel (0) target = $region49
    $region48: #{char_rnn_forward.2} parent=1 // pred_region
      _
    $region49: #{char_rnn_forward.2} parent=1 // pred_fallthru
      _
    // Predicated region
    $region50: #{char_rnn_forward.2} parent=1 // pred_check
      _
    $region51: #{char_rnn_forward.2} parent=1 // pred_check_branch
      %5225 = sbr.rel (0) target = $region53
    $region52: #{char_rnn_forward.2} parent=1 // pred_region
      _
    $region53: #{char_rnn_forward.2} parent=1 // pred_fallthru
      _
    %5226 = vsyncpa [#allocation6], 1

</llo_original>
